<compile_context>
chip_gen: v5e
topology: v5e:2x2
jax: 0.10.0
libtpu: 0.0.40
codegen_flags: <defaults>
</compile_context>

<pallas_src>
import math
import jax
import jax.numpy as jnp
from jax.experimental import pallas as pl
from jax.experimental.pallas import tpu as pltpu

# ---------------- config (small, consistent with the forward) ----------------
B, S = 2, 8          # batch, sequence length (tokenizer model_max_length analogue)
D1, D2 = 32, 64      # hidden sizes of text_encoder / text_encoder_2
HEAD_DIM = 16        # attention head dim (D1 -> 2 heads, D2 -> 4 heads)
N_LAYERS = 2         # transformer layers per encoder
VOCAB = 64
EOS_ID = VOCAB - 1   # tokenizer_2.eos_token_id analogue
PROJ_DIM = 64        # text_projection output dim
CLIP_SKIP = -1
LN_EPS = 1e-5
NEG_INF = -1e30

# number of layers applied before taking hidden_states[CLIP_SKIP]
SKIP_LAYERS = N_LAYERS + 1 + CLIP_SKIP
assert 0 <= SKIP_LAYERS <= N_LAYERS

PACKED_LAYER_KEYS = ('ln1_g', 'ln1_b', 'w_qkv', 'b_qkv', 'wo_h', 'bo',
                     'ln2_g', 'ln2_b', 'w1', 'b1', 'w2', 'b2')
N_LAYER_PARAMS = len(PACKED_LAYER_KEYS)          # 12
N_INPUTS = 2 + 2 * N_LAYER_PARAMS + 5            # emb1, emb2, enc1*, enc2*, fln g/b, projW, eos_sel, keep


def _vmem_specs(n):
    return [pl.BlockSpec(memory_space=pltpu.MemorySpace.VMEM) for _ in range(n)]


# ---------------------------- in-kernel math ---------------------------------
def _ln(x, g, b):
    m = jnp.mean(x, axis=-1, keepdims=True)
    v = jnp.mean((x - m) ** 2, axis=-1, keepdims=True)
    return (x - m) * jax.lax.rsqrt(v + LN_EPS) * g + b


def _clip_block(x, bsz, p, mask_add):
    """One pre-LN CLIP transformer block on a dense (B*S, D) activation.

    Causal MHA (fused QKV, per-head Wo blocks) + quick-GELU MLP, residuals.
    """
    (ln1g, ln1b, w_qkv, b_qkv, wo_h, bo, ln2g, ln2b, w1, b1, w2, b2) = p
    n, d = x.shape
    seq = n // bsz
    n_heads = d // HEAD_DIM
    scale = 1.0 / math.sqrt(HEAD_DIM)

    # --- self-attention (pre-LN); ONE fused QKV matmul (bf16 operands, f32 accum) ---
    h2 = _ln(x, ln1g, ln1b)
    qkv = jnp.dot(h2.astype(jnp.bfloat16), w_qkv,
                  preferred_element_type=jnp.float32) + b_qkv            # (N, 3D) f32
    q = (qkv[:, 0:d] * scale).reshape(bsz, seq, d)
    k = qkv[:, d:2 * d].reshape(bsz, seq, d)
    v = qkv[:, 2 * d:3 * d].reshape(bsz, seq, d)

    # Short static loop over heads (2 / 4 iters).  Each head's output is folded
    # through its pre-split Wo block (no in-kernel weight row-slicing); the
    # accumulator is initialized from head 0's contribution (no zeros + add).
    attn = None
    for h in range(n_heads):
        sl = slice(h * HEAD_DIM, (h + 1) * HEAD_DIM)
        logits = jnp.einsum('bqd,bkd->bqk', q[:, :, sl], k[:, :, sl],
                            preferred_element_type=jnp.float32) + mask_add
        logits = logits - jnp.max(logits, axis=-1, keepdims=True)
        p_exp = jnp.exp(logits)
        p_exp = p_exp * pl.reciprocal(jnp.sum(p_exp, axis=-1, keepdims=True), approx=True)
        head_out = jnp.einsum('bqk,bkd->bqd', p_exp, v[:, :, sl],
                              preferred_element_type=jnp.float32)        # (B, S, hd)
        contrib = jnp.dot(head_out.reshape(n, HEAD_DIM).astype(jnp.bfloat16), wo_h[h],
                          preferred_element_type=jnp.float32)            # (N, D)
        attn = contrib if attn is None else attn + contrib
    x = x + attn + bo

    # --- MLP (quick-GELU as in CLIP); elementwise math f32, MXU operands bf16 ---
    m = _ln(x, ln2g, ln2b)
    m = jnp.dot(m.astype(jnp.bfloat16), w1, preferred_element_type=jnp.float32) + b1
    m = m * jax.nn.sigmoid(1.702 * m)
    m = jnp.dot(m.astype(jnp.bfloat16), w2, preferred_element_type=jnp.float32) + b2
    return x + m


# ------------------------------ fused kernel ----------------------------------
def fused_text_model_kernel(*refs):
    emb1_ref, emb2_ref = refs[0], refs[1]
    enc1_refs = refs[2:2 + N_LAYER_PARAMS]
    enc2_refs = refs[2 + N_LAYER_PARAMS:2 + 2 * N_LAYER_PARAMS]
    (fln_g_ref, fln_b_ref, proj_w_ref,
     eos_sel_ref, keep_ref) = refs[2 + 2 * N_LAYER_PARAMS:N_INPUTS]
    hs_ref, pooled_ref = refs[N_INPUTS], refs[N_INPUTS + 1]

    bsz = emb1_ref.shape[0]

    # Additive causal mask: built and pre-broadcast ONCE; reused by every head of
    # every layer of both encoders (one VPU add per use, no per-use select).
    row = jax.lax.broadcasted_iota(jnp.int32, (S, S), 0)
    col = jax.lax.broadcasted_iota(jnp.int32, (S, S), 1)
    mask_add = jnp.broadcast_to(
        jnp.where(col <= row, 0.0, NEG_INF).astype(jnp.float32)[None, :, :],
        (bsz, S, S))

    # --- encoder 1: only hidden_states[CLIP_SKIP] (pre-final-LN) is needed ---
    x1 = emb1_ref[...].reshape(bsz * S, D1)
    for l in range(SKIP_LAYERS):
        x1 = _clip_block(x1, bsz, [r[l] for r in enc1_refs], mask_add)

    # --- encoder 2: hidden_states[CLIP_SKIP] + last_hidden_state (post-final-LN) ---
    x2 = emb2_ref[...].reshape(bsz * S, D2)
    x2_skip = x2
    for l in range(N_LAYERS):
        x2 = _clip_block(x2, bsz, [r[l] for r in enc2_refs], mask_add)
        if l + 1 == SKIP_LAYERS:
            x2_skip = x2

    # Feature-dim concat realized as two direct lane sub-slice stores
    # (no in-kernel jnp.concatenate and no extra VMEM temporary).
    hs_ref[:, :, 0:D1] = x1.reshape(bsz, S, D1).astype(hs_ref.dtype)
    hs_ref[:, :, D1:D1 + D2] = x2_skip.reshape(bsz, S, D2).astype(hs_ref.dtype)

    # --- pooled output: final LN -> EOS selection (matmul on dense 2-D layout)
    #     -> text projection -> empty-prompt zeroing ---
    last_hidden = _ln(x2, fln_g_ref[...], fln_b_ref[...])               # (B*S, D2)
    pooled = jnp.dot(eos_sel_ref[...], last_hidden,
                     preferred_element_type=jnp.float32)                # (B, D2)
    pooled = jnp.dot(pooled.astype(jnp.bfloat16), proj_w_ref[...],
                     preferred_element_type=jnp.float32)                # (B, PROJ)
    pooled = pooled * keep_ref[...]                                     # zero empty prompts
    pooled_ref[...] = pooled.astype(pooled_ref.dtype)


# ---------------------------- parameter helpers --------------------------------
def init_layer_params(key, d):
    ks = jax.random.split(key, 6)
    w = lambda k_, shape: jax.random.normal(k_, shape, jnp.float32) * 0.02
    return dict(
        ln1_g=jnp.ones((1, d), jnp.float32), ln1_b=jnp.zeros((1, d), jnp.float32),
        wq=w(ks[0], (d, d)), bq=jnp.zeros((1, d), jnp.float32),
        wk=w(ks[1], (d, d)), bk=jnp.zeros((1, d), jnp.float32),
        wv=w(ks[2], (d, d)), bv=jnp.zeros((1, d), jnp.float32),
        wo=w(ks[3], (d, d)), bo=jnp.zeros((1, d), jnp.float32),
        ln2_g=jnp.ones((1, d), jnp.float32), ln2_b=jnp.zeros((1, d), jnp.float32),
        w1=w(ks[4], (d, 4 * d)), b1=jnp.zeros((1, 4 * d), jnp.float32),
        w2=w(ks[5], (4 * d, d)), b2=jnp.zeros((1, d), jnp.float32),
    )


def init_encoder_params(key, d, n_layers):
    ks = jax.random.split(key, n_layers + 2)
    return dict(
        tok_emb=jax.random.normal(ks[0], (VOCAB, d), jnp.float32) * 0.02,
        pos_emb=jax.random.normal(ks[1], (S, d), jnp.float32) * 0.02,
        layers=[init_layer_params(ks[2 + i], d) for i in range(n_layers)],
        final_ln_g=jnp.ones((1, d), jnp.float32),
        final_ln_b=jnp.zeros((1, d), jnp.float32),
    )


def pack_encoder_layers(params, d):
    """One-time host-side re-layout of per-layer weights into kernel-ready form:
       * wq|wk|wv fused into (d, 3d) bf16 + fused f32 bias,
       * wo pre-split per head into a (H, hd, d) bf16 stack,
       * MLP weights cast to bf16, LN params / biases kept f32,
       * everything stacked along a leading layer axis (stays resident in VMEM)."""
    n_heads = d // HEAD_DIM
    per_layer = []
    for lp in params['layers']:
        per_layer.append(dict(
            ln1_g=lp['ln1_g'], ln1_b=lp['ln1_b'],
            w_qkv=jnp.concatenate([lp['wq'], lp['wk'], lp['wv']], axis=1).astype(jnp.bfloat16),
            b_qkv=jnp.concatenate([lp['bq'], lp['bk'], lp['bv']], axis=1),
            wo_h=lp['wo'].reshape(n_heads, HEAD_DIM, d).astype(jnp.bfloat16),
            bo=lp['bo'],
            ln2_g=lp['ln2_g'], ln2_b=lp['ln2_b'],
            w1=lp['w1'].astype(jnp.bfloat16), b1=lp['b1'],
            w2=lp['w2'].astype(jnp.bfloat16), b2=lp['b2'],
        ))
    return [jnp.stack([lay[k] for lay in per_layer], axis=0) for k in PACKED_LAYER_KEYS]


# ----------------------------- TextModel.forward ------------------------------
@jax.jit
def text_model_forward(tokens, tokens_2, empty_mask,
                       tok_emb1, pos_emb1, packed1,
                       tok_emb2, pos_emb2, packed2,
                       final_ln_g2, final_ln_b2, proj_w):
    bsz = tokens.shape[0]
    # plain-JAX glue: embedding-table gather + positional embedding
    emb1 = jnp.take(tok_emb1, tokens, axis=0) + pos_emb1[None, :, :]
    emb2 = jnp.take(tok_emb2, tokens_2, axis=0) + pos_emb2[None, :, :]

    # first-EOS index per row -> one-hot row selector over the flat (B*S) token axis
    eos_idx = jnp.argmax(tokens_2 == EOS_ID, axis=1)
    flat_pos = jnp.arange(bsz, dtype=jnp.int32) * S + eos_idx.astype(jnp.int32)
    eos_sel = jax.nn.one_hot(flat_pos, bsz * S, dtype=jnp.float32)        # (B, B*S)
    # empty-text mask -> multiplicative keep factor (B, 1)
    keep = jnp.where(empty_mask, 0.0, 1.0).astype(jnp.float32)[:, None]

    args = [emb1, emb2, *packed1, *packed2,
            final_ln_g2, final_ln_b2, proj_w, eos_sel, keep]
    assert len(args) == N_INPUTS

    # TODO(synk): at real CLIP sizes (D2=1280) do NOT keep all weights resident: add a
    # layer/K grid axis with bf16 weight BlockSpecs (pipeline_mode=pl.Buffered(2),
    # dimension_semantics=('arbitrary',)) sized for v7x's 64 MiB VMEM, and on v7x split
    # the two independent encoders across the 2 TensorCores (pl.core_map over
    # pltpu.create_tensorcore_mesh).  At these toy sizes everything fits in VMEM in one shot.
    hs, pooled = pl.pallas_call(
        fused_text_model_kernel,
        out_shape=(jax.ShapeDtypeStruct((bsz, S, D1 + D2), jnp.float32),
                   jax.ShapeDtypeStruct((bsz, PROJ_DIM), jnp.float32)),
        in_specs=_vmem_specs(len(args)),
        out_specs=(pl.BlockSpec(memory_space=pltpu.MemorySpace.VMEM),
                   pl.BlockSpec(memory_space=pltpu.MemorySpace.VMEM)),
    )(*args)
    return hs, pooled


# ------------------------------------ main -------------------------------------
if __name__ == "__main__":
    root = jax.random.PRNGKey(0)
    k_p1, k_p2, k_proj, k_tok1, k_tok2 = jax.random.split(root, 5)

    p1 = init_encoder_params(k_p1, D1, N_LAYERS)
    p2 = init_encoder_params(k_p2, D2, N_LAYERS)
    proj_w = (jax.random.normal(k_proj, (D2, PROJ_DIM), jnp.float32) * 0.02).astype(jnp.bfloat16)

    # host-side, one-time packing into kernel-ready stacked/fused bf16 weights
    packed1 = pack_encoder_layers(p1, D1)
    packed2 = pack_encoder_layers(p2, D2)

    # synthetic token ids with exactly one EOS per row of tokens_2
    tokens = jax.random.randint(k_tok1, (B, S), 1, VOCAB - 1, dtype=jnp.int32)
    tokens_2 = jax.random.randint(k_tok2, (B, S), 1, VOCAB - 1, dtype=jnp.int32)
    eos_positions = jnp.array([5, 1], dtype=jnp.int32)
    tokens_2 = tokens_2.at[jnp.arange(B), eos_positions].set(EOS_ID)

    # empty_text flags (second prompt "empty" -> its pooled output is zeroed)
    empty_mask = jnp.array([False, True])

    enc_hidden, pooled = text_model_forward(
        tokens, tokens_2, empty_mask,
        p1['tok_emb'], p1['pos_emb'], packed1,
        p2['tok_emb'], p2['pos_emb'], packed2,
        p2['final_ln_g'], p2['final_ln_b'], proj_w)
    jax.block_until_ready((enc_hidden, pooled))

    assert enc_hidden.shape == (B, S, D1 + D2)
    assert pooled.shape == (B, PROJ_DIM)
    assert bool(jnp.all(pooled[1] == 0.0))
    assert bool(jnp.all(jnp.isfinite(enc_hidden))) and bool(jnp.all(jnp.isfinite(pooled)))

    print("KERNEL_OK")
</pallas_src>

<mosaic_0001>
module attributes {stable_mosaic.version = 11 : i64} {
  func.func @fused_text_model_kernel(%arg0: memref<2x8x32xf32, #tpu.memory_space<vmem>>, %arg1: memref<2x8x64xf32, #tpu.memory_space<vmem>>, %arg2: memref<2x1x32xf32, #tpu.memory_space<vmem>>, %arg3: memref<2x1x32xf32, #tpu.memory_space<vmem>>, %arg4: memref<2x32x96xbf16, #tpu.memory_space<vmem>>, %arg5: memref<2x1x96xf32, #tpu.memory_space<vmem>>, %arg6: memref<2x2x16x32xbf16, #tpu.memory_space<vmem>>, %arg7: memref<2x1x32xf32, #tpu.memory_space<vmem>>, %arg8: memref<2x1x32xf32, #tpu.memory_space<vmem>>, %arg9: memref<2x1x32xf32, #tpu.memory_space<vmem>>, %arg10: memref<2x32x128xbf16, #tpu.memory_space<vmem>>, %arg11: memref<2x1x128xf32, #tpu.memory_space<vmem>>, %arg12: memref<2x128x32xbf16, #tpu.memory_space<vmem>>, %arg13: memref<2x1x32xf32, #tpu.memory_space<vmem>>, %arg14: memref<2x1x64xf32, #tpu.memory_space<vmem>>, %arg15: memref<2x1x64xf32, #tpu.memory_space<vmem>>, %arg16: memref<2x64x192xbf16, #tpu.memory_space<vmem>>, %arg17: memref<2x1x192xf32, #tpu.memory_space<vmem>>, %arg18: memref<2x4x16x64xbf16, #tpu.memory_space<vmem>>, %arg19: memref<2x1x64xf32, #tpu.memory_space<vmem>>, %arg20: memref<2x1x64xf32, #tpu.memory_space<vmem>>, %arg21: memref<2x1x64xf32, #tpu.memory_space<vmem>>, %arg22: memref<2x64x256xbf16, #tpu.memory_space<vmem>>, %arg23: memref<2x1x256xf32, #tpu.memory_space<vmem>>, %arg24: memref<2x256x64xbf16, #tpu.memory_space<vmem>>, %arg25: memref<2x1x64xf32, #tpu.memory_space<vmem>>, %arg26: memref<1x64xf32, #tpu.memory_space<vmem>>, %arg27: memref<1x64xf32, #tpu.memory_space<vmem>>, %arg28: memref<64x64xbf16, #tpu.memory_space<vmem>>, %arg29: memref<2x16xf32, #tpu.memory_space<vmem>>, %arg30: memref<2x1xf32, #tpu.memory_space<vmem>>, %arg31: memref<2x8x96xf32, #tpu.memory_space<vmem>>, %arg32: memref<2x64xf32, #tpu.memory_space<vmem>>) attributes {dimension_semantics = [], scalar_prefetch = 0 : i64, scratch_operands = 0 : i64, tpu.core_type = #tpu.core_type<tc>} {
    %0 = tpu.iota {dimensions = array<i32: 0>} : vector<8x8xi32>
    %1 = tpu.iota {dimensions = array<i32: 1>} : vector<8x8xi32>
    %2 = arith.cmpi sle, %1, %0 : vector<8x8xi32>
    %cst = arith.constant 0.000000e+00 : f32
    %cst_0 = arith.constant -1.000000e+30 : f32
    %3 = vector.broadcast %cst : f32 to vector<8x8xf32>
    %4 = vector.broadcast %cst_0 : f32 to vector<8x8xf32>
    %5 = arith.select %2, %3, %4 : vector<8x8xi1>, vector<8x8xf32>
    %6 = vector.shape_cast %5 : vector<8x8xf32> to vector<1x8x8xf32>
    %7 = vector.shape_cast %6 : vector<1x8x8xf32> to vector<1x8x8xf32>
    %8 = vector.broadcast %7 : vector<1x8x8xf32> to vector<2x8x8xf32>
    %c0 = arith.constant 0 : index
    %c0_1 = arith.constant 0 : index
    %c0_2 = arith.constant 0 : index
    %9 = vector.load %arg0[%c0, %c0_1, %c0_2] : memref<2x8x32xf32, #tpu.memory_space<vmem>>, vector<2x8x32xf32>
    %10 = vector.shape_cast %9 : vector<2x8x32xf32> to vector<16x32xf32>
    %c0_3 = arith.constant 0 : index
    %c0_4 = arith.constant 0 : index
    %c0_5 = arith.constant 0 : index
    %11 = vector.load %arg2[%c0_3, %c0_4, %c0_5] : memref<2x1x32xf32, #tpu.memory_space<vmem>>, vector<1x1x32xf32>
    %12 = vector.shape_cast %11 : vector<1x1x32xf32> to vector<1x32xf32>
    %c0_6 = arith.constant 0 : index
    %c0_7 = arith.constant 0 : index
    %c0_8 = arith.constant 0 : index
    %13 = vector.load %arg3[%c0_6, %c0_7, %c0_8] : memref<2x1x32xf32, #tpu.memory_space<vmem>>, vector<1x1x32xf32>
    %14 = vector.shape_cast %13 : vector<1x1x32xf32> to vector<1x32xf32>
    %c0_9 = arith.constant 0 : index
    %c0_10 = arith.constant 0 : index
    %c0_11 = arith.constant 0 : index
    %15 = vector.load %arg4[%c0_9, %c0_10, %c0_11] : memref<2x32x96xbf16, #tpu.memory_space<vmem>>, vector<1x32x96xbf16>
    %16 = vector.shape_cast %15 : vector<1x32x96xbf16> to vector<32x96xbf16>
    %c0_12 = arith.constant 0 : index
    %c0_13 = arith.constant 0 : index
    %c0_14 = arith.constant 0 : index
    %17 = vector.load %arg5[%c0_12, %c0_13, %c0_14] : memref<2x1x96xf32, #tpu.memory_space<vmem>>, vector<1x1x96xf32>
    %18 = vector.shape_cast %17 : vector<1x1x96xf32> to vector<1x96xf32>
    %c0_15 = arith.constant 0 : index
    %c0_16 = arith.constant 0 : index
    %c0_17 = arith.constant 0 : index
    %c0_18 = arith.constant 0 : index
    %19 = vector.load %arg6[%c0_15, %c0_16, %c0_17, %c0_18] : memref<2x2x16x32xbf16, #tpu.memory_space<vmem>>, vector<1x2x16x32xbf16>
    %20 = vector.shape_cast %19 : vector<1x2x16x32xbf16> to vector<2x16x32xbf16>
    %c0_19 = arith.constant 0 : index
    %c0_20 = arith.constant 0 : index
    %c0_21 = arith.constant 0 : index
    %21 = vector.load %arg7[%c0_19, %c0_20, %c0_21] : memref<2x1x32xf32, #tpu.memory_space<vmem>>, vector<1x1x32xf32>
    %22 = vector.shape_cast %21 : vector<1x1x32xf32> to vector<1x32xf32>
    %c0_22 = arith.constant 0 : index
    %c0_23 = arith.constant 0 : index
    %c0_24 = arith.constant 0 : index
    %23 = vector.load %arg8[%c0_22, %c0_23, %c0_24] : memref<2x1x32xf32, #tpu.memory_space<vmem>>, vector<1x1x32xf32>
    %24 = vector.shape_cast %23 : vector<1x1x32xf32> to vector<1x32xf32>
    %c0_25 = arith.constant 0 : index
    %c0_26 = arith.constant 0 : index
    %c0_27 = arith.constant 0 : index
    %25 = vector.load %arg9[%c0_25, %c0_26, %c0_27] : memref<2x1x32xf32, #tpu.memory_space<vmem>>, vector<1x1x32xf32>
    %26 = vector.shape_cast %25 : vector<1x1x32xf32> to vector<1x32xf32>
    %c0_28 = arith.constant 0 : index
    %c0_29 = arith.constant 0 : index
    %c0_30 = arith.constant 0 : index
    %27 = vector.load %arg10[%c0_28, %c0_29, %c0_30] : memref<2x32x128xbf16, #tpu.memory_space<vmem>>, vector<1x32x128xbf16>
    %28 = vector.shape_cast %27 : vector<1x32x128xbf16> to vector<32x128xbf16>
    %c0_31 = arith.constant 0 : index
    %c0_32 = arith.constant 0 : index
    %c0_33 = arith.constant 0 : index
    %29 = vector.load %arg11[%c0_31, %c0_32, %c0_33] : memref<2x1x128xf32, #tpu.memory_space<vmem>>, vector<1x1x128xf32>
    %30 = vector.shape_cast %29 : vector<1x1x128xf32> to vector<1x128xf32>
    %c0_34 = arith.constant 0 : index
    %c0_35 = arith.constant 0 : index
    %c0_36 = arith.constant 0 : index
    %31 = vector.load %arg12[%c0_34, %c0_35, %c0_36] : memref<2x128x32xbf16, #tpu.memory_space<vmem>>, vector<1x128x32xbf16>
    %32 = vector.shape_cast %31 : vector<1x128x32xbf16> to vector<128x32xbf16>
    %c0_37 = arith.constant 0 : index
    %c0_38 = arith.constant 0 : index
    %c0_39 = arith.constant 0 : index
    %33 = vector.load %arg13[%c0_37, %c0_38, %c0_39] : memref<2x1x32xf32, #tpu.memory_space<vmem>>, vector<1x1x32xf32>
    %34 = vector.shape_cast %33 : vector<1x1x32xf32> to vector<1x32xf32>
    %cst_40 = arith.constant dense<0.000000e+00> : vector<16xf32>
    %35 = vector.multi_reduction <add>, %10, %cst_40 [1] : vector<16x32xf32> to vector<16xf32>
    %36 = vector.shape_cast %35 : vector<16xf32> to vector<16x1xf32>
    %cst_41 = arith.constant 3.200000e+01 : f32
    %37 = vector.broadcast %cst_41 : f32 to vector<16x1xf32>
    %38 = arith.divf %36, %37 : vector<16x1xf32>
    %39 = vector.broadcast %38 : vector<16x1xf32> to vector<16x32xf32>
    %40 = arith.subf %10, %39 : vector<16x32xf32>
    %41 = arith.mulf %40, %40 : vector<16x32xf32>
    %cst_42 = arith.constant dense<0.000000e+00> : vector<16xf32>
    %42 = vector.multi_reduction <add>, %41, %cst_42 [1] : vector<16x32xf32> to vector<16xf32>
    %43 = vector.shape_cast %42 : vector<16xf32> to vector<16x1xf32>
    %cst_43 = arith.constant 3.200000e+01 : f32
    %44 = vector.broadcast %cst_43 : f32 to vector<16x1xf32>
    %45 = arith.divf %43, %44 : vector<16x1xf32>
    %46 = vector.broadcast %38 : vector<16x1xf32> to vector<16x32xf32>
    %47 = arith.subf %10, %46 : vector<16x32xf32>
    %cst_44 = arith.constant 9.99999974E-6 : f32
    %48 = vector.broadcast %cst_44 : f32 to vector<16x1xf32>
    %49 = arith.addf %45, %48 : vector<16x1xf32>
    %50 = math.rsqrt %49 : vector<16x1xf32>
    %51 = vector.broadcast %50 : vector<16x1xf32> to vector<16x32xf32>
    %52 = arith.mulf %47, %51 : vector<16x32xf32>
    %53 = vector.broadcast %12 : vector<1x32xf32> to vector<16x32xf32>
    %54 = arith.mulf %52, %53 : vector<16x32xf32>
    %55 = vector.broadcast %14 : vector<1x32xf32> to vector<16x32xf32>
    %56 = arith.addf %54, %55 : vector<16x32xf32>
    %57 = arith.truncf %56 : vector<16x32xf32> to vector<16x32xbf16>
    %cst_45 = arith.constant dense<0.000000e+00> : vector<16x96xf32>
    %58 = tpu.matmul %57, %16, %cst_45 {dimension_numbers = #tpu.dot_dimension_numbers<[1], [0], [0], [1], [0, 0, 1, 1], [], []>} : vector<16x32xbf16>, vector<32x96xbf16>, vector<16x96xf32> -> vector<16x96xf32>
    %59 = vector.broadcast %18 : vector<1x96xf32> to vector<16x96xf32>
    %60 = arith.addf %58, %59 : vector<16x96xf32>
    %61 = vector.extract_strided_slice %60 {offsets = [0, 0], sizes = [16, 32], strides = [1, 1]} : vector<16x96xf32> to vector<16x32xf32>
    %cst_46 = arith.constant 2.500000e-01 : f32
    %62 = vector.broadcast %cst_46 : f32 to vector<16x32xf32>
    %63 = arith.mulf %61, %62 : vector<16x32xf32>
    %64 = vector.shape_cast %63 : vector<16x32xf32> to vector<2x8x32xf32>
    %65 = vector.extract_strided_slice %60 {offsets = [0, 32], sizes = [16, 32], strides = [1, 1]} : vector<16x96xf32> to vector<16x32xf32>
    %66 = vector.shape_cast %65 : vector<16x32xf32> to vector<2x8x32xf32>
    %67 = vector.extract_strided_slice %60 {offsets = [0, 64], sizes = [16, 32], strides = [1, 1]} : vector<16x96xf32> to vector<16x32xf32>
    %68 = vector.shape_cast %67 : vector<16x32xf32> to vector<2x8x32xf32>
    %69 = vector.extract_strided_slice %64 {offsets = [0, 0, 0], sizes = [2, 8, 16], strides = [1, 1, 1]} : vector<2x8x32xf32> to vector<2x8x16xf32>
    %70 = vector.extract_strided_slice %66 {offsets = [0, 0, 0], sizes = [2, 8, 16], strides = [1, 1, 1]} : vector<2x8x32xf32> to vector<2x8x16xf32>
    "tpu.trace_start"() <{level = 10 : i32, message = "bqd,bkd->bqk"}> : () -> ()
    %cst_47 = arith.constant dense<0.000000e+00> : vector<2x8x8xf32>
    %71 = tpu.matmul %69, %70, %cst_47 {dimension_numbers = #tpu.dot_dimension_numbers<[2], [2], [1], [1], [0, 0, 0, 1, 1, 1], [0], [0]>} : vector<2x8x16xf32>, vector<2x8x16xf32>, vector<2x8x8xf32> -> vector<2x8x8xf32>
    "tpu.trace_stop"() : () -> ()
    %72 = arith.addf %71, %8 : vector<2x8x8xf32>
    %cst_48 = arith.constant dense<0xFF800000> : vector<2x8xf32>
    %73 = vector.multi_reduction <maximumf>, %72, %cst_48 [2] : vector<2x8x8xf32> to vector<2x8xf32>
    %74 = vector.shape_cast %73 : vector<2x8xf32> to vector<2x8x1xf32>
    %75 = vector.broadcast %74 : vector<2x8x1xf32> to vector<2x8x8xf32>
    %76 = arith.subf %72, %75 : vector<2x8x8xf32>
    %77 = math.exp %76 : vector<2x8x8xf32>
    %cst_49 = arith.constant dense<0.000000e+00> : vector<2x8xf32>
    %78 = vector.multi_reduction <add>, %77, %cst_49 [2] : vector<2x8x8xf32> to vector<2x8xf32>
    %79 = vector.shape_cast %78 : vector<2x8xf32> to vector<2x8x1xf32>
    %80 = tpu.reciprocal %79 {approx = true} : vector<2x8x1xf32> -> vector<2x8x1xf32>
    %81 = vector.broadcast %80 : vector<2x8x1xf32> to vector<2x8x8xf32>
    %82 = arith.mulf %77, %81 : vector<2x8x8xf32>
    %83 = vector.extract_strided_slice %68 {offsets = [0, 0, 0], sizes = [2, 8, 16], strides = [1, 1, 1]} : vector<2x8x32xf32> to vector<2x8x16xf32>
    "tpu.trace_start"() <{level = 10 : i32, message = "bqk,bkd->bqd"}> : () -> ()
    %cst_50 = arith.constant dense<0.000000e+00> : vector<2x8x16xf32>
    %84 = tpu.matmul %82, %83, %cst_50 {dimension_numbers = #tpu.dot_dimension_numbers<[2], [1], [1], [2], [0, 0, 0, 1, 1, 2], [0], [0]>} : vector<2x8x8xf32>, vector<2x8x16xf32>, vector<2x8x16xf32> -> vector<2x8x16xf32>
    "tpu.trace_stop"() : () -> ()
    %85 = vector.shape_cast %84 : vector<2x8x16xf32> to vector<16x16xf32>
    %86 = arith.truncf %85 : vector<16x16xf32> to vector<16x16xbf16>
    %87 = vector.extract_strided_slice %20 {offsets = [0, 0, 0], sizes = [1, 16, 32], strides = [1, 1, 1]} : vector<2x16x32xbf16> to vector<1x16x32xbf16>
    %88 = vector.shape_cast %87 : vector<1x16x32xbf16> to vector<16x32xbf16>
    %cst_51 = arith.constant dense<0.000000e+00> : vector<16x32xf32>
    %89 = tpu.matmul %86, %88, %cst_51 {dimension_numbers = #tpu.dot_dimension_numbers<[1], [0], [0], [1], [0, 0, 1, 1], [], []>} : vector<16x16xbf16>, vector<16x32xbf16>, vector<16x32xf32> -> vector<16x32xf32>
    %90 = vector.extract_strided_slice %64 {offsets = [0, 0, 16], sizes = [2, 8, 16], strides = [1, 1, 1]} : vector<2x8x32xf32> to vector<2x8x16xf32>
    %91 = vector.extract_strided_slice %66 {offsets = [0, 0, 16], sizes = [2, 8, 16], strides = [1, 1, 1]} : vector<2x8x32xf32> to vector<2x8x16xf32>
    "tpu.trace_start"() <{level = 10 : i32, message = "bqd,bkd->bqk"}> : () -> ()
    %cst_52 = arith.constant dense<0.000000e+00> : vector<2x8x8xf32>
    %92 = tpu.matmul %90, %91, %cst_52 {dimension_numbers = #tpu.dot_dimension_numbers<[2], [2], [1], [1], [0, 0, 0, 1, 1, 1], [0], [0]>} : vector<2x8x16xf32>, vector<2x8x16xf32>, vector<2x8x8xf32> -> vector<2x8x8xf32>
    "tpu.trace_stop"() : () -> ()
    %93 = arith.addf %92, %8 : vector<2x8x8xf32>
    %cst_53 = arith.constant dense<0xFF800000> : vector<2x8xf32>
    %94 = vector.multi_reduction <maximumf>, %93, %cst_53 [2] : vector<2x8x8xf32> to vector<2x8xf32>
    %95 = vector.shape_cast %94 : vector<2x8xf32> to vector<2x8x1xf32>
    %96 = vector.broadcast %95 : vector<2x8x1xf32> to vector<2x8x8xf32>
    %97 = arith.subf %93, %96 : vector<2x8x8xf32>
    %98 = math.exp %97 : vector<2x8x8xf32>
    %cst_54 = arith.constant dense<0.000000e+00> : vector<2x8xf32>
    %99 = vector.multi_reduction <add>, %98, %cst_54 [2] : vector<2x8x8xf32> to vector<2x8xf32>
    %100 = vector.shape_cast %99 : vector<2x8xf32> to vector<2x8x1xf32>
    %101 = tpu.reciprocal %100 {approx = true} : vector<2x8x1xf32> -> vector<2x8x1xf32>
    %102 = vector.broadcast %101 : vector<2x8x1xf32> to vector<2x8x8xf32>
    %103 = arith.mulf %98, %102 : vector<2x8x8xf32>
    %104 = vector.extract_strided_slice %68 {offsets = [0, 0, 16], sizes = [2, 8, 16], strides = [1, 1, 1]} : vector<2x8x32xf32> to vector<2x8x16xf32>
    "tpu.trace_start"() <{level = 10 : i32, message = "bqk,bkd->bqd"}> : () -> ()
    %cst_55 = arith.constant dense<0.000000e+00> : vector<2x8x16xf32>
    %105 = tpu.matmul %103, %104, %cst_55 {dimension_numbers = #tpu.dot_dimension_numbers<[2], [1], [1], [2], [0, 0, 0, 1, 1, 2], [0], [0]>} : vector<2x8x8xf32>, vector<2x8x16xf32>, vector<2x8x16xf32> -> vector<2x8x16xf32>
    "tpu.trace_stop"() : () -> ()
    %106 = vector.shape_cast %105 : vector<2x8x16xf32> to vector<16x16xf32>
    %107 = arith.truncf %106 : vector<16x16xf32> to vector<16x16xbf16>
    %108 = vector.extract_strided_slice %20 {offsets = [1, 0, 0], sizes = [1, 16, 32], strides = [1, 1, 1]} : vector<2x16x32xbf16> to vector<1x16x32xbf16>
    %109 = vector.shape_cast %108 : vector<1x16x32xbf16> to vector<16x32xbf16>
    %cst_56 = arith.constant dense<0.000000e+00> : vector<16x32xf32>
    %110 = tpu.matmul %107, %109, %cst_56 {dimension_numbers = #tpu.dot_dimension_numbers<[1], [0], [0], [1], [0, 0, 1, 1], [], []>} : vector<16x16xbf16>, vector<16x32xbf16>, vector<16x32xf32> -> vector<16x32xf32>
    %111 = arith.addf %89, %110 : vector<16x32xf32>
    %112 = arith.addf %10, %111 : vector<16x32xf32>
    %113 = vector.broadcast %22 : vector<1x32xf32> to vector<16x32xf32>
    %114 = arith.addf %112, %113 : vector<16x32xf32>
    %cst_57 = arith.constant dense<0.000000e+00> : vector<16xf32>
    %115 = vector.multi_reduction <add>, %114, %cst_57 [1] : vector<16x32xf32> to vector<16xf32>
    %116 = vector.shape_cast %115 : vector<16xf32> to vector<16x1xf32>
    %cst_58 = arith.constant 3.200000e+01 : f32
    %117 = vector.broadcast %cst_58 : f32 to vector<16x1xf32>
    %118 = arith.divf %116, %117 : vector<16x1xf32>
    %119 = vector.broadcast %118 : vector<16x1xf32> to vector<16x32xf32>
    %120 = arith.subf %114, %119 : vector<16x32xf32>
    %121 = arith.mulf %120, %120 : vector<16x32xf32>
    %cst_59 = arith.constant dense<0.000000e+00> : vector<16xf32>
    %122 = vector.multi_reduction <add>, %121, %cst_59 [1] : vector<16x32xf32> to vector<16xf32>
    %123 = vector.shape_cast %122 : vector<16xf32> to vector<16x1xf32>
    %cst_60 = arith.constant 3.200000e+01 : f32
    %124 = vector.broadcast %cst_60 : f32 to vector<16x1xf32>
    %125 = arith.divf %123, %124 : vector<16x1xf32>
    %126 = vector.broadcast %118 : vector<16x1xf32> to vector<16x32xf32>
    %127 = arith.subf %114, %126 : vector<16x32xf32>
    %cst_61 = arith.constant 9.99999974E-6 : f32
    %128 = vector.broadcast %cst_61 : f32 to vector<16x1xf32>
    %129 = arith.addf %125, %128 : vector<16x1xf32>
    %130 = math.rsqrt %129 : vector<16x1xf32>
    %131 = vector.broadcast %130 : vector<16x1xf32> to vector<16x32xf32>
    %132 = arith.mulf %127, %131 : vector<16x32xf32>
    %133 = vector.broadcast %24 : vector<1x32xf32> to vector<16x32xf32>
    %134 = arith.mulf %132, %133 : vector<16x32xf32>
    %135 = vector.broadcast %26 : vector<1x32xf32> to vector<16x32xf32>
    %136 = arith.addf %134, %135 : vector<16x32xf32>
    %137 = arith.truncf %136 : vector<16x32xf32> to vector<16x32xbf16>
    %cst_62 = arith.constant dense<0.000000e+00> : vector<16x128xf32>
    %138 = tpu.matmul %137, %28, %cst_62 {dimension_numbers = #tpu.dot_dimension_numbers<[1], [0], [0], [1], [0, 0, 1, 1], [], []>} : vector<16x32xbf16>, vector<32x128xbf16>, vector<16x128xf32> -> vector<16x128xf32>
    %139 = vector.broadcast %30 : vector<1x128xf32> to vector<16x128xf32>
    %140 = arith.addf %138, %139 : vector<16x128xf32>
    %cst_63 = arith.constant 1.702000e+00 : f32
    %141 = vector.broadcast %cst_63 : f32 to vector<16x128xf32>
    %142 = arith.mulf %141, %140 : vector<16x128xf32>
    %143 = arith.negf %142 : vector<16x128xf32>
    %144 = math.exp %143 : vector<16x128xf32>
    %cst_64 = arith.constant 1.000000e+00 : f32
    %145 = vector.broadcast %cst_64 : f32 to vector<16x128xf32>
    %146 = arith.addf %145, %144 : vector<16x128xf32>
    %147 = arith.divf %145, %146 : vector<16x128xf32>
    %148 = arith.mulf %140, %147 : vector<16x128xf32>
    %149 = arith.truncf %148 : vector<16x128xf32> to vector<16x128xbf16>
    %cst_65 = arith.constant dense<0.000000e+00> : vector<16x32xf32>
    %150 = tpu.matmul %149, %32, %cst_65 {dimension_numbers = #tpu.dot_dimension_numbers<[1], [0], [0], [1], [0, 0, 1, 1], [], []>} : vector<16x128xbf16>, vector<128x32xbf16>, vector<16x32xf32> -> vector<16x32xf32>
    %151 = vector.broadcast %34 : vector<1x32xf32> to vector<16x32xf32>
    %152 = arith.addf %150, %151 : vector<16x32xf32>
    %153 = arith.addf %114, %152 : vector<16x32xf32>
    %c1 = arith.constant 1 : index
    %c0_66 = arith.constant 0 : index
    %c0_67 = arith.constant 0 : index
    %154 = vector.load %arg2[%c1, %c0_66, %c0_67] : memref<2x1x32xf32, #tpu.memory_space<vmem>>, vector<1x1x32xf32>
    %155 = vector.shape_cast %154 : vector<1x1x32xf32> to vector<1x32xf32>
    %c1_68 = arith.constant 1 : index
    %c0_69 = arith.constant 0 : index
    %c0_70 = arith.constant 0 : index
    %156 = vector.load %arg3[%c1_68, %c0_69, %c0_70] : memref<2x1x32xf32, #tpu.memory_space<vmem>>, vector<1x1x32xf32>
    %157 = vector.shape_cast %156 : vector<1x1x32xf32> to vector<1x32xf32>
    %c1_71 = arith.constant 1 : index
    %c0_72 = arith.constant 0 : index
    %c0_73 = arith.constant 0 : index
    %158 = vector.load %arg4[%c1_71, %c0_72, %c0_73] : memref<2x32x96xbf16, #tpu.memory_space<vmem>>, vector<1x32x96xbf16>
    %159 = vector.shape_cast %158 : vector<1x32x96xbf16> to vector<32x96xbf16>
    %c1_74 = arith.constant 1 : index
    %c0_75 = arith.constant 0 : index
    %c0_76 = arith.constant 0 : index
    %160 = vector.load %arg5[%c1_74, %c0_75, %c0_76] : memref<2x1x96xf32, #tpu.memory_space<vmem>>, vector<1x1x96xf32>
    %161 = vector.shape_cast %160 : vector<1x1x96xf32> to vector<1x96xf32>
    %c1_77 = arith.constant 1 : index
    %c0_78 = arith.constant 0 : index
    %c0_79 = arith.constant 0 : index
    %c0_80 = arith.constant 0 : index
    %162 = vector.load %arg6[%c1_77, %c0_78, %c0_79, %c0_80] : memref<2x2x16x32xbf16, #tpu.memory_space<vmem>>, vector<1x2x16x32xbf16>
    %163 = vector.shape_cast %162 : vector<1x2x16x32xbf16> to vector<2x16x32xbf16>
    %c1_81 = arith.constant 1 : index
    %c0_82 = arith.constant 0 : index
    %c0_83 = arith.constant 0 : index
    %164 = vector.load %arg7[%c1_81, %c0_82, %c0_83] : memref<2x1x32xf32, #tpu.memory_space<vmem>>, vector<1x1x32xf32>
    %165 = vector.shape_cast %164 : vector<1x1x32xf32> to vector<1x32xf32>
    %c1_84 = arith.constant 1 : index
    %c0_85 = arith.constant 0 : index
    %c0_86 = arith.constant 0 : index
    %166 = vector.load %arg8[%c1_84, %c0_85, %c0_86] : memref<2x1x32xf32, #tpu.memory_space<vmem>>, vector<1x1x32xf32>
    %167 = vector.shape_cast %166 : vector<1x1x32xf32> to vector<1x32xf32>
    %c1_87 = arith.constant 1 : index
    %c0_88 = arith.constant 0 : index
    %c0_89 = arith.constant 0 : index
    %168 = vector.load %arg9[%c1_87, %c0_88, %c0_89] : memref<2x1x32xf32, #tpu.memory_space<vmem>>, vector<1x1x32xf32>
    %169 = vector.shape_cast %168 : vector<1x1x32xf32> to vector<1x32xf32>
    %c1_90 = arith.constant 1 : index
    %c0_91 = arith.constant 0 : index
    %c0_92 = arith.constant 0 : index
    %170 = vector.load %arg10[%c1_90, %c0_91, %c0_92] : memref<2x32x128xbf16, #tpu.memory_space<vmem>>, vector<1x32x128xbf16>
    %171 = vector.shape_cast %170 : vector<1x32x128xbf16> to vector<32x128xbf16>
    %c1_93 = arith.constant 1 : index
    %c0_94 = arith.constant 0 : index
    %c0_95 = arith.constant 0 : index
    %172 = vector.load %arg11[%c1_93, %c0_94, %c0_95] : memref<2x1x128xf32, #tpu.memory_space<vmem>>, vector<1x1x128xf32>
    %173 = vector.shape_cast %172 : vector<1x1x128xf32> to vector<1x128xf32>
    %c1_96 = arith.constant 1 : index
    %c0_97 = arith.constant 0 : index
    %c0_98 = arith.constant 0 : index
    %174 = vector.load %arg12[%c1_96, %c0_97, %c0_98] : memref<2x128x32xbf16, #tpu.memory_space<vmem>>, vector<1x128x32xbf16>
    %175 = vector.shape_cast %174 : vector<1x128x32xbf16> to vector<128x32xbf16>
    %c1_99 = arith.constant 1 : index
    %c0_100 = arith.constant 0 : index
    %c0_101 = arith.constant 0 : index
    %176 = vector.load %arg13[%c1_99, %c0_100, %c0_101] : memref<2x1x32xf32, #tpu.memory_space<vmem>>, vector<1x1x32xf32>
    %177 = vector.shape_cast %176 : vector<1x1x32xf32> to vector<1x32xf32>
    %cst_102 = arith.constant dense<0.000000e+00> : vector<16xf32>
    %178 = vector.multi_reduction <add>, %153, %cst_102 [1] : vector<16x32xf32> to vector<16xf32>
    %179 = vector.shape_cast %178 : vector<16xf32> to vector<16x1xf32>
    %cst_103 = arith.constant 3.200000e+01 : f32
    %180 = vector.broadcast %cst_103 : f32 to vector<16x1xf32>
    %181 = arith.divf %179, %180 : vector<16x1xf32>
    %182 = vector.broadcast %181 : vector<16x1xf32> to vector<16x32xf32>
    %183 = arith.subf %153, %182 : vector<16x32xf32>
    %184 = arith.mulf %183, %183 : vector<16x32xf32>
    %cst_104 = arith.constant dense<0.000000e+00> : vector<16xf32>
    %185 = vector.multi_reduction <add>, %184, %cst_104 [1] : vector<16x32xf32> to vector<16xf32>
    %186 = vector.shape_cast %185 : vector<16xf32> to vector<16x1xf32>
    %cst_105 = arith.constant 3.200000e+01 : f32
    %187 = vector.broadcast %cst_105 : f32 to vector<16x1xf32>
    %188 = arith.divf %186, %187 : vector<16x1xf32>
    %189 = vector.broadcast %181 : vector<16x1xf32> to vector<16x32xf32>
    %190 = arith.subf %153, %189 : vector<16x32xf32>
    %cst_106 = arith.constant 9.99999974E-6 : f32
    %191 = vector.broadcast %cst_106 : f32 to vector<16x1xf32>
    %192 = arith.addf %188, %191 : vector<16x1xf32>
    %193 = math.rsqrt %192 : vector<16x1xf32>
    %194 = vector.broadcast %193 : vector<16x1xf32> to vector<16x32xf32>
    %195 = arith.mulf %190, %194 : vector<16x32xf32>
    %196 = vector.broadcast %155 : vector<1x32xf32> to vector<16x32xf32>
    %197 = arith.mulf %195, %196 : vector<16x32xf32>
    %198 = vector.broadcast %157 : vector<1x32xf32> to vector<16x32xf32>
    %199 = arith.addf %197, %198 : vector<16x32xf32>
    %200 = arith.truncf %199 : vector<16x32xf32> to vector<16x32xbf16>
    %cst_107 = arith.constant dense<0.000000e+00> : vector<16x96xf32>
    %201 = tpu.matmul %200, %159, %cst_107 {dimension_numbers = #tpu.dot_dimension_numbers<[1], [0], [0], [1], [0, 0, 1, 1], [], []>} : vector<16x32xbf16>, vector<32x96xbf16>, vector<16x96xf32> -> vector<16x96xf32>
    %202 = vector.broadcast %161 : vector<1x96xf32> to vector<16x96xf32>
    %203 = arith.addf %201, %202 : vector<16x96xf32>
    %204 = vector.extract_strided_slice %203 {offsets = [0, 0], sizes = [16, 32], strides = [1, 1]} : vector<16x96xf32> to vector<16x32xf32>
    %cst_108 = arith.constant 2.500000e-01 : f32
    %205 = vector.broadcast %cst_108 : f32 to vector<16x32xf32>
    %206 = arith.mulf %204, %205 : vector<16x32xf32>
    %207 = vector.shape_cast %206 : vector<16x32xf32> to vector<2x8x32xf32>
    %208 = vector.extract_strided_slice %203 {offsets = [0, 32], sizes = [16, 32], strides = [1, 1]} : vector<16x96xf32> to vector<16x32xf32>
    %209 = vector.shape_cast %208 : vector<16x32xf32> to vector<2x8x32xf32>
    %210 = vector.extract_strided_slice %203 {offsets = [0, 64], sizes = [16, 32], strides = [1, 1]} : vector<16x96xf32> to vector<16x32xf32>
    %211 = vector.shape_cast %210 : vector<16x32xf32> to vector<2x8x32xf32>
    %212 = vector.extract_strided_slice %207 {offsets = [0, 0, 0], sizes = [2, 8, 16], strides = [1, 1, 1]} : vector<2x8x32xf32> to vector<2x8x16xf32>
    %213 = vector.extract_strided_slice %209 {offsets = [0, 0, 0], sizes = [2, 8, 16], strides = [1, 1, 1]} : vector<2x8x32xf32> to vector<2x8x16xf32>
    "tpu.trace_start"() <{level = 10 : i32, message = "bqd,bkd->bqk"}> : () -> ()
    %cst_109 = arith.constant dense<0.000000e+00> : vector<2x8x8xf32>
    %214 = tpu.matmul %212, %213, %cst_109 {dimension_numbers = #tpu.dot_dimension_numbers<[2], [2], [1], [1], [0, 0, 0, 1, 1, 1], [0], [0]>} : vector<2x8x16xf32>, vector<2x8x16xf32>, vector<2x8x8xf32> -> vector<2x8x8xf32>
    "tpu.trace_stop"() : () -> ()
    %215 = arith.addf %214, %8 : vector<2x8x8xf32>
    %cst_110 = arith.constant dense<0xFF800000> : vector<2x8xf32>
    %216 = vector.multi_reduction <maximumf>, %215, %cst_110 [2] : vector<2x8x8xf32> to vector<2x8xf32>
    %217 = vector.shape_cast %216 : vector<2x8xf32> to vector<2x8x1xf32>
    %218 = vector.broadcast %217 : vector<2x8x1xf32> to vector<2x8x8xf32>
    %219 = arith.subf %215, %218 : vector<2x8x8xf32>
    %220 = math.exp %219 : vector<2x8x8xf32>
    %cst_111 = arith.constant dense<0.000000e+00> : vector<2x8xf32>
    %221 = vector.multi_reduction <add>, %220, %cst_111 [2] : vector<2x8x8xf32> to vector<2x8xf32>
    %222 = vector.shape_cast %221 : vector<2x8xf32> to vector<2x8x1xf32>
    %223 = tpu.reciprocal %222 {approx = true} : vector<2x8x1xf32> -> vector<2x8x1xf32>
    %224 = vector.broadcast %223 : vector<2x8x1xf32> to vector<2x8x8xf32>
    %225 = arith.mulf %220, %224 : vector<2x8x8xf32>
    %226 = vector.extract_strided_slice %211 {offsets = [0, 0, 0], sizes = [2, 8, 16], strides = [1, 1, 1]} : vector<2x8x32xf32> to vector<2x8x16xf32>
    "tpu.trace_start"() <{level = 10 : i32, message = "bqk,bkd->bqd"}> : () -> ()
    %cst_112 = arith.constant dense<0.000000e+00> : vector<2x8x16xf32>
    %227 = tpu.matmul %225, %226, %cst_112 {dimension_numbers = #tpu.dot_dimension_numbers<[2], [1], [1], [2], [0, 0, 0, 1, 1, 2], [0], [0]>} : vector<2x8x8xf32>, vector<2x8x16xf32>, vector<2x8x16xf32> -> vector<2x8x16xf32>
    "tpu.trace_stop"() : () -> ()
    %228 = vector.shape_cast %227 : vector<2x8x16xf32> to vector<16x16xf32>
    %229 = arith.truncf %228 : vector<16x16xf32> to vector<16x16xbf16>
    %230 = vector.extract_strided_slice %163 {offsets = [0, 0, 0], sizes = [1, 16, 32], strides = [1, 1, 1]} : vector<2x16x32xbf16> to vector<1x16x32xbf16>
    %231 = vector.shape_cast %230 : vector<1x16x32xbf16> to vector<16x32xbf16>
    %cst_113 = arith.constant dense<0.000000e+00> : vector<16x32xf32>
    %232 = tpu.matmul %229, %231, %cst_113 {dimension_numbers = #tpu.dot_dimension_numbers<[1], [0], [0], [1], [0, 0, 1, 1], [], []>} : vector<16x16xbf16>, vector<16x32xbf16>, vector<16x32xf32> -> vector<16x32xf32>
    %233 = vector.extract_strided_slice %207 {offsets = [0, 0, 16], sizes = [2, 8, 16], strides = [1, 1, 1]} : vector<2x8x32xf32> to vector<2x8x16xf32>
    %234 = vector.extract_strided_slice %209 {offsets = [0, 0, 16], sizes = [2, 8, 16], strides = [1, 1, 1]} : vector<2x8x32xf32> to vector<2x8x16xf32>
    "tpu.trace_start"() <{level = 10 : i32, message = "bqd,bkd->bqk"}> : () -> ()
    %cst_114 = arith.constant dense<0.000000e+00> : vector<2x8x8xf32>
    %235 = tpu.matmul %233, %234, %cst_114 {dimension_numbers = #tpu.dot_dimension_numbers<[2], [2], [1], [1], [0, 0, 0, 1, 1, 1], [0], [0]>} : vector<2x8x16xf32>, vector<2x8x16xf32>, vector<2x8x8xf32> -> vector<2x8x8xf32>
    "tpu.trace_stop"() : () -> ()
    %236 = arith.addf %235, %8 : vector<2x8x8xf32>
    %cst_115 = arith.constant dense<0xFF800000> : vector<2x8xf32>
    %237 = vector.multi_reduction <maximumf>, %236, %cst_115 [2] : vector<2x8x8xf32> to vector<2x8xf32>
    %238 = vector.shape_cast %237 : vector<2x8xf32> to vector<2x8x1xf32>
    %239 = vector.broadcast %238 : vector<2x8x1xf32> to vector<2x8x8xf32>
    %240 = arith.subf %236, %239 : vector<2x8x8xf32>
    %241 = math.exp %240 : vector<2x8x8xf32>
    %cst_116 = arith.constant dense<0.000000e+00> : vector<2x8xf32>
    %242 = vector.multi_reduction <add>, %241, %cst_116 [2] : vector<2x8x8xf32> to vector<2x8xf32>
    %243 = vector.shape_cast %242 : vector<2x8xf32> to vector<2x8x1xf32>
    %244 = tpu.reciprocal %243 {approx = true} : vector<2x8x1xf32> -> vector<2x8x1xf32>
    %245 = vector.broadcast %244 : vector<2x8x1xf32> to vector<2x8x8xf32>
    %246 = arith.mulf %241, %245 : vector<2x8x8xf32>
    %247 = vector.extract_strided_slice %211 {offsets = [0, 0, 16], sizes = [2, 8, 16], strides = [1, 1, 1]} : vector<2x8x32xf32> to vector<2x8x16xf32>
    "tpu.trace_start"() <{level = 10 : i32, message = "bqk,bkd->bqd"}> : () -> ()
    %cst_117 = arith.constant dense<0.000000e+00> : vector<2x8x16xf32>
    %248 = tpu.matmul %246, %247, %cst_117 {dimension_numbers = #tpu.dot_dimension_numbers<[2], [1], [1], [2], [0, 0, 0, 1, 1, 2], [0], [0]>} : vector<2x8x8xf32>, vector<2x8x16xf32>, vector<2x8x16xf32> -> vector<2x8x16xf32>
    "tpu.trace_stop"() : () -> ()
    %249 = vector.shape_cast %248 : vector<2x8x16xf32> to vector<16x16xf32>
    %250 = arith.truncf %249 : vector<16x16xf32> to vector<16x16xbf16>
    %251 = vector.extract_strided_slice %163 {offsets = [1, 0, 0], sizes = [1, 16, 32], strides = [1, 1, 1]} : vector<2x16x32xbf16> to vector<1x16x32xbf16>
    %252 = vector.shape_cast %251 : vector<1x16x32xbf16> to vector<16x32xbf16>
    %cst_118 = arith.constant dense<0.000000e+00> : vector<16x32xf32>
    %253 = tpu.matmul %250, %252, %cst_118 {dimension_numbers = #tpu.dot_dimension_numbers<[1], [0], [0], [1], [0, 0, 1, 1], [], []>} : vector<16x16xbf16>, vector<16x32xbf16>, vector<16x32xf32> -> vector<16x32xf32>
    %254 = arith.addf %232, %253 : vector<16x32xf32>
    %255 = arith.addf %153, %254 : vector<16x32xf32>
    %256 = vector.broadcast %165 : vector<1x32xf32> to vector<16x32xf32>
    %257 = arith.addf %255, %256 : vector<16x32xf32>
    %cst_119 = arith.constant dense<0.000000e+00> : vector<16xf32>
    %258 = vector.multi_reduction <add>, %257, %cst_119 [1] : vector<16x32xf32> to vector<16xf32>
    %259 = vector.shape_cast %258 : vector<16xf32> to vector<16x1xf32>
    %cst_120 = arith.constant 3.200000e+01 : f32
    %260 = vector.broadcast %cst_120 : f32 to vector<16x1xf32>
    %261 = arith.divf %259, %260 : vector<16x1xf32>
    %262 = vector.broadcast %261 : vector<16x1xf32> to vector<16x32xf32>
    %263 = arith.subf %257, %262 : vector<16x32xf32>
    %264 = arith.mulf %263, %263 : vector<16x32xf32>
    %cst_121 = arith.constant dense<0.000000e+00> : vector<16xf32>
    %265 = vector.multi_reduction <add>, %264, %cst_121 [1] : vector<16x32xf32> to vector<16xf32>
    %266 = vector.shape_cast %265 : vector<16xf32> to vector<16x1xf32>
    %cst_122 = arith.constant 3.200000e+01 : f32
    %267 = vector.broadcast %cst_122 : f32 to vector<16x1xf32>
    %268 = arith.divf %266, %267 : vector<16x1xf32>
    %269 = vector.broadcast %261 : vector<16x1xf32> to vector<16x32xf32>
    %270 = arith.subf %257, %269 : vector<16x32xf32>
    %cst_123 = arith.constant 9.99999974E-6 : f32
    %271 = vector.broadcast %cst_123 : f32 to vector<16x1xf32>
    %272 = arith.addf %268, %271 : vector<16x1xf32>
    %273 = math.rsqrt %272 : vector<16x1xf32>
    %274 = vector.broadcast %273 : vector<16x1xf32> to vector<16x32xf32>
    %275 = arith.mulf %270, %274 : vector<16x32xf32>
    %276 = vector.broadcast %167 : vector<1x32xf32> to vector<16x32xf32>
    %277 = arith.mulf %275, %276 : vector<16x32xf32>
    %278 = vector.broadcast %169 : vector<1x32xf32> to vector<16x32xf32>
    %279 = arith.addf %277, %278 : vector<16x32xf32>
    %280 = arith.truncf %279 : vector<16x32xf32> to vector<16x32xbf16>
    %cst_124 = arith.constant dense<0.000000e+00> : vector<16x128xf32>
    %281 = tpu.matmul %280, %171, %cst_124 {dimension_numbers = #tpu.dot_dimension_numbers<[1], [0], [0], [1], [0, 0, 1, 1], [], []>} : vector<16x32xbf16>, vector<32x128xbf16>, vector<16x128xf32> -> vector<16x128xf32>
    %282 = vector.broadcast %173 : vector<1x128xf32> to vector<16x128xf32>
    %283 = arith.addf %281, %282 : vector<16x128xf32>
    %cst_125 = arith.constant 1.702000e+00 : f32
    %284 = vector.broadcast %cst_125 : f32 to vector<16x128xf32>
    %285 = arith.mulf %284, %283 : vector<16x128xf32>
    %286 = arith.negf %285 : vector<16x128xf32>
    %287 = math.exp %286 : vector<16x128xf32>
    %cst_126 = arith.constant 1.000000e+00 : f32
    %288 = vector.broadcast %cst_126 : f32 to vector<16x128xf32>
    %289 = arith.addf %288, %287 : vector<16x128xf32>
    %290 = arith.divf %288, %289 : vector<16x128xf32>
    %291 = arith.mulf %283, %290 : vector<16x128xf32>
    %292 = arith.truncf %291 : vector<16x128xf32> to vector<16x128xbf16>
    %cst_127 = arith.constant dense<0.000000e+00> : vector<16x32xf32>
    %293 = tpu.matmul %292, %175, %cst_127 {dimension_numbers = #tpu.dot_dimension_numbers<[1], [0], [0], [1], [0, 0, 1, 1], [], []>} : vector<16x128xbf16>, vector<128x32xbf16>, vector<16x32xf32> -> vector<16x32xf32>
    %294 = vector.broadcast %177 : vector<1x32xf32> to vector<16x32xf32>
    %295 = arith.addf %293, %294 : vector<16x32xf32>
    %296 = arith.addf %257, %295 : vector<16x32xf32>
    %c0_128 = arith.constant 0 : index
    %c0_129 = arith.constant 0 : index
    %c0_130 = arith.constant 0 : index
    %297 = vector.load %arg1[%c0_128, %c0_129, %c0_130] : memref<2x8x64xf32, #tpu.memory_space<vmem>>, vector<2x8x64xf32>
    %298 = vector.shape_cast %297 : vector<2x8x64xf32> to vector<16x64xf32>
    %c0_131 = arith.constant 0 : index
    %c0_132 = arith.constant 0 : index
    %c0_133 = arith.constant 0 : index
    %299 = vector.load %arg14[%c0_131, %c0_132, %c0_133] : memref<2x1x64xf32, #tpu.memory_space<vmem>>, vector<1x1x64xf32>
    %300 = vector.shape_cast %299 : vector<1x1x64xf32> to vector<1x64xf32>
    %c0_134 = arith.constant 0 : index
    %c0_135 = arith.constant 0 : index
    %c0_136 = arith.constant 0 : index
    %301 = vector.load %arg15[%c0_134, %c0_135, %c0_136] : memref<2x1x64xf32, #tpu.memory_space<vmem>>, vector<1x1x64xf32>
    %302 = vector.shape_cast %301 : vector<1x1x64xf32> to vector<1x64xf32>
    %c0_137 = arith.constant 0 : index
    %c0_138 = arith.constant 0 : index
    %c0_139 = arith.constant 0 : index
    %303 = vector.load %arg16[%c0_137, %c0_138, %c0_139] : memref<2x64x192xbf16, #tpu.memory_space<vmem>>, vector<1x64x192xbf16>
    %304 = vector.shape_cast %303 : vector<1x64x192xbf16> to vector<64x192xbf16>
    %c0_140 = arith.constant 0 : index
    %c0_141 = arith.constant 0 : index
    %c0_142 = arith.constant 0 : index
    %305 = vector.load %arg17[%c0_140, %c0_141, %c0_142] : memref<2x1x192xf32, #tpu.memory_space<vmem>>, vector<1x1x192xf32>
    %306 = vector.shape_cast %305 : vector<1x1x192xf32> to vector<1x192xf32>
    %c0_143 = arith.constant 0 : index
    %c0_144 = arith.constant 0 : index
    %c0_145 = arith.constant 0 : index
    %c0_146 = arith.constant 0 : index
    %307 = vector.load %arg18[%c0_143, %c0_144, %c0_145, %c0_146] : memref<2x4x16x64xbf16, #tpu.memory_space<vmem>>, vector<1x4x16x64xbf16>
    %308 = vector.shape_cast %307 : vector<1x4x16x64xbf16> to vector<4x16x64xbf16>
    %c0_147 = arith.constant 0 : index
    %c0_148 = arith.constant 0 : index
    %c0_149 = arith.constant 0 : index
    %309 = vector.load %arg19[%c0_147, %c0_148, %c0_149] : memref<2x1x64xf32, #tpu.memory_space<vmem>>, vector<1x1x64xf32>
    %310 = vector.shape_cast %309 : vector<1x1x64xf32> to vector<1x64xf32>
    %c0_150 = arith.constant 0 : index
    %c0_151 = arith.constant 0 : index
    %c0_152 = arith.constant 0 : index
    %311 = vector.load %arg20[%c0_150, %c0_151, %c0_152] : memref<2x1x64xf32, #tpu.memory_space<vmem>>, vector<1x1x64xf32>
    %312 = vector.shape_cast %311 : vector<1x1x64xf32> to vector<1x64xf32>
    %c0_153 = arith.constant 0 : index
    %c0_154 = arith.constant 0 : index
    %c0_155 = arith.constant 0 : index
    %313 = vector.load %arg21[%c0_153, %c0_154, %c0_155] : memref<2x1x64xf32, #tpu.memory_space<vmem>>, vector<1x1x64xf32>
    %314 = vector.shape_cast %313 : vector<1x1x64xf32> to vector<1x64xf32>
    %c0_156 = arith.constant 0 : index
    %c0_157 = arith.constant 0 : index
    %c0_158 = arith.constant 0 : index
    %315 = vector.load %arg22[%c0_156, %c0_157, %c0_158] : memref<2x64x256xbf16, #tpu.memory_space<vmem>>, vector<1x64x256xbf16>
    %316 = vector.shape_cast %315 : vector<1x64x256xbf16> to vector<64x256xbf16>
    %c0_159 = arith.constant 0 : index
    %c0_160 = arith.constant 0 : index
    %c0_161 = arith.constant 0 : index
    %317 = vector.load %arg23[%c0_159, %c0_160, %c0_161] : memref<2x1x256xf32, #tpu.memory_space<vmem>>, vector<1x1x256xf32>
    %318 = vector.shape_cast %317 : vector<1x1x256xf32> to vector<1x256xf32>
    %c0_162 = arith.constant 0 : index
    %c0_163 = arith.constant 0 : index
    %c0_164 = arith.constant 0 : index
    %319 = vector.load %arg24[%c0_162, %c0_163, %c0_164] : memref<2x256x64xbf16, #tpu.memory_space<vmem>>, vector<1x256x64xbf16>
    %320 = vector.shape_cast %319 : vector<1x256x64xbf16> to vector<256x64xbf16>
    %c0_165 = arith.constant 0 : index
    %c0_166 = arith.constant 0 : index
    %c0_167 = arith.constant 0 : index
    %321 = vector.load %arg25[%c0_165, %c0_166, %c0_167] : memref<2x1x64xf32, #tpu.memory_space<vmem>>, vector<1x1x64xf32>
    %322 = vector.shape_cast %321 : vector<1x1x64xf32> to vector<1x64xf32>
    %cst_168 = arith.constant dense<0.000000e+00> : vector<16xf32>
    %323 = vector.multi_reduction <add>, %298, %cst_168 [1] : vector<16x64xf32> to vector<16xf32>
    %324 = vector.shape_cast %323 : vector<16xf32> to vector<16x1xf32>
    %cst_169 = arith.constant 6.400000e+01 : f32
    %325 = vector.broadcast %cst_169 : f32 to vector<16x1xf32>
    %326 = arith.divf %324, %325 : vector<16x1xf32>
    %327 = vector.broadcast %326 : vector<16x1xf32> to vector<16x64xf32>
    %328 = arith.subf %298, %327 : vector<16x64xf32>
    %329 = arith.mulf %328, %328 : vector<16x64xf32>
    %cst_170 = arith.constant dense<0.000000e+00> : vector<16xf32>
    %330 = vector.multi_reduction <add>, %329, %cst_170 [1] : vector<16x64xf32> to vector<16xf32>
    %331 = vector.shape_cast %330 : vector<16xf32> to vector<16x1xf32>
    %cst_171 = arith.constant 6.400000e+01 : f32
    %332 = vector.broadcast %cst_171 : f32 to vector<16x1xf32>
    %333 = arith.divf %331, %332 : vector<16x1xf32>
    %334 = vector.broadcast %326 : vector<16x1xf32> to vector<16x64xf32>
    %335 = arith.subf %298, %334 : vector<16x64xf32>
    %cst_172 = arith.constant 9.99999974E-6 : f32
    %336 = vector.broadcast %cst_172 : f32 to vector<16x1xf32>
    %337 = arith.addf %333, %336 : vector<16x1xf32>
    %338 = math.rsqrt %337 : vector<16x1xf32>
    %339 = vector.broadcast %338 : vector<16x1xf32> to vector<16x64xf32>
    %340 = arith.mulf %335, %339 : vector<16x64xf32>
    %341 = vector.broadcast %300 : vector<1x64xf32> to vector<16x64xf32>
    %342 = arith.mulf %340, %341 : vector<16x64xf32>
    %343 = vector.broadcast %302 : vector<1x64xf32> to vector<16x64xf32>
    %344 = arith.addf %342, %343 : vector<16x64xf32>
    %345 = arith.truncf %344 : vector<16x64xf32> to vector<16x64xbf16>
    %cst_173 = arith.constant dense<0.000000e+00> : vector<16x192xf32>
    %346 = tpu.matmul %345, %304, %cst_173 {dimension_numbers = #tpu.dot_dimension_numbers<[1], [0], [0], [1], [0, 0, 1, 1], [], []>} : vector<16x64xbf16>, vector<64x192xbf16>, vector<16x192xf32> -> vector<16x192xf32>
    %347 = vector.broadcast %306 : vector<1x192xf32> to vector<16x192xf32>
    %348 = arith.addf %346, %347 : vector<16x192xf32>
    %349 = vector.extract_strided_slice %348 {offsets = [0, 0], sizes = [16, 64], strides = [1, 1]} : vector<16x192xf32> to vector<16x64xf32>
    %cst_174 = arith.constant 2.500000e-01 : f32
    %350 = vector.broadcast %cst_174 : f32 to vector<16x64xf32>
    %351 = arith.mulf %349, %350 : vector<16x64xf32>
    %352 = vector.shape_cast %351 : vector<16x64xf32> to vector<2x8x64xf32>
    %353 = vector.extract_strided_slice %348 {offsets = [0, 64], sizes = [16, 64], strides = [1, 1]} : vector<16x192xf32> to vector<16x64xf32>
    %354 = vector.shape_cast %353 : vector<16x64xf32> to vector<2x8x64xf32>
    %355 = vector.extract_strided_slice %348 {offsets = [0, 128], sizes = [16, 64], strides = [1, 1]} : vector<16x192xf32> to vector<16x64xf32>
    %356 = vector.shape_cast %355 : vector<16x64xf32> to vector<2x8x64xf32>
    %357 = vector.extract_strided_slice %352 {offsets = [0, 0, 0], sizes = [2, 8, 16], strides = [1, 1, 1]} : vector<2x8x64xf32> to vector<2x8x16xf32>
    %358 = vector.extract_strided_slice %354 {offsets = [0, 0, 0], sizes = [2, 8, 16], strides = [1, 1, 1]} : vector<2x8x64xf32> to vector<2x8x16xf32>
    "tpu.trace_start"() <{level = 10 : i32, message = "bqd,bkd->bqk"}> : () -> ()
    %cst_175 = arith.constant dense<0.000000e+00> : vector<2x8x8xf32>
    %359 = tpu.matmul %357, %358, %cst_175 {dimension_numbers = #tpu.dot_dimension_numbers<[2], [2], [1], [1], [0, 0, 0, 1, 1, 1], [0], [0]>} : vector<2x8x16xf32>, vector<2x8x16xf32>, vector<2x8x8xf32> -> vector<2x8x8xf32>
    "tpu.trace_stop"() : () -> ()
    %360 = arith.addf %359, %8 : vector<2x8x8xf32>
    %cst_176 = arith.constant dense<0xFF800000> : vector<2x8xf32>
    %361 = vector.multi_reduction <maximumf>, %360, %cst_176 [2] : vector<2x8x8xf32> to vector<2x8xf32>
    %362 = vector.shape_cast %361 : vector<2x8xf32> to vector<2x8x1xf32>
    %363 = vector.broadcast %362 : vector<2x8x1xf32> to vector<2x8x8xf32>
    %364 = arith.subf %360, %363 : vector<2x8x8xf32>
    %365 = math.exp %364 : vector<2x8x8xf32>
    %cst_177 = arith.constant dense<0.000000e+00> : vector<2x8xf32>
    %366 = vector.multi_reduction <add>, %365, %cst_177 [2] : vector<2x8x8xf32> to vector<2x8xf32>
    %367 = vector.shape_cast %366 : vector<2x8xf32> to vector<2x8x1xf32>
    %368 = tpu.reciprocal %367 {approx = true} : vector<2x8x1xf32> -> vector<2x8x1xf32>
    %369 = vector.broadcast %368 : vector<2x8x1xf32> to vector<2x8x8xf32>
    %370 = arith.mulf %365, %369 : vector<2x8x8xf32>
    %371 = vector.extract_strided_slice %356 {offsets = [0, 0, 0], sizes = [2, 8, 16], strides = [1, 1, 1]} : vector<2x8x64xf32> to vector<2x8x16xf32>
    "tpu.trace_start"() <{level = 10 : i32, message = "bqk,bkd->bqd"}> : () -> ()
    %cst_178 = arith.constant dense<0.000000e+00> : vector<2x8x16xf32>
    %372 = tpu.matmul %370, %371, %cst_178 {dimension_numbers = #tpu.dot_dimension_numbers<[2], [1], [1], [2], [0, 0, 0, 1, 1, 2], [0], [0]>} : vector<2x8x8xf32>, vector<2x8x16xf32>, vector<2x8x16xf32> -> vector<2x8x16xf32>
    "tpu.trace_stop"() : () -> ()
    %373 = vector.shape_cast %372 : vector<2x8x16xf32> to vector<16x16xf32>
    %374 = arith.truncf %373 : vector<16x16xf32> to vector<16x16xbf16>
    %375 = vector.extract_strided_slice %308 {offsets = [0, 0, 0], sizes = [1, 16, 64], strides = [1, 1, 1]} : vector<4x16x64xbf16> to vector<1x16x64xbf16>
    %376 = vector.shape_cast %375 : vector<1x16x64xbf16> to vector<16x64xbf16>
    %cst_179 = arith.constant dense<0.000000e+00> : vector<16x64xf32>
    %377 = tpu.matmul %374, %376, %cst_179 {dimension_numbers = #tpu.dot_dimension_numbers<[1], [0], [0], [1], [0, 0, 1, 1], [], []>} : vector<16x16xbf16>, vector<16x64xbf16>, vector<16x64xf32> -> vector<16x64xf32>
    %378 = vector.extract_strided_slice %352 {offsets = [0, 0, 16], sizes = [2, 8, 16], strides = [1, 1, 1]} : vector<2x8x64xf32> to vector<2x8x16xf32>
    %379 = vector.extract_strided_slice %354 {offsets = [0, 0, 16], sizes = [2, 8, 16], strides = [1, 1, 1]} : vector<2x8x64xf32> to vector<2x8x16xf32>
    "tpu.trace_start"() <{level = 10 : i32, message = "bqd,bkd->bqk"}> : () -> ()
    %cst_180 = arith.constant dense<0.000000e+00> : vector<2x8x8xf32>
    %380 = tpu.matmul %378, %379, %cst_180 {dimension_numbers = #tpu.dot_dimension_numbers<[2], [2], [1], [1], [0, 0, 0, 1, 1, 1], [0], [0]>} : vector<2x8x16xf32>, vector<2x8x16xf32>, vector<2x8x8xf32> -> vector<2x8x8xf32>
    "tpu.trace_stop"() : () -> ()
    %381 = arith.addf %380, %8 : vector<2x8x8xf32>
    %cst_181 = arith.constant dense<0xFF800000> : vector<2x8xf32>
    %382 = vector.multi_reduction <maximumf>, %381, %cst_181 [2] : vector<2x8x8xf32> to vector<2x8xf32>
    %383 = vector.shape_cast %382 : vector<2x8xf32> to vector<2x8x1xf32>
    %384 = vector.broadcast %383 : vector<2x8x1xf32> to vector<2x8x8xf32>
    %385 = arith.subf %381, %384 : vector<2x8x8xf32>
    %386 = math.exp %385 : vector<2x8x8xf32>
    %cst_182 = arith.constant dense<0.000000e+00> : vector<2x8xf32>
    %387 = vector.multi_reduction <add>, %386, %cst_182 [2] : vector<2x8x8xf32> to vector<2x8xf32>
    %388 = vector.shape_cast %387 : vector<2x8xf32> to vector<2x8x1xf32>
    %389 = tpu.reciprocal %388 {approx = true} : vector<2x8x1xf32> -> vector<2x8x1xf32>
    %390 = vector.broadcast %389 : vector<2x8x1xf32> to vector<2x8x8xf32>
    %391 = arith.mulf %386, %390 : vector<2x8x8xf32>
    %392 = vector.extract_strided_slice %356 {offsets = [0, 0, 16], sizes = [2, 8, 16], strides = [1, 1, 1]} : vector<2x8x64xf32> to vector<2x8x16xf32>
    "tpu.trace_start"() <{level = 10 : i32, message = "bqk,bkd->bqd"}> : () -> ()
    %cst_183 = arith.constant dense<0.000000e+00> : vector<2x8x16xf32>
    %393 = tpu.matmul %391, %392, %cst_183 {dimension_numbers = #tpu.dot_dimension_numbers<[2], [1], [1], [2], [0, 0, 0, 1, 1, 2], [0], [0]>} : vector<2x8x8xf32>, vector<2x8x16xf32>, vector<2x8x16xf32> -> vector<2x8x16xf32>
    "tpu.trace_stop"() : () -> ()
    %394 = vector.shape_cast %393 : vector<2x8x16xf32> to vector<16x16xf32>
    %395 = arith.truncf %394 : vector<16x16xf32> to vector<16x16xbf16>
    %396 = vector.extract_strided_slice %308 {offsets = [1, 0, 0], sizes = [1, 16, 64], strides = [1, 1, 1]} : vector<4x16x64xbf16> to vector<1x16x64xbf16>
    %397 = vector.shape_cast %396 : vector<1x16x64xbf16> to vector<16x64xbf16>
    %cst_184 = arith.constant dense<0.000000e+00> : vector<16x64xf32>
    %398 = tpu.matmul %395, %397, %cst_184 {dimension_numbers = #tpu.dot_dimension_numbers<[1], [0], [0], [1], [0, 0, 1, 1], [], []>} : vector<16x16xbf16>, vector<16x64xbf16>, vector<16x64xf32> -> vector<16x64xf32>
    %399 = arith.addf %377, %398 : vector<16x64xf32>
    %400 = vector.extract_strided_slice %352 {offsets = [0, 0, 32], sizes = [2, 8, 16], strides = [1, 1, 1]} : vector<2x8x64xf32> to vector<2x8x16xf32>
    %401 = vector.extract_strided_slice %354 {offsets = [0, 0, 32], sizes = [2, 8, 16], strides = [1, 1, 1]} : vector<2x8x64xf32> to vector<2x8x16xf32>
    "tpu.trace_start"() <{level = 10 : i32, message = "bqd,bkd->bqk"}> : () -> ()
    %cst_185 = arith.constant dense<0.000000e+00> : vector<2x8x8xf32>
    %402 = tpu.matmul %400, %401, %cst_185 {dimension_numbers = #tpu.dot_dimension_numbers<[2], [2], [1], [1], [0, 0, 0, 1, 1, 1], [0], [0]>} : vector<2x8x16xf32>, vector<2x8x16xf32>, vector<2x8x8xf32> -> vector<2x8x8xf32>
    "tpu.trace_stop"() : () -> ()
    %403 = arith.addf %402, %8 : vector<2x8x8xf32>
    %cst_186 = arith.constant dense<0xFF800000> : vector<2x8xf32>
    %404 = vector.multi_reduction <maximumf>, %403, %cst_186 [2] : vector<2x8x8xf32> to vector<2x8xf32>
    %405 = vector.shape_cast %404 : vector<2x8xf32> to vector<2x8x1xf32>
    %406 = vector.broadcast %405 : vector<2x8x1xf32> to vector<2x8x8xf32>
    %407 = arith.subf %403, %406 : vector<2x8x8xf32>
    %408 = math.exp %407 : vector<2x8x8xf32>
    %cst_187 = arith.constant dense<0.000000e+00> : vector<2x8xf32>
    %409 = vector.multi_reduction <add>, %408, %cst_187 [2] : vector<2x8x8xf32> to vector<2x8xf32>
    %410 = vector.shape_cast %409 : vector<2x8xf32> to vector<2x8x1xf32>
    %411 = tpu.reciprocal %410 {approx = true} : vector<2x8x1xf32> -> vector<2x8x1xf32>
    %412 = vector.broadcast %411 : vector<2x8x1xf32> to vector<2x8x8xf32>
    %413 = arith.mulf %408, %412 : vector<2x8x8xf32>
    %414 = vector.extract_strided_slice %356 {offsets = [0, 0, 32], sizes = [2, 8, 16], strides = [1, 1, 1]} : vector<2x8x64xf32> to vector<2x8x16xf32>
    "tpu.trace_start"() <{level = 10 : i32, message = "bqk,bkd->bqd"}> : () -> ()
    %cst_188 = arith.constant dense<0.000000e+00> : vector<2x8x16xf32>
    %415 = tpu.matmul %413, %414, %cst_188 {dimension_numbers = #tpu.dot_dimension_numbers<[2], [1], [1], [2], [0, 0, 0, 1, 1, 2], [0], [0]>} : vector<2x8x8xf32>, vector<2x8x16xf32>, vector<2x8x16xf32> -> vector<2x8x16xf32>
    "tpu.trace_stop"() : () -> ()
    %416 = vector.shape_cast %415 : vector<2x8x16xf32> to vector<16x16xf32>
    %417 = arith.truncf %416 : vector<16x16xf32> to vector<16x16xbf16>
    %418 = vector.extract_strided_slice %308 {offsets = [2, 0, 0], sizes = [1, 16, 64], strides = [1, 1, 1]} : vector<4x16x64xbf16> to vector<1x16x64xbf16>
    %419 = vector.shape_cast %418 : vector<1x16x64xbf16> to vector<16x64xbf16>
    %cst_189 = arith.constant dense<0.000000e+00> : vector<16x64xf32>
    %420 = tpu.matmul %417, %419, %cst_189 {dimension_numbers = #tpu.dot_dimension_numbers<[1], [0], [0], [1], [0, 0, 1, 1], [], []>} : vector<16x16xbf16>, vector<16x64xbf16>, vector<16x64xf32> -> vector<16x64xf32>
    %421 = arith.addf %399, %420 : vector<16x64xf32>
    %422 = vector.extract_strided_slice %352 {offsets = [0, 0, 48], sizes = [2, 8, 16], strides = [1, 1, 1]} : vector<2x8x64xf32> to vector<2x8x16xf32>
    %423 = vector.extract_strided_slice %354 {offsets = [0, 0, 48], sizes = [2, 8, 16], strides = [1, 1, 1]} : vector<2x8x64xf32> to vector<2x8x16xf32>
    "tpu.trace_start"() <{level = 10 : i32, message = "bqd,bkd->bqk"}> : () -> ()
    %cst_190 = arith.constant dense<0.000000e+00> : vector<2x8x8xf32>
    %424 = tpu.matmul %422, %423, %cst_190 {dimension_numbers = #tpu.dot_dimension_numbers<[2], [2], [1], [1], [0, 0, 0, 1, 1, 1], [0], [0]>} : vector<2x8x16xf32>, vector<2x8x16xf32>, vector<2x8x8xf32> -> vector<2x8x8xf32>
    "tpu.trace_stop"() : () -> ()
    %425 = arith.addf %424, %8 : vector<2x8x8xf32>
    %cst_191 = arith.constant dense<0xFF800000> : vector<2x8xf32>
    %426 = vector.multi_reduction <maximumf>, %425, %cst_191 [2] : vector<2x8x8xf32> to vector<2x8xf32>
    %427 = vector.shape_cast %426 : vector<2x8xf32> to vector<2x8x1xf32>
    %428 = vector.broadcast %427 : vector<2x8x1xf32> to vector<2x8x8xf32>
    %429 = arith.subf %425, %428 : vector<2x8x8xf32>
    %430 = math.exp %429 : vector<2x8x8xf32>
    %cst_192 = arith.constant dense<0.000000e+00> : vector<2x8xf32>
    %431 = vector.multi_reduction <add>, %430, %cst_192 [2] : vector<2x8x8xf32> to vector<2x8xf32>
    %432 = vector.shape_cast %431 : vector<2x8xf32> to vector<2x8x1xf32>
    %433 = tpu.reciprocal %432 {approx = true} : vector<2x8x1xf32> -> vector<2x8x1xf32>
    %434 = vector.broadcast %433 : vector<2x8x1xf32> to vector<2x8x8xf32>
    %435 = arith.mulf %430, %434 : vector<2x8x8xf32>
    %436 = vector.extract_strided_slice %356 {offsets = [0, 0, 48], sizes = [2, 8, 16], strides = [1, 1, 1]} : vector<2x8x64xf32> to vector<2x8x16xf32>
    "tpu.trace_start"() <{level = 10 : i32, message = "bqk,bkd->bqd"}> : () -> ()
    %cst_193 = arith.constant dense<0.000000e+00> : vector<2x8x16xf32>
    %437 = tpu.matmul %435, %436, %cst_193 {dimension_numbers = #tpu.dot_dimension_numbers<[2], [1], [1], [2], [0, 0, 0, 1, 1, 2], [0], [0]>} : vector<2x8x8xf32>, vector<2x8x16xf32>, vector<2x8x16xf32> -> vector<2x8x16xf32>
    "tpu.trace_stop"() : () -> ()
    %438 = vector.shape_cast %437 : vector<2x8x16xf32> to vector<16x16xf32>
    %439 = arith.truncf %438 : vector<16x16xf32> to vector<16x16xbf16>
    %440 = vector.extract_strided_slice %308 {offsets = [3, 0, 0], sizes = [1, 16, 64], strides = [1, 1, 1]} : vector<4x16x64xbf16> to vector<1x16x64xbf16>
    %441 = vector.shape_cast %440 : vector<1x16x64xbf16> to vector<16x64xbf16>
    %cst_194 = arith.constant dense<0.000000e+00> : vector<16x64xf32>
    %442 = tpu.matmul %439, %441, %cst_194 {dimension_numbers = #tpu.dot_dimension_numbers<[1], [0], [0], [1], [0, 0, 1, 1], [], []>} : vector<16x16xbf16>, vector<16x64xbf16>, vector<16x64xf32> -> vector<16x64xf32>
    %443 = arith.addf %421, %442 : vector<16x64xf32>
    %444 = arith.addf %298, %443 : vector<16x64xf32>
    %445 = vector.broadcast %310 : vector<1x64xf32> to vector<16x64xf32>
    %446 = arith.addf %444, %445 : vector<16x64xf32>
    %cst_195 = arith.constant dense<0.000000e+00> : vector<16xf32>
    %447 = vector.multi_reduction <add>, %446, %cst_195 [1] : vector<16x64xf32> to vector<16xf32>
    %448 = vector.shape_cast %447 : vector<16xf32> to vector<16x1xf32>
    %cst_196 = arith.constant 6.400000e+01 : f32
    %449 = vector.broadcast %cst_196 : f32 to vector<16x1xf32>
    %450 = arith.divf %448, %449 : vector<16x1xf32>
    %451 = vector.broadcast %450 : vector<16x1xf32> to vector<16x64xf32>
    %452 = arith.subf %446, %451 : vector<16x64xf32>
    %453 = arith.mulf %452, %452 : vector<16x64xf32>
    %cst_197 = arith.constant dense<0.000000e+00> : vector<16xf32>
    %454 = vector.multi_reduction <add>, %453, %cst_197 [1] : vector<16x64xf32> to vector<16xf32>
    %455 = vector.shape_cast %454 : vector<16xf32> to vector<16x1xf32>
    %cst_198 = arith.constant 6.400000e+01 : f32
    %456 = vector.broadcast %cst_198 : f32 to vector<16x1xf32>
    %457 = arith.divf %455, %456 : vector<16x1xf32>
    %458 = vector.broadcast %450 : vector<16x1xf32> to vector<16x64xf32>
    %459 = arith.subf %446, %458 : vector<16x64xf32>
    %cst_199 = arith.constant 9.99999974E-6 : f32
    %460 = vector.broadcast %cst_199 : f32 to vector<16x1xf32>
    %461 = arith.addf %457, %460 : vector<16x1xf32>
    %462 = math.rsqrt %461 : vector<16x1xf32>
    %463 = vector.broadcast %462 : vector<16x1xf32> to vector<16x64xf32>
    %464 = arith.mulf %459, %463 : vector<16x64xf32>
    %465 = vector.broadcast %312 : vector<1x64xf32> to vector<16x64xf32>
    %466 = arith.mulf %464, %465 : vector<16x64xf32>
    %467 = vector.broadcast %314 : vector<1x64xf32> to vector<16x64xf32>
    %468 = arith.addf %466, %467 : vector<16x64xf32>
    %469 = arith.truncf %468 : vector<16x64xf32> to vector<16x64xbf16>
    %cst_200 = arith.constant dense<0.000000e+00> : vector<16x256xf32>
    %470 = tpu.matmul %469, %316, %cst_200 {dimension_numbers = #tpu.dot_dimension_numbers<[1], [0], [0], [1], [0, 0, 1, 1], [], []>} : vector<16x64xbf16>, vector<64x256xbf16>, vector<16x256xf32> -> vector<16x256xf32>
    %471 = vector.broadcast %318 : vector<1x256xf32> to vector<16x256xf32>
    %472 = arith.addf %470, %471 : vector<16x256xf32>
    %cst_201 = arith.constant 1.702000e+00 : f32
    %473 = vector.broadcast %cst_201 : f32 to vector<16x256xf32>
    %474 = arith.mulf %473, %472 : vector<16x256xf32>
    %475 = arith.negf %474 : vector<16x256xf32>
    %476 = math.exp %475 : vector<16x256xf32>
    %cst_202 = arith.constant 1.000000e+00 : f32
    %477 = vector.broadcast %cst_202 : f32 to vector<16x256xf32>
    %478 = arith.addf %477, %476 : vector<16x256xf32>
    %479 = arith.divf %477, %478 : vector<16x256xf32>
    %480 = arith.mulf %472, %479 : vector<16x256xf32>
    %481 = arith.truncf %480 : vector<16x256xf32> to vector<16x256xbf16>
    %cst_203 = arith.constant dense<0.000000e+00> : vector<16x64xf32>
    %482 = tpu.matmul %481, %320, %cst_203 {dimension_numbers = #tpu.dot_dimension_numbers<[1], [0], [0], [1], [0, 0, 1, 1], [], []>} : vector<16x256xbf16>, vector<256x64xbf16>, vector<16x64xf32> -> vector<16x64xf32>
    %483 = vector.broadcast %322 : vector<1x64xf32> to vector<16x64xf32>
    %484 = arith.addf %482, %483 : vector<16x64xf32>
    %485 = arith.addf %446, %484 : vector<16x64xf32>
    %c1_204 = arith.constant 1 : index
    %c0_205 = arith.constant 0 : index
    %c0_206 = arith.constant 0 : index
    %486 = vector.load %arg14[%c1_204, %c0_205, %c0_206] : memref<2x1x64xf32, #tpu.memory_space<vmem>>, vector<1x1x64xf32>
    %487 = vector.shape_cast %486 : vector<1x1x64xf32> to vector<1x64xf32>
    %c1_207 = arith.constant 1 : index
    %c0_208 = arith.constant 0 : index
    %c0_209 = arith.constant 0 : index
    %488 = vector.load %arg15[%c1_207, %c0_208, %c0_209] : memref<2x1x64xf32, #tpu.memory_space<vmem>>, vector<1x1x64xf32>
    %489 = vector.shape_cast %488 : vector<1x1x64xf32> to vector<1x64xf32>
    %c1_210 = arith.constant 1 : index
    %c0_211 = arith.constant 0 : index
    %c0_212 = arith.constant 0 : index
    %490 = vector.load %arg16[%c1_210, %c0_211, %c0_212] : memref<2x64x192xbf16, #tpu.memory_space<vmem>>, vector<1x64x192xbf16>
    %491 = vector.shape_cast %490 : vector<1x64x192xbf16> to vector<64x192xbf16>
    %c1_213 = arith.constant 1 : index
    %c0_214 = arith.constant 0 : index
    %c0_215 = arith.constant 0 : index
    %492 = vector.load %arg17[%c1_213, %c0_214, %c0_215] : memref<2x1x192xf32, #tpu.memory_space<vmem>>, vector<1x1x192xf32>
    %493 = vector.shape_cast %492 : vector<1x1x192xf32> to vector<1x192xf32>
    %c1_216 = arith.constant 1 : index
    %c0_217 = arith.constant 0 : index
    %c0_218 = arith.constant 0 : index
    %c0_219 = arith.constant 0 : index
    %494 = vector.load %arg18[%c1_216, %c0_217, %c0_218, %c0_219] : memref<2x4x16x64xbf16, #tpu.memory_space<vmem>>, vector<1x4x16x64xbf16>
    %495 = vector.shape_cast %494 : vector<1x4x16x64xbf16> to vector<4x16x64xbf16>
    %c1_220 = arith.constant 1 : index
    %c0_221 = arith.constant 0 : index
    %c0_222 = arith.constant 0 : index
    %496 = vector.load %arg19[%c1_220, %c0_221, %c0_222] : memref<2x1x64xf32, #tpu.memory_space<vmem>>, vector<1x1x64xf32>
    %497 = vector.shape_cast %496 : vector<1x1x64xf32> to vector<1x64xf32>
    %c1_223 = arith.constant 1 : index
    %c0_224 = arith.constant 0 : index
    %c0_225 = arith.constant 0 : index
    %498 = vector.load %arg20[%c1_223, %c0_224, %c0_225] : memref<2x1x64xf32, #tpu.memory_space<vmem>>, vector<1x1x64xf32>
    %499 = vector.shape_cast %498 : vector<1x1x64xf32> to vector<1x64xf32>
    %c1_226 = arith.constant 1 : index
    %c0_227 = arith.constant 0 : index
    %c0_228 = arith.constant 0 : index
    %500 = vector.load %arg21[%c1_226, %c0_227, %c0_228] : memref<2x1x64xf32, #tpu.memory_space<vmem>>, vector<1x1x64xf32>
    %501 = vector.shape_cast %500 : vector<1x1x64xf32> to vector<1x64xf32>
    %c1_229 = arith.constant 1 : index
    %c0_230 = arith.constant 0 : index
    %c0_231 = arith.constant 0 : index
    %502 = vector.load %arg22[%c1_229, %c0_230, %c0_231] : memref<2x64x256xbf16, #tpu.memory_space<vmem>>, vector<1x64x256xbf16>
    %503 = vector.shape_cast %502 : vector<1x64x256xbf16> to vector<64x256xbf16>
    %c1_232 = arith.constant 1 : index
    %c0_233 = arith.constant 0 : index
    %c0_234 = arith.constant 0 : index
    %504 = vector.load %arg23[%c1_232, %c0_233, %c0_234] : memref<2x1x256xf32, #tpu.memory_space<vmem>>, vector<1x1x256xf32>
    %505 = vector.shape_cast %504 : vector<1x1x256xf32> to vector<1x256xf32>
    %c1_235 = arith.constant 1 : index
    %c0_236 = arith.constant 0 : index
    %c0_237 = arith.constant 0 : index
    %506 = vector.load %arg24[%c1_235, %c0_236, %c0_237] : memref<2x256x64xbf16, #tpu.memory_space<vmem>>, vector<1x256x64xbf16>
    %507 = vector.shape_cast %506 : vector<1x256x64xbf16> to vector<256x64xbf16>
    %c1_238 = arith.constant 1 : index
    %c0_239 = arith.constant 0 : index
    %c0_240 = arith.constant 0 : index
    %508 = vector.load %arg25[%c1_238, %c0_239, %c0_240] : memref<2x1x64xf32, #tpu.memory_space<vmem>>, vector<1x1x64xf32>
    %509 = vector.shape_cast %508 : vector<1x1x64xf32> to vector<1x64xf32>
    %cst_241 = arith.constant dense<0.000000e+00> : vector<16xf32>
    %510 = vector.multi_reduction <add>, %485, %cst_241 [1] : vector<16x64xf32> to vector<16xf32>
    %511 = vector.shape_cast %510 : vector<16xf32> to vector<16x1xf32>
    %cst_242 = arith.constant 6.400000e+01 : f32
    %512 = vector.broadcast %cst_242 : f32 to vector<16x1xf32>
    %513 = arith.divf %511, %512 : vector<16x1xf32>
    %514 = vector.broadcast %513 : vector<16x1xf32> to vector<16x64xf32>
    %515 = arith.subf %485, %514 : vector<16x64xf32>
    %516 = arith.mulf %515, %515 : vector<16x64xf32>
    %cst_243 = arith.constant dense<0.000000e+00> : vector<16xf32>
    %517 = vector.multi_reduction <add>, %516, %cst_243 [1] : vector<16x64xf32> to vector<16xf32>
    %518 = vector.shape_cast %517 : vector<16xf32> to vector<16x1xf32>
    %cst_244 = arith.constant 6.400000e+01 : f32
    %519 = vector.broadcast %cst_244 : f32 to vector<16x1xf32>
    %520 = arith.divf %518, %519 : vector<16x1xf32>
    %521 = vector.broadcast %513 : vector<16x1xf32> to vector<16x64xf32>
    %522 = arith.subf %485, %521 : vector<16x64xf32>
    %cst_245 = arith.constant 9.99999974E-6 : f32
    %523 = vector.broadcast %cst_245 : f32 to vector<16x1xf32>
    %524 = arith.addf %520, %523 : vector<16x1xf32>
    %525 = math.rsqrt %524 : vector<16x1xf32>
    %526 = vector.broadcast %525 : vector<16x1xf32> to vector<16x64xf32>
    %527 = arith.mulf %522, %526 : vector<16x64xf32>
    %528 = vector.broadcast %487 : vector<1x64xf32> to vector<16x64xf32>
    %529 = arith.mulf %527, %528 : vector<16x64xf32>
    %530 = vector.broadcast %489 : vector<1x64xf32> to vector<16x64xf32>
    %531 = arith.addf %529, %530 : vector<16x64xf32>
    %532 = arith.truncf %531 : vector<16x64xf32> to vector<16x64xbf16>
    %cst_246 = arith.constant dense<0.000000e+00> : vector<16x192xf32>
    %533 = tpu.matmul %532, %491, %cst_246 {dimension_numbers = #tpu.dot_dimension_numbers<[1], [0], [0], [1], [0, 0, 1, 1], [], []>} : vector<16x64xbf16>, vector<64x192xbf16>, vector<16x192xf32> -> vector<16x192xf32>
    %534 = vector.broadcast %493 : vector<1x192xf32> to vector<16x192xf32>
    %535 = arith.addf %533, %534 : vector<16x192xf32>
    %536 = vector.extract_strided_slice %535 {offsets = [0, 0], sizes = [16, 64], strides = [1, 1]} : vector<16x192xf32> to vector<16x64xf32>
    %cst_247 = arith.constant 2.500000e-01 : f32
    %537 = vector.broadcast %cst_247 : f32 to vector<16x64xf32>
    %538 = arith.mulf %536, %537 : vector<16x64xf32>
    %539 = vector.shape_cast %538 : vector<16x64xf32> to vector<2x8x64xf32>
    %540 = vector.extract_strided_slice %535 {offsets = [0, 64], sizes = [16, 64], strides = [1, 1]} : vector<16x192xf32> to vector<16x64xf32>
    %541 = vector.shape_cast %540 : vector<16x64xf32> to vector<2x8x64xf32>
    %542 = vector.extract_strided_slice %535 {offsets = [0, 128], sizes = [16, 64], strides = [1, 1]} : vector<16x192xf32> to vector<16x64xf32>
    %543 = vector.shape_cast %542 : vector<16x64xf32> to vector<2x8x64xf32>
    %544 = vector.extract_strided_slice %539 {offsets = [0, 0, 0], sizes = [2, 8, 16], strides = [1, 1, 1]} : vector<2x8x64xf32> to vector<2x8x16xf32>
    %545 = vector.extract_strided_slice %541 {offsets = [0, 0, 0], sizes = [2, 8, 16], strides = [1, 1, 1]} : vector<2x8x64xf32> to vector<2x8x16xf32>
    "tpu.trace_start"() <{level = 10 : i32, message = "bqd,bkd->bqk"}> : () -> ()
    %cst_248 = arith.constant dense<0.000000e+00> : vector<2x8x8xf32>
    %546 = tpu.matmul %544, %545, %cst_248 {dimension_numbers = #tpu.dot_dimension_numbers<[2], [2], [1], [1], [0, 0, 0, 1, 1, 1], [0], [0]>} : vector<2x8x16xf32>, vector<2x8x16xf32>, vector<2x8x8xf32> -> vector<2x8x8xf32>
    "tpu.trace_stop"() : () -> ()
    %547 = arith.addf %546, %8 : vector<2x8x8xf32>
    %cst_249 = arith.constant dense<0xFF800000> : vector<2x8xf32>
    %548 = vector.multi_reduction <maximumf>, %547, %cst_249 [2] : vector<2x8x8xf32> to vector<2x8xf32>
    %549 = vector.shape_cast %548 : vector<2x8xf32> to vector<2x8x1xf32>
    %550 = vector.broadcast %549 : vector<2x8x1xf32> to vector<2x8x8xf32>
    %551 = arith.subf %547, %550 : vector<2x8x8xf32>
    %552 = math.exp %551 : vector<2x8x8xf32>
    %cst_250 = arith.constant dense<0.000000e+00> : vector<2x8xf32>
    %553 = vector.multi_reduction <add>, %552, %cst_250 [2] : vector<2x8x8xf32> to vector<2x8xf32>
    %554 = vector.shape_cast %553 : vector<2x8xf32> to vector<2x8x1xf32>
    %555 = tpu.reciprocal %554 {approx = true} : vector<2x8x1xf32> -> vector<2x8x1xf32>
    %556 = vector.broadcast %555 : vector<2x8x1xf32> to vector<2x8x8xf32>
    %557 = arith.mulf %552, %556 : vector<2x8x8xf32>
    %558 = vector.extract_strided_slice %543 {offsets = [0, 0, 0], sizes = [2, 8, 16], strides = [1, 1, 1]} : vector<2x8x64xf32> to vector<2x8x16xf32>
    "tpu.trace_start"() <{level = 10 : i32, message = "bqk,bkd->bqd"}> : () -> ()
    %cst_251 = arith.constant dense<0.000000e+00> : vector<2x8x16xf32>
    %559 = tpu.matmul %557, %558, %cst_251 {dimension_numbers = #tpu.dot_dimension_numbers<[2], [1], [1], [2], [0, 0, 0, 1, 1, 2], [0], [0]>} : vector<2x8x8xf32>, vector<2x8x16xf32>, vector<2x8x16xf32> -> vector<2x8x16xf32>
    "tpu.trace_stop"() : () -> ()
    %560 = vector.shape_cast %559 : vector<2x8x16xf32> to vector<16x16xf32>
    %561 = arith.truncf %560 : vector<16x16xf32> to vector<16x16xbf16>
    %562 = vector.extract_strided_slice %495 {offsets = [0, 0, 0], sizes = [1, 16, 64], strides = [1, 1, 1]} : vector<4x16x64xbf16> to vector<1x16x64xbf16>
    %563 = vector.shape_cast %562 : vector<1x16x64xbf16> to vector<16x64xbf16>
    %cst_252 = arith.constant dense<0.000000e+00> : vector<16x64xf32>
    %564 = tpu.matmul %561, %563, %cst_252 {dimension_numbers = #tpu.dot_dimension_numbers<[1], [0], [0], [1], [0, 0, 1, 1], [], []>} : vector<16x16xbf16>, vector<16x64xbf16>, vector<16x64xf32> -> vector<16x64xf32>
    %565 = vector.extract_strided_slice %539 {offsets = [0, 0, 16], sizes = [2, 8, 16], strides = [1, 1, 1]} : vector<2x8x64xf32> to vector<2x8x16xf32>
    %566 = vector.extract_strided_slice %541 {offsets = [0, 0, 16], sizes = [2, 8, 16], strides = [1, 1, 1]} : vector<2x8x64xf32> to vector<2x8x16xf32>
    "tpu.trace_start"() <{level = 10 : i32, message = "bqd,bkd->bqk"}> : () -> ()
    %cst_253 = arith.constant dense<0.000000e+00> : vector<2x8x8xf32>
    %567 = tpu.matmul %565, %566, %cst_253 {dimension_numbers = #tpu.dot_dimension_numbers<[2], [2], [1], [1], [0, 0, 0, 1, 1, 1], [0], [0]>} : vector<2x8x16xf32>, vector<2x8x16xf32>, vector<2x8x8xf32> -> vector<2x8x8xf32>
    "tpu.trace_stop"() : () -> ()
    %568 = arith.addf %567, %8 : vector<2x8x8xf32>
    %cst_254 = arith.constant dense<0xFF800000> : vector<2x8xf32>
    %569 = vector.multi_reduction <maximumf>, %568, %cst_254 [2] : vector<2x8x8xf32> to vector<2x8xf32>
    %570 = vector.shape_cast %569 : vector<2x8xf32> to vector<2x8x1xf32>
    %571 = vector.broadcast %570 : vector<2x8x1xf32> to vector<2x8x8xf32>
    %572 = arith.subf %568, %571 : vector<2x8x8xf32>
    %573 = math.exp %572 : vector<2x8x8xf32>
    %cst_255 = arith.constant dense<0.000000e+00> : vector<2x8xf32>
    %574 = vector.multi_reduction <add>, %573, %cst_255 [2] : vector<2x8x8xf32> to vector<2x8xf32>
    %575 = vector.shape_cast %574 : vector<2x8xf32> to vector<2x8x1xf32>
    %576 = tpu.reciprocal %575 {approx = true} : vector<2x8x1xf32> -> vector<2x8x1xf32>
    %577 = vector.broadcast %576 : vector<2x8x1xf32> to vector<2x8x8xf32>
    %578 = arith.mulf %573, %577 : vector<2x8x8xf32>
    %579 = vector.extract_strided_slice %543 {offsets = [0, 0, 16], sizes = [2, 8, 16], strides = [1, 1, 1]} : vector<2x8x64xf32> to vector<2x8x16xf32>
    "tpu.trace_start"() <{level = 10 : i32, message = "bqk,bkd->bqd"}> : () -> ()
    %cst_256 = arith.constant dense<0.000000e+00> : vector<2x8x16xf32>
    %580 = tpu.matmul %578, %579, %cst_256 {dimension_numbers = #tpu.dot_dimension_numbers<[2], [1], [1], [2], [0, 0, 0, 1, 1, 2], [0], [0]>} : vector<2x8x8xf32>, vector<2x8x16xf32>, vector<2x8x16xf32> -> vector<2x8x16xf32>
    "tpu.trace_stop"() : () -> ()
    %581 = vector.shape_cast %580 : vector<2x8x16xf32> to vector<16x16xf32>
    %582 = arith.truncf %581 : vector<16x16xf32> to vector<16x16xbf16>
    %583 = vector.extract_strided_slice %495 {offsets = [1, 0, 0], sizes = [1, 16, 64], strides = [1, 1, 1]} : vector<4x16x64xbf16> to vector<1x16x64xbf16>
    %584 = vector.shape_cast %583 : vector<1x16x64xbf16> to vector<16x64xbf16>
    %cst_257 = arith.constant dense<0.000000e+00> : vector<16x64xf32>
    %585 = tpu.matmul %582, %584, %cst_257 {dimension_numbers = #tpu.dot_dimension_numbers<[1], [0], [0], [1], [0, 0, 1, 1], [], []>} : vector<16x16xbf16>, vector<16x64xbf16>, vector<16x64xf32> -> vector<16x64xf32>
    %586 = arith.addf %564, %585 : vector<16x64xf32>
    %587 = vector.extract_strided_slice %539 {offsets = [0, 0, 32], sizes = [2, 8, 16], strides = [1, 1, 1]} : vector<2x8x64xf32> to vector<2x8x16xf32>
    %588 = vector.extract_strided_slice %541 {offsets = [0, 0, 32], sizes = [2, 8, 16], strides = [1, 1, 1]} : vector<2x8x64xf32> to vector<2x8x16xf32>
    "tpu.trace_start"() <{level = 10 : i32, message = "bqd,bkd->bqk"}> : () -> ()
    %cst_258 = arith.constant dense<0.000000e+00> : vector<2x8x8xf32>
    %589 = tpu.matmul %587, %588, %cst_258 {dimension_numbers = #tpu.dot_dimension_numbers<[2], [2], [1], [1], [0, 0, 0, 1, 1, 1], [0], [0]>} : vector<2x8x16xf32>, vector<2x8x16xf32>, vector<2x8x8xf32> -> vector<2x8x8xf32>
    "tpu.trace_stop"() : () -> ()
    %590 = arith.addf %589, %8 : vector<2x8x8xf32>
    %cst_259 = arith.constant dense<0xFF800000> : vector<2x8xf32>
    %591 = vector.multi_reduction <maximumf>, %590, %cst_259 [2] : vector<2x8x8xf32> to vector<2x8xf32>
    %592 = vector.shape_cast %591 : vector<2x8xf32> to vector<2x8x1xf32>
    %593 = vector.broadcast %592 : vector<2x8x1xf32> to vector<2x8x8xf32>
    %594 = arith.subf %590, %593 : vector<2x8x8xf32>
    %595 = math.exp %594 : vector<2x8x8xf32>
    %cst_260 = arith.constant dense<0.000000e+00> : vector<2x8xf32>
    %596 = vector.multi_reduction <add>, %595, %cst_260 [2] : vector<2x8x8xf32> to vector<2x8xf32>
    %597 = vector.shape_cast %596 : vector<2x8xf32> to vector<2x8x1xf32>
    %598 = tpu.reciprocal %597 {approx = true} : vector<2x8x1xf32> -> vector<2x8x1xf32>
    %599 = vector.broadcast %598 : vector<2x8x1xf32> to vector<2x8x8xf32>
    %600 = arith.mulf %595, %599 : vector<2x8x8xf32>
    %601 = vector.extract_strided_slice %543 {offsets = [0, 0, 32], sizes = [2, 8, 16], strides = [1, 1, 1]} : vector<2x8x64xf32> to vector<2x8x16xf32>
    "tpu.trace_start"() <{level = 10 : i32, message = "bqk,bkd->bqd"}> : () -> ()
    %cst_261 = arith.constant dense<0.000000e+00> : vector<2x8x16xf32>
    %602 = tpu.matmul %600, %601, %cst_261 {dimension_numbers = #tpu.dot_dimension_numbers<[2], [1], [1], [2], [0, 0, 0, 1, 1, 2], [0], [0]>} : vector<2x8x8xf32>, vector<2x8x16xf32>, vector<2x8x16xf32> -> vector<2x8x16xf32>
    "tpu.trace_stop"() : () -> ()
    %603 = vector.shape_cast %602 : vector<2x8x16xf32> to vector<16x16xf32>
    %604 = arith.truncf %603 : vector<16x16xf32> to vector<16x16xbf16>
    %605 = vector.extract_strided_slice %495 {offsets = [2, 0, 0], sizes = [1, 16, 64], strides = [1, 1, 1]} : vector<4x16x64xbf16> to vector<1x16x64xbf16>
    %606 = vector.shape_cast %605 : vector<1x16x64xbf16> to vector<16x64xbf16>
    %cst_262 = arith.constant dense<0.000000e+00> : vector<16x64xf32>
    %607 = tpu.matmul %604, %606, %cst_262 {dimension_numbers = #tpu.dot_dimension_numbers<[1], [0], [0], [1], [0, 0, 1, 1], [], []>} : vector<16x16xbf16>, vector<16x64xbf16>, vector<16x64xf32> -> vector<16x64xf32>
    %608 = arith.addf %586, %607 : vector<16x64xf32>
    %609 = vector.extract_strided_slice %539 {offsets = [0, 0, 48], sizes = [2, 8, 16], strides = [1, 1, 1]} : vector<2x8x64xf32> to vector<2x8x16xf32>
    %610 = vector.extract_strided_slice %541 {offsets = [0, 0, 48], sizes = [2, 8, 16], strides = [1, 1, 1]} : vector<2x8x64xf32> to vector<2x8x16xf32>
    "tpu.trace_start"() <{level = 10 : i32, message = "bqd,bkd->bqk"}> : () -> ()
    %cst_263 = arith.constant dense<0.000000e+00> : vector<2x8x8xf32>
    %611 = tpu.matmul %609, %610, %cst_263 {dimension_numbers = #tpu.dot_dimension_numbers<[2], [2], [1], [1], [0, 0, 0, 1, 1, 1], [0], [0]>} : vector<2x8x16xf32>, vector<2x8x16xf32>, vector<2x8x8xf32> -> vector<2x8x8xf32>
    "tpu.trace_stop"() : () -> ()
    %612 = arith.addf %611, %8 : vector<2x8x8xf32>
    %cst_264 = arith.constant dense<0xFF800000> : vector<2x8xf32>
    %613 = vector.multi_reduction <maximumf>, %612, %cst_264 [2] : vector<2x8x8xf32> to vector<2x8xf32>
    %614 = vector.shape_cast %613 : vector<2x8xf32> to vector<2x8x1xf32>
    %615 = vector.broadcast %614 : vector<2x8x1xf32> to vector<2x8x8xf32>
    %616 = arith.subf %612, %615 : vector<2x8x8xf32>
    %617 = math.exp %616 : vector<2x8x8xf32>
    %cst_265 = arith.constant dense<0.000000e+00> : vector<2x8xf32>
    %618 = vector.multi_reduction <add>, %617, %cst_265 [2] : vector<2x8x8xf32> to vector<2x8xf32>
    %619 = vector.shape_cast %618 : vector<2x8xf32> to vector<2x8x1xf32>
    %620 = tpu.reciprocal %619 {approx = true} : vector<2x8x1xf32> -> vector<2x8x1xf32>
    %621 = vector.broadcast %620 : vector<2x8x1xf32> to vector<2x8x8xf32>
    %622 = arith.mulf %617, %621 : vector<2x8x8xf32>
    %623 = vector.extract_strided_slice %543 {offsets = [0, 0, 48], sizes = [2, 8, 16], strides = [1, 1, 1]} : vector<2x8x64xf32> to vector<2x8x16xf32>
    "tpu.trace_start"() <{level = 10 : i32, message = "bqk,bkd->bqd"}> : () -> ()
    %cst_266 = arith.constant dense<0.000000e+00> : vector<2x8x16xf32>
    %624 = tpu.matmul %622, %623, %cst_266 {dimension_numbers = #tpu.dot_dimension_numbers<[2], [1], [1], [2], [0, 0, 0, 1, 1, 2], [0], [0]>} : vector<2x8x8xf32>, vector<2x8x16xf32>, vector<2x8x16xf32> -> vector<2x8x16xf32>
    "tpu.trace_stop"() : () -> ()
    %625 = vector.shape_cast %624 : vector<2x8x16xf32> to vector<16x16xf32>
    %626 = arith.truncf %625 : vector<16x16xf32> to vector<16x16xbf16>
    %627 = vector.extract_strided_slice %495 {offsets = [3, 0, 0], sizes = [1, 16, 64], strides = [1, 1, 1]} : vector<4x16x64xbf16> to vector<1x16x64xbf16>
    %628 = vector.shape_cast %627 : vector<1x16x64xbf16> to vector<16x64xbf16>
    %cst_267 = arith.constant dense<0.000000e+00> : vector<16x64xf32>
    %629 = tpu.matmul %626, %628, %cst_267 {dimension_numbers = #tpu.dot_dimension_numbers<[1], [0], [0], [1], [0, 0, 1, 1], [], []>} : vector<16x16xbf16>, vector<16x64xbf16>, vector<16x64xf32> -> vector<16x64xf32>
    %630 = arith.addf %608, %629 : vector<16x64xf32>
    %631 = arith.addf %485, %630 : vector<16x64xf32>
    %632 = vector.broadcast %497 : vector<1x64xf32> to vector<16x64xf32>
    %633 = arith.addf %631, %632 : vector<16x64xf32>
    %cst_268 = arith.constant dense<0.000000e+00> : vector<16xf32>
    %634 = vector.multi_reduction <add>, %633, %cst_268 [1] : vector<16x64xf32> to vector<16xf32>
    %635 = vector.shape_cast %634 : vector<16xf32> to vector<16x1xf32>
    %cst_269 = arith.constant 6.400000e+01 : f32
    %636 = vector.broadcast %cst_269 : f32 to vector<16x1xf32>
    %637 = arith.divf %635, %636 : vector<16x1xf32>
    %638 = vector.broadcast %637 : vector<16x1xf32> to vector<16x64xf32>
    %639 = arith.subf %633, %638 : vector<16x64xf32>
    %640 = arith.mulf %639, %639 : vector<16x64xf32>
    %cst_270 = arith.constant dense<0.000000e+00> : vector<16xf32>
    %641 = vector.multi_reduction <add>, %640, %cst_270 [1] : vector<16x64xf32> to vector<16xf32>
    %642 = vector.shape_cast %641 : vector<16xf32> to vector<16x1xf32>
    %cst_271 = arith.constant 6.400000e+01 : f32
    %643 = vector.broadcast %cst_271 : f32 to vector<16x1xf32>
    %644 = arith.divf %642, %643 : vector<16x1xf32>
    %645 = vector.broadcast %637 : vector<16x1xf32> to vector<16x64xf32>
    %646 = arith.subf %633, %645 : vector<16x64xf32>
    %cst_272 = arith.constant 9.99999974E-6 : f32
    %647 = vector.broadcast %cst_272 : f32 to vector<16x1xf32>
    %648 = arith.addf %644, %647 : vector<16x1xf32>
    %649 = math.rsqrt %648 : vector<16x1xf32>
    %650 = vector.broadcast %649 : vector<16x1xf32> to vector<16x64xf32>
    %651 = arith.mulf %646, %650 : vector<16x64xf32>
    %652 = vector.broadcast %499 : vector<1x64xf32> to vector<16x64xf32>
    %653 = arith.mulf %651, %652 : vector<16x64xf32>
    %654 = vector.broadcast %501 : vector<1x64xf32> to vector<16x64xf32>
    %655 = arith.addf %653, %654 : vector<16x64xf32>
    %656 = arith.truncf %655 : vector<16x64xf32> to vector<16x64xbf16>
    %cst_273 = arith.constant dense<0.000000e+00> : vector<16x256xf32>
    %657 = tpu.matmul %656, %503, %cst_273 {dimension_numbers = #tpu.dot_dimension_numbers<[1], [0], [0], [1], [0, 0, 1, 1], [], []>} : vector<16x64xbf16>, vector<64x256xbf16>, vector<16x256xf32> -> vector<16x256xf32>
    %658 = vector.broadcast %505 : vector<1x256xf32> to vector<16x256xf32>
    %659 = arith.addf %657, %658 : vector<16x256xf32>
    %cst_274 = arith.constant 1.702000e+00 : f32
    %660 = vector.broadcast %cst_274 : f32 to vector<16x256xf32>
    %661 = arith.mulf %660, %659 : vector<16x256xf32>
    %662 = arith.negf %661 : vector<16x256xf32>
    %663 = math.exp %662 : vector<16x256xf32>
    %cst_275 = arith.constant 1.000000e+00 : f32
    %664 = vector.broadcast %cst_275 : f32 to vector<16x256xf32>
    %665 = arith.addf %664, %663 : vector<16x256xf32>
    %666 = arith.divf %664, %665 : vector<16x256xf32>
    %667 = arith.mulf %659, %666 : vector<16x256xf32>
    %668 = arith.truncf %667 : vector<16x256xf32> to vector<16x256xbf16>
    %cst_276 = arith.constant dense<0.000000e+00> : vector<16x64xf32>
    %669 = tpu.matmul %668, %507, %cst_276 {dimension_numbers = #tpu.dot_dimension_numbers<[1], [0], [0], [1], [0, 0, 1, 1], [], []>} : vector<16x256xbf16>, vector<256x64xbf16>, vector<16x64xf32> -> vector<16x64xf32>
    %670 = vector.broadcast %509 : vector<1x64xf32> to vector<16x64xf32>
    %671 = arith.addf %669, %670 : vector<16x64xf32>
    %672 = arith.addf %633, %671 : vector<16x64xf32>
    %673 = vector.shape_cast %296 : vector<16x32xf32> to vector<2x8x32xf32>
    %c0_277 = arith.constant 0 : index
    %c0_278 = arith.constant 0 : index
    %c0_279 = arith.constant 0 : index
    %674 = vector.load %arg31[%c0_277, %c0_278, %c0_279] : memref<2x8x96xf32, #tpu.memory_space<vmem>>, vector<2x8x32xf32>
    tpu.vector_store %arg31[%c0_277, %c0_278, %c0_279], %673 {strides = array<i32>} : memref<2x8x96xf32, #tpu.memory_space<vmem>>, vector<2x8x32xf32>,
    %675 = vector.shape_cast %672 : vector<16x64xf32> to vector<2x8x64xf32>
    %c0_280 = arith.constant 0 : index
    %c0_281 = arith.constant 0 : index
    %c32 = arith.constant 32 : index
    %676 = vector.load %arg31[%c0_280, %c0_281, %c32] : memref<2x8x96xf32, #tpu.memory_space<vmem>>, vector<2x8x64xf32>
    tpu.vector_store %arg31[%c0_280, %c0_281, %c32], %675 {strides = array<i32>} : memref<2x8x96xf32, #tpu.memory_space<vmem>>, vector<2x8x64xf32>,
    %c0_282 = arith.constant 0 : index
    %c0_283 = arith.constant 0 : index
    %677 = vector.load %arg26[%c0_282, %c0_283] : memref<1x64xf32, #tpu.memory_space<vmem>>, vector<1x64xf32>
    %c0_284 = arith.constant 0 : index
    %c0_285 = arith.constant 0 : index
    %678 = vector.load %arg27[%c0_284, %c0_285] : memref<1x64xf32, #tpu.memory_space<vmem>>, vector<1x64xf32>
    %cst_286 = arith.constant dense<0.000000e+00> : vector<16xf32>
    %679 = vector.multi_reduction <add>, %672, %cst_286 [1] : vector<16x64xf32> to vector<16xf32>
    %680 = vector.shape_cast %679 : vector<16xf32> to vector<16x1xf32>
    %cst_287 = arith.constant 6.400000e+01 : f32
    %681 = vector.broadcast %cst_287 : f32 to vector<16x1xf32>
    %682 = arith.divf %680, %681 : vector<16x1xf32>
    %683 = vector.broadcast %682 : vector<16x1xf32> to vector<16x64xf32>
    %684 = arith.subf %672, %683 : vector<16x64xf32>
    %685 = arith.mulf %684, %684 : vector<16x64xf32>
    %cst_288 = arith.constant dense<0.000000e+00> : vector<16xf32>
    %686 = vector.multi_reduction <add>, %685, %cst_288 [1] : vector<16x64xf32> to vector<16xf32>
    %687 = vector.shape_cast %686 : vector<16xf32> to vector<16x1xf32>
    %cst_289 = arith.constant 6.400000e+01 : f32
    %688 = vector.broadcast %cst_289 : f32 to vector<16x1xf32>
    %689 = arith.divf %687, %688 : vector<16x1xf32>
    %690 = vector.broadcast %682 : vector<16x1xf32> to vector<16x64xf32>
    %691 = arith.subf %672, %690 : vector<16x64xf32>
    %cst_290 = arith.constant 9.99999974E-6 : f32
    %692 = vector.broadcast %cst_290 : f32 to vector<16x1xf32>
    %693 = arith.addf %689, %692 : vector<16x1xf32>
    %694 = math.rsqrt %693 : vector<16x1xf32>
    %695 = vector.broadcast %694 : vector<16x1xf32> to vector<16x64xf32>
    %696 = arith.mulf %691, %695 : vector<16x64xf32>
    %697 = vector.broadcast %677 : vector<1x64xf32> to vector<16x64xf32>
    %698 = arith.mulf %696, %697 : vector<16x64xf32>
    %699 = vector.broadcast %678 : vector<1x64xf32> to vector<16x64xf32>
    %700 = arith.addf %698, %699 : vector<16x64xf32>
    %c0_291 = arith.constant 0 : index
    %c0_292 = arith.constant 0 : index
    %701 = vector.load %arg29[%c0_291, %c0_292] : memref<2x16xf32, #tpu.memory_space<vmem>>, vector<2x16xf32>
    %cst_293 = arith.constant dense<0.000000e+00> : vector<2x64xf32>
    %702 = tpu.matmul %701, %700, %cst_293 {dimension_numbers = #tpu.dot_dimension_numbers<[1], [0], [0], [1], [0, 0, 1, 1], [], []>} : vector<2x16xf32>, vector<16x64xf32>, vector<2x64xf32> -> vector<2x64xf32>
    %703 = arith.truncf %702 : vector<2x64xf32> to vector<2x64xbf16>
    %c0_294 = arith.constant 0 : index
    %c0_295 = arith.constant 0 : index
    %704 = vector.load %arg28[%c0_294, %c0_295] : memref<64x64xbf16, #tpu.memory_space<vmem>>, vector<64x64xbf16>
    %cst_296 = arith.constant dense<0.000000e+00> : vector<2x64xf32>
    %705 = tpu.matmul %703, %704, %cst_296 {dimension_numbers = #tpu.dot_dimension_numbers<[1], [0], [0], [1], [0, 0, 1, 1], [], []>} : vector<2x64xbf16>, vector<64x64xbf16>, vector<2x64xf32> -> vector<2x64xf32>
    %c0_297 = arith.constant 0 : index
    %c0_298 = arith.constant 0 : index
    %706 = vector.load %arg30[%c0_297, %c0_298] : memref<2x1xf32, #tpu.memory_space<vmem>>, vector<2x1xf32>
    %707 = vector.broadcast %706 : vector<2x1xf32> to vector<2x64xf32>
    %708 = arith.mulf %705, %707 : vector<2x64xf32>
    %c0_299 = arith.constant 0 : index
    %c0_300 = arith.constant 0 : index
    %709 = vector.load %arg32[%c0_299, %c0_300] : memref<2x64xf32, #tpu.memory_space<vmem>>, vector<2x64xf32>
    tpu.vector_store %arg32[%c0_299, %c0_300], %708 {strides = array<i32>} : memref<2x64xf32, #tpu.memory_space<vmem>>, vector<2x64xf32>,
    return
  }
}

</mosaic_0001>

<llo_original>
// kernel: text_model_forward.1
$region0: #{text_model_forward.1}
  #allocation0 [shape = 'u32[]', space=smem, size = 0x4, offset = 0x4, fixed_abs, tag = 'smem constant byte address 0x4 - core index']
  #allocation1 [shape = 'u32[72,128]{1,0:T(1,128)}', space=vmem, size = 0x9000, scoped, tag = 'internal scratch']
  %s0 = inlined_call_operand.smem [shape: u32[33], index: -1, kind: input, shape index: {}]
  %s1 = sld [smem:[%s0]]
  %s2 = scalar_lea.smem %s0, 1
  %s3 = sld [smem:[%s2]]
  %s4 = scalar_lea.smem %s0, 2
  %s5 = sld [smem:[%s4]]
  %s6 = scalar_lea.smem %s0, 3
  %s7 = sld [smem:[%s6]]
  %s8 = scalar_lea.smem %s0, 4
  %s9 = sld [smem:[%s8]]
  %s10 = scalar_lea.smem %s0, 5
  %s11 = sld [smem:[%s10]]
  %s12 = scalar_lea.smem %s0, 6
  %s13 = sld [smem:[%s12]]
  %s14 = scalar_lea.smem %s0, 7
  %s15 = sld [smem:[%s14]]
  %s16 = scalar_lea.smem %s0, 8
  %s17 = sld [smem:[%s16]]
  %s18 = scalar_lea.smem %s0, 9
  %s19 = sld [smem:[%s18]]
  %s20 = scalar_lea.smem %s0, 10
  %s21 = sld [smem:[%s20]]
  %s22 = scalar_lea.smem %s0, 11
  %s23 = sld [smem:[%s22]]
  %s24 = scalar_lea.smem %s0, 12
  %s25 = sld [smem:[%s24]]
  %s26 = scalar_lea.smem %s0, 13
  %s27 = sld [smem:[%s26]]
  %s28 = scalar_lea.smem %s0, 14
  %s29 = sld [smem:[%s28]]
  %s30 = scalar_lea.smem %s0, 15
  %s31 = sld [smem:[%s30]]
  %s32 = scalar_lea.smem %s0, 16
  %s33 = sld [smem:[%s32]]
  %s34 = scalar_lea.smem %s0, 17
  %s35 = sld [smem:[%s34]]
  %s36 = scalar_lea.smem %s0, 18
  %s37 = sld [smem:[%s36]]
  %s38 = scalar_lea.smem %s0, 19
  %s39 = sld [smem:[%s38]]
  %s40 = scalar_lea.smem %s0, 20
  %s41 = sld [smem:[%s40]]
  %s42 = scalar_lea.smem %s0, 21
  %s43 = sld [smem:[%s42]]
  %s44 = scalar_lea.smem %s0, 22
  %s45 = sld [smem:[%s44]]
  %s46 = scalar_lea.smem %s0, 23
  %s47 = sld [smem:[%s46]]
  %s48 = scalar_lea.smem %s0, 24
  %s49 = sld [smem:[%s48]]
  %s50 = scalar_lea.smem %s0, 25
  %s51 = sld [smem:[%s50]]
  %s52 = scalar_lea.smem %s0, 26
  %s53 = sld [smem:[%s52]]
  %s54 = scalar_lea.smem %s0, 27
  %s55 = sld [smem:[%s54]]
  %s56 = scalar_lea.smem %s0, 28
  %s57 = sld [smem:[%s56]]
  %s58 = scalar_lea.smem %s0, 29
  %s59 = sld [smem:[%s58]]
  %s60 = scalar_lea.smem %s0, 30
  %s61 = sld [smem:[%s60]]
  %s62 = scalar_lea.smem %s0, 31
  %s63 = sld [smem:[%s62]]
  %s64 = scalar_lea.smem %s0, 32
  %s65 = sld [smem:[%s64]]
  %66 = xla_tuple %s63, %s65
  %s67 = sld [smem:[#allocation0]]
  $region142: #{text_model_forward.1} parent=0
    _
  %s69 = ssub.s32 1, %s67
  %s70 = scalar_select 0, %s69, %s67
  $region1: #{text_model_forward.1} parent=0
    #allocation2 [shape = 'u8[8192]{0}', space=vmem, size = 0x2000, scoped, tag = 'output window, operand 0, single buffered']
    #allocation3 [shape = 's32[1]{0}', space=sflag, size = 0x4, scoped, tag = 'scoped memory for text_model_forward.1']
    #allocation4 [shape = 'u8[1024]{0}', space=vmem, size = 0x400, scoped, tag = 'output window, operand 1, single buffered']
    #allocation5 [shape = 's32[1]{0}', space=sflag, size = 0x4, scoped, tag = 'scoped memory for text_model_forward.1']
    %71 = vsyncpa [#allocation3], 0
    %72 = vsyncpa [#allocation5], 0
    // Predicated region
    $region2: #{text_model_forward.1} parent=1 // pred_check
      _
    $region3: #{text_model_forward.1} parent=1 // pred_check_branch
      %74 = sbr.rel (0) target = $region5
    $region4: #{text_model_forward.1} parent=1 // pred_region
      _
    $region5: #{text_model_forward.1} parent=1 // pred_fallthru
      _
    // Predicated region
    $region6: #{text_model_forward.1} parent=1 // pred_check
      _
    $region7: #{text_model_forward.1} parent=1 // pred_check_branch
      %76 = sbr.rel (0) target = $region9
    $region8: #{text_model_forward.1} parent=1 // pred_region
      _
    $region9: #{text_model_forward.1} parent=1 // pred_fallthru
      _
    // Predicated region
    $region10: #{text_model_forward.1} parent=1 // pred_check
      _
    $region11: #{text_model_forward.1} parent=1 // pred_check_branch
      %78 = sbr.rel (0) target = $region13
    $region12: #{text_model_forward.1} parent=1 // pred_region
      _
    $region13: #{text_model_forward.1} parent=1 // pred_fallthru
      _
    // Predicated region
    $region14: #{text_model_forward.1} parent=1 // pred_check
      _
    $region15: #{text_model_forward.1} parent=1 // pred_check_branch
      %80 = sbr.rel (0) target = $region17
    $region16: #{text_model_forward.1} parent=1 // pred_region
      _
    $region17: #{text_model_forward.1} parent=1 // pred_fallthru
      _
    // Predicated region
    $region18: #{text_model_forward.1} parent=1 // pred_check
      _
    $region19: #{text_model_forward.1} parent=1 // pred_check_branch
      %82 = sbr.rel (0) target = $region21
    $region20: #{text_model_forward.1} parent=1 // pred_region
      _
    $region21: #{text_model_forward.1} parent=1 // pred_fallthru
      _
    // Predicated region
    $region22: #{text_model_forward.1} parent=1 // pred_check
      _
    $region23: #{text_model_forward.1} parent=1 // pred_check_branch
      %84 = sbr.rel (0) target = $region25
    $region24: #{text_model_forward.1} parent=1 // pred_region
      _
    $region25: #{text_model_forward.1} parent=1 // pred_fallthru
      _
    // Predicated region
    $region26: #{text_model_forward.1} parent=1 // pred_check
      _
    $region27: #{text_model_forward.1} parent=1 // pred_check_branch
      %86 = sbr.rel (0) target = $region29
    $region28: #{text_model_forward.1} parent=1 // pred_region
      _
    $region29: #{text_model_forward.1} parent=1 // pred_fallthru
      _
    // Predicated region
    $region30: #{text_model_forward.1} parent=1 // pred_check
      _
    $region31: #{text_model_forward.1} parent=1 // pred_check_branch
      %88 = sbr.rel (0) target = $region33
    $region32: #{text_model_forward.1} parent=1 // pred_region
      _
    $region33: #{text_model_forward.1} parent=1 // pred_fallthru
      _
    // Predicated region
    $region34: #{text_model_forward.1} parent=1 // pred_check
      _
    $region35: #{text_model_forward.1} parent=1 // pred_check_branch
      %90 = sbr.rel (0) target = $region37
    $region36: #{text_model_forward.1} parent=1 // pred_region
      _
    $region37: #{text_model_forward.1} parent=1 // pred_fallthru
      _
    // Predicated region
    $region38: #{text_model_forward.1} parent=1 // pred_check
      _
    $region39: #{text_model_forward.1} parent=1 // pred_check_branch
      %92 = sbr.rel (0) target = $region41
    $region40: #{text_model_forward.1} parent=1 // pred_region
      _
    $region41: #{text_model_forward.1} parent=1 // pred_fallthru
      _
    // Predicated region
    $region42: #{text_model_forward.1} parent=1 // pred_check
      _
    $region43: #{text_model_forward.1} parent=1 // pred_check_branch
      %94 = sbr.rel (0) target = $region45
    $region44: #{text_model_forward.1} parent=1 // pred_region
      _
    $region45: #{text_model_forward.1} parent=1 // pred_fallthru
      _
    // Predicated region
    $region46: #{text_model_forward.1} parent=1 // pred_check
      _
    $region47: #{text_model_forward.1} parent=1 // pred_check_branch
      %96 = sbr.rel (0) target = $region49
    $region48: #{text_model_forward.1} parent=1 // pred_region
      _
    $region49: #{text_model_forward.1} parent=1 // pred_fallthru
      _
    // Predicated region
    $region50: #{text_model_forward.1} parent=1 // pred_check
      _
    $region51: #{text_model_forward.1} parent=1 // pred_check_branch
      %98 = sbr.rel (0) target = $region53
    $region52: #{text_model_forward.1} parent=1 // pred_region
      _
    $region53: #{text_model_forward.1} parent=1 // pred_fallthru
      _
    // Predicated region
    $region54: #{text_model_forward.1} parent=1 // pred_check
      _
    $region55: #{text_model_forward.1} parent=1 // pred_check_branch
      %100 = sbr.rel (0) target = $region57
    $region56: #{text_model_forward.1} parent=1 // pred_region
      _
    $region57: #{text_model_forward.1} parent=1 // pred_fallthru
      _
    // Predicated region
    $region58: #{text_model_forward.1} parent=1 // pred_check
      _
    $region59: #{text_model_forward.1} parent=1 // pred_check_branch
      %102 = sbr.rel (0) target = $region61
    $region60: #{text_model_forward.1} parent=1 // pred_region
      _
    $region61: #{text_model_forward.1} parent=1 // pred_fallthru
      _
    // Predicated region
    $region62: #{text_model_forward.1} parent=1 // pred_check
      _
    $region63: #{text_model_forward.1} parent=1 // pred_check_branch
      %104 = sbr.rel (0) target = $region65
    $region64: #{text_model_forward.1} parent=1 // pred_region
      _
    $region65: #{text_model_forward.1} parent=1 // pred_fallthru
      _
    // Predicated region
    $region66: #{text_model_forward.1} parent=1 // pred_check
      _
    $region67: #{text_model_forward.1} parent=1 // pred_check_branch
      %106 = sbr.rel (0) target = $region69
    $region68: #{text_model_forward.1} parent=1 // pred_region
      _
    $region69: #{text_model_forward.1} parent=1 // pred_fallthru
      _
    // Predicated region
    $region70: #{text_model_forward.1} parent=1 // pred_check
      _
    $region71: #{text_model_forward.1} parent=1 // pred_check_branch
      %108 = sbr.rel (0) target = $region73
    $region72: #{text_model_forward.1} parent=1 // pred_region
      _
    $region73: #{text_model_forward.1} parent=1 // pred_fallthru
      _
    // Predicated region
    $region74: #{text_model_forward.1} parent=1 // pred_check
      _
    $region75: #{text_model_forward.1} parent=1 // pred_check_branch
      %110 = sbr.rel (0) target = $region77
    $region76: #{text_model_forward.1} parent=1 // pred_region
      _
    $region77: #{text_model_forward.1} parent=1 // pred_fallthru
      _
    // Predicated region
    $region78: #{text_model_forward.1} parent=1 // pred_check
      _
    $region79: #{text_model_forward.1} parent=1 // pred_check_branch
      %112 = sbr.rel (0) target = $region81
    $region80: #{text_model_forward.1} parent=1 // pred_region
      _
    $region81: #{text_model_forward.1} parent=1 // pred_fallthru
      _
    // Predicated region
    $region82: #{text_model_forward.1} parent=1 // pred_check
      _
    $region83: #{text_model_forward.1} parent=1 // pred_check_branch
      %114 = sbr.rel (0) target = $region85
    $region84: #{text_model_forward.1} parent=1 // pred_region
      _
    $region85: #{text_model_forward.1} parent=1 // pred_fallthru
      _
    // Predicated region
    $region86: #{text_model_forward.1} parent=1 // pred_check
      _
    $region87: #{text_model_forward.1} parent=1 // pred_check_branch
      %116 = sbr.rel (0) target = $region89
    $region88: #{text_model_forward.1} parent=1 // pred_region
      _
    $region89: #{text_model_forward.1} parent=1 // pred_fallthru
      _
    // Predicated region
    $region90: #{text_model_forward.1} parent=1 // pred_check
      _
    $region91: #{text_model_forward.1} parent=1 // pred_check_branch
      %118 = sbr.rel (0) target = $region93
    $region92: #{text_model_forward.1} parent=1 // pred_region
      _
    $region93: #{text_model_forward.1} parent=1 // pred_fallthru
      _
    // Predicated region
    $region94: #{text_model_forward.1} parent=1 // pred_check
      _
    $region95: #{text_model_forward.1} parent=1 // pred_check_branch
      %120 = sbr.rel (0) target = $region97
    $region96: #{text_model_forward.1} parent=1 // pred_region
      _
    $region97: #{text_model_forward.1} parent=1 // pred_fallthru
      _
    // Predicated region
    $region98: #{text_model_forward.1} parent=1 // pred_check
      _
    $region99: #{text_model_forward.1} parent=1 // pred_check_branch
      %122 = sbr.rel (0) target = $region101
    $region100: #{text_model_forward.1} parent=1 // pred_region
      _
    $region101: #{text_model_forward.1} parent=1 // pred_fallthru
      _
    // Predicated region
    $region102: #{text_model_forward.1} parent=1 // pred_check
      _
    $region103: #{text_model_forward.1} parent=1 // pred_check_branch
      %124 = sbr.rel (0) target = $region105
    $region104: #{text_model_forward.1} parent=1 // pred_region
      _
    $region105: #{text_model_forward.1} parent=1 // pred_fallthru
      _
    // Predicated region
    $region106: #{text_model_forward.1} parent=1 // pred_check
      _
    $region107: #{text_model_forward.1} parent=1 // pred_check_branch
      %126 = sbr.rel (0) target = $region109
    $region108: #{text_model_forward.1} parent=1 // pred_region
      _
    $region109: #{text_model_forward.1} parent=1 // pred_fallthru
      _
    // Predicated region
    $region110: #{text_model_forward.1} parent=1 // pred_check
      _
    $region111: #{text_model_forward.1} parent=1 // pred_check_branch
      %128 = sbr.rel (0) target = $region113
    $region112: #{text_model_forward.1} parent=1 // pred_region
      _
    $region113: #{text_model_forward.1} parent=1 // pred_fallthru
      _
    // Predicated region
    $region114: #{text_model_forward.1} parent=1 // pred_check
      _
    $region115: #{text_model_forward.1} parent=1 // pred_check_branch
      %130 = sbr.rel (0) target = $region117
    $region116: #{text_model_forward.1} parent=1 // pred_region
      _
    $region117: #{text_model_forward.1} parent=1 // pred_fallthru
      _
    // Predicated region
    $region118: #{text_model_forward.1} parent=1 // pred_check
      _
    $region119: #{text_model_forward.1} parent=1 // pred_check_branch
      %132 = sbr.rel (0) target = $region121
    $region120: #{text_model_forward.1} parent=1 // pred_region
      _
    $region121: #{text_model_forward.1} parent=1 // pred_fallthru
      _
    // Predicated region
    $region122: #{text_model_forward.1} parent=1 // pred_check
      _
    $region123: #{text_model_forward.1} parent=1 // pred_check_branch
      %134 = sbr.rel (0) target = $region125
    $region124: #{text_model_forward.1} parent=1 // pred_region
      _
    $region125: #{text_model_forward.1} parent=1 // pred_fallthru
      _
    %v136 = vlaneseq
    %v137 = vshrl.u32 %v136, 7
    %v138 = vlaneseq
    %v139 = vand.u32 %v138, 127
    %vm140 = vcmp.le.s32.totalorder %v139, %v137
    %v141 = vsel %vm140, 0.0, -1e+30
    %v142 = vld [vmem:[%s1] sm:$0xff]
    %v143 = vld [vmem:[%s1 + $0x8] sm:$0xff]
    %v144 = vld [vmem:[%s5] sm:$0x1]
    %v145 = vld [vmem:[%s7] sm:$0x1]
    %v146 = vld [vmem:[%s9] sm:$0xf]
    %v147 = vld [vmem:[%s9 + $0x4] sm:$0xf]
    %v148 = vld [vmem:[%s9 + $0x8] sm:$0xf]
    %v149 = vld [vmem:[%s9 + $0xc] sm:$0xf]
    %v150 = vld [vmem:[%s11] sm:$0x1]
    %v151 = vld [vmem:[%s13] sm:$0xf]
    %v152 = vld [vmem:[%s13 + $0x4] sm:$0xf]
    %v153 = vld [vmem:[%s13 + $0x8] sm:$0xf]
    %v154 = vld [vmem:[%s13 + $0xc] sm:$0xf]
    %v155 = vld [vmem:[%s15] sm:$0x1]
    %v156 = vld [vmem:[%s17] sm:$0x1]
    %v157 = vld [vmem:[%s19] sm:$0x1]
    %v158 = vld [vmem:[%s21] sm:$0xf]
    %v159 = vld [vmem:[%s21 + $0x4] sm:$0xf]
    %v160 = vld [vmem:[%s21 + $0x8] sm:$0xf]
    %v161 = vld [vmem:[%s21 + $0xc] sm:$0xf]
    %v162 = vld [vmem:[%s23] sm:$0x1]
    %v163 = vld [vmem:[%s25] sm:$0xf]
    %v164 = vld [vmem:[%s25 + $0x4] sm:$0xf]
    %v165 = vld [vmem:[%s25 + $0x8] sm:$0xf]
    %v166 = vld [vmem:[%s25 + $0xc] sm:$0xf]
    %v167 = vld [vmem:[%s25 + $0x10] sm:$0xf]
    %v168 = vld [vmem:[%s25 + $0x14] sm:$0xf]
    %v169 = vld [vmem:[%s25 + $0x18] sm:$0xf]
    %v170 = vld [vmem:[%s25 + $0x1c] sm:$0xf]
    %v171 = vld [vmem:[%s25 + $0x20] sm:$0xf]
    %v172 = vld [vmem:[%s25 + $0x24] sm:$0xf]
    %v173 = vld [vmem:[%s25 + $0x28] sm:$0xf]
    %v174 = vld [vmem:[%s25 + $0x2c] sm:$0xf]
    %v175 = vld [vmem:[%s25 + $0x30] sm:$0xf]
    %v176 = vld [vmem:[%s25 + $0x34] sm:$0xf]
    %v177 = vld [vmem:[%s25 + $0x38] sm:$0xf]
    %v178 = vld [vmem:[%s25 + $0x3c] sm:$0xf]
    %v179 = vld [vmem:[%s27] sm:$0x1]
    %vm180 = vcmask 261120
    %v181 = vsel %vm180, %v142, 0.0
    %182 = vadd.xlane.f32.xlu0 %v181
    %v183 = vpop.xlane.xlu0 %182
    %v184 = vsel %vm180, %v143, 0.0
    %185 = vadd.xlane.f32.xlu0 %v184
    %v186 = vpop.xlane.xlu0 %185
    %v187 = vrcp.pop 32.0
    %v188 = vmul.f32 32.0, %v187
    %v189 = vsub.f32 1.0, %v188
    %v190 = vmul.f32 %v187, %v189
    %v191 = vadd.f32 %v187, %v190
    %vm192 = vweird.f32 %v187
    %v193 = vsel %vm192, %v187, %v191
    %v194 = vmul.f32 %v183, %v193
    %v195 = vmul.f32 %v186, %v193
    %v196 = vsub.f32 %v142, %v194
    %v197 = vsub.f32 %v143, %v195
    %v198 = vmul.f32 %v196, %v196
    %v199 = vmul.f32 %v197, %v197
    %v200 = vsel %vm180, %v198, 0.0
    %201 = vadd.xlane.f32.xlu0 %v200
    %v202 = vpop.xlane.xlu0 %201
    %v203 = vsel %vm180, %v199, 0.0
    %204 = vadd.xlane.f32.xlu0 %v203
    %v205 = vpop.xlane.xlu0 %204
    %v206 = vmul.f32 %v202, %v193
    %v207 = vmul.f32 %v205, %v193
    %v208 = vadd.f32 %v206, 1e-05
    %v209 = vadd.f32 %v207, 1e-05
    %v210 = vrsqrt.pop %v208
    %v211 = vmul.f32 %v210, %v208
    %v212 = vmul.f32 %v211, %v210
    %v213 = vmul.f32 0.5, %v212
    %v214 = vsub.f32 1.5, %v213
    %v215 = vmul.f32 %v210, %v214
    %vm216 = vweird.f32 %v208
    %vm217 = vweird.f32 %v210
    %vm218 = vmor %vm216, %vm217
    %v219 = vsel %vm218, %v210, %v215
    %v220 = vrsqrt.pop %v209
    %v221 = vmul.f32 %v220, %v209
    %v222 = vmul.f32 %v221, %v220
    %v223 = vmul.f32 0.5, %v222
    %v224 = vsub.f32 1.5, %v223
    %v225 = vmul.f32 %v220, %v224
    %vm226 = vweird.f32 %v209
    %vm227 = vweird.f32 %v220
    %vm228 = vmor %vm226, %vm227
    %v229 = vsel %vm228, %v220, %v225
    %v230 = vmul.f32 %v196, %v219
    %v231 = vmul.f32 %v197, %v229
    %v233 = vperm.slane %v144, 0
    %v235 = vmul.f32 %v230, %v233
    %v236 = vmul.f32 %v231, %v233
    %v238 = vperm.slane %v145, 0
    %v240 = vadd.f32 %v235, %v238
    %v241 = vadd.f32 %v236, %v238
    %v242 = vpack.c.bf16 %v241, %v240
    %v244 = vperm.slane %v150, 0
    %v250 = vunpack.c.l.b16 %v146
    %v251 = vunpack.c.l.b16 %v147
    %v252 = vunpack.c.l.b16 %v148
    %v253 = vunpack.c.l.b16 %v149
    %v254 = vpack.c.b16 %v251, %v250
    %v255 = vpack.c.b16 %v253, %v252
    %v259 = vsel %vm180, %v242, 0
    %261 = vmatpush.bf16.msra.mxu0 0
    %262 = vmatpush.bf16.msra.mxu0 0
    %263 = vmatpush.bf16.msra.mxu0 0
    %264 = vmatpush.bf16.msra.mxu0 0
    %265 = vmatpush.bf16.msra.mxu0 0
    %266 = vmatpush.bf16.msra.mxu0 0
    %267 = vmatpush.bf16.msra.mxu0 %v255
    %268 = vmatpush.bf16.msra.mxu0 %v254
    %269 = vmatmul.bf16.gmra.mxu0 %v259
    %v270 = vpop.f32.mrf.mxu0
    %v271 = vadd.f32 %v244, %v270
    %v272 = vpop.f32.mrf.mxu0
    %v273 = vadd.f32 %v244, %v272
    %274 = vdwg.mxu0
    %v275 = vmul.f32 %v271, 0.25
    %v276 = vmul.f32 %v273, 0.25
    %278 = vrot.lane.b32.xlu0 %v271, 96
    %v279 = vpop.permute.xlu0 %278
    %vm280 = vcmask 130048
    %v282 = vsel %vm280, %v275, 0
    %v284 = vsel %vm280, %v279, 0
    %286 = vmatpush.xpose.msra.mxu0 0.0
    %287 = vmatpush.xpose.msra.mxu0 0.0
    %288 = vmatpush.xpose.msra.mxu0 0.0
    %289 = vmatpush.xpose.msra.mxu0 0.0
    %290 = vmatpush.xpose.msra.mxu0 0.0
    %291 = vmatpush.xpose.msra.mxu0 0.0
    %292 = vmatpush.xpose.msra.mxu0 0.0
    %293 = vmatpush.xpose.msra.mxu0 0.0
    %294 = vmatpush.xpose.msra.mxu0 0.0
    %295 = vmatpush.xpose.msra.mxu0 0.0
    %296 = vmatpush.xpose.msra.mxu0 0.0
    %297 = vmatpush.xpose.msra.mxu0 0.0
    %298 = vmatpush.xpose.msra.mxu0 0.0
    %299 = vmatpush.xpose.msra.mxu0 0.0
    %300 = vmatpush.xpose.msra.mxu0 0.0
    %301 = vmatpush.xpose.msra.mxu0 %v284
    %302 = vmatmul.f32.gmra.mxu0 %v282
    %v303 = vpop.f32.mrf.mxu0
    %v304 = vadd.f32 %v141, %v303
    %305 = vdwg.mxu0
    %307 = vrot.lane.b32.xlu0 %v273, 96
    %v308 = vpop.permute.xlu0 %307
    %v310 = vsel %vm280, %v276, 0
    %v312 = vsel %vm280, %v308, 0
    %314 = vmatpush.xpose.msra.mxu0 0.0
    %315 = vmatpush.xpose.msra.mxu0 0.0
    %316 = vmatpush.xpose.msra.mxu0 0.0
    %317 = vmatpush.xpose.msra.mxu0 0.0
    %318 = vmatpush.xpose.msra.mxu0 0.0
    %319 = vmatpush.xpose.msra.mxu0 0.0
    %320 = vmatpush.xpose.msra.mxu0 0.0
    %321 = vmatpush.xpose.msra.mxu0 0.0
    %322 = vmatpush.xpose.msra.mxu0 0.0
    %323 = vmatpush.xpose.msra.mxu0 0.0
    %324 = vmatpush.xpose.msra.mxu0 0.0
    %325 = vmatpush.xpose.msra.mxu0 0.0
    %326 = vmatpush.xpose.msra.mxu0 0.0
    %327 = vmatpush.xpose.msra.mxu0 0.0
    %328 = vmatpush.xpose.msra.mxu0 0.0
    %329 = vmatpush.xpose.msra.mxu0 %v312
    %330 = vmatmul.f32.gmra.mxu0 %v310
    %v331 = vpop.f32.mrf.mxu0
    %v332 = vadd.f32 %v141, %v331
    %333 = vdwg.mxu0
    %vm334 = vcmask 64512
    %v335 = vsel %vm334, %v304, -inf
    %336 = vmax.xlane.f32.xlu0 %v335
    %v337 = vpop.xlane.xlu0 %336
    %v338 = vsel %vm334, %v332, -inf
    %339 = vmax.xlane.f32.xlu0 %v338
    %v340 = vpop.xlane.xlu0 %339
    %v341 = vsub.f32 %v304, %v337
    %v342 = vsub.f32 %v332, %v340
    %v343 = vmul.f32 %v341, 1.442695
    %v344 = vpow.pop %v343
    %v345 = vmul.f32 %v342, 1.442695
    %v346 = vpow.pop %v345
    %v347 = vsel %vm334, %v344, 0.0
    %348 = vadd.xlane.f32.xlu0 %v347
    %v349 = vpop.xlane.xlu0 %348
    %v350 = vsel %vm334, %v346, 0.0
    %351 = vadd.xlane.f32.xlu0 %v350
    %v352 = vpop.xlane.xlu0 %351
    %v353 = vrcp.pop %v349
    %v354 = vrcp.pop %v352
    %v355 = vmul.f32 %v344, %v353
    %v356 = vmul.f32 %v346, %v354
    %357 = vrot.lane.b32.xlu0 %v271, 64
    %v358 = vpop.permute.xlu0 %357
    %v361 = vsel %vm334, %v355, 0
    %363 = vmatpush.msra.mxu0 0.0
    %364 = vmatpush.msra.mxu0 0.0
    %365 = vmatpush.msra.mxu0 0.0
    %366 = vmatpush.msra.mxu0 0.0
    %367 = vmatpush.msra.mxu0 0.0
    %368 = vmatpush.msra.mxu0 0.0
    %369 = vmatpush.msra.mxu0 0.0
    %370 = vmatpush.msra.mxu0 0.0
    %371 = vmatpush.msra.mxu0 0.0
    %372 = vmatpush.msra.mxu0 0.0
    %373 = vmatpush.msra.mxu0 0.0
    %374 = vmatpush.msra.mxu0 0.0
    %375 = vmatpush.msra.mxu0 0.0
    %376 = vmatpush.msra.mxu0 0.0
    %377 = vmatpush.msra.mxu0 0.0
    %378 = vmatpush.msra.mxu0 %v358
    %379 = vmatmul.f32.gmra.mxu0 %v361
    %v380 = vpop.f32.mrf.mxu0
    %v381 = vadd.f32 0.0, %v380
    %382 = vdwg.mxu0
    %383 = vrot.lane.b32.xlu0 %v273, 64
    %v384 = vpop.permute.xlu0 %383
    %v387 = vsel %vm334, %v356, 0
    %389 = vmatpush.msra.mxu0 0.0
    %390 = vmatpush.msra.mxu0 0.0
    %391 = vmatpush.msra.mxu0 0.0
    %392 = vmatpush.msra.mxu0 0.0
    %393 = vmatpush.msra.mxu0 0.0
    %394 = vmatpush.msra.mxu0 0.0
    %395 = vmatpush.msra.mxu0 0.0
    %396 = vmatpush.msra.mxu0 0.0
    %397 = vmatpush.msra.mxu0 0.0
    %398 = vmatpush.msra.mxu0 0.0
    %399 = vmatpush.msra.mxu0 0.0
    %400 = vmatpush.msra.mxu0 0.0
    %401 = vmatpush.msra.mxu0 0.0
    %402 = vmatpush.msra.mxu0 0.0
    %403 = vmatpush.msra.mxu0 0.0
    %404 = vmatpush.msra.mxu0 %v384
    %405 = vmatmul.f32.gmra.mxu0 %v387
    %v406 = vpop.f32.mrf.mxu0
    %v407 = vadd.f32 0.0, %v406
    %408 = vdwg.mxu0
    %v409 = vpack.c.bf16 %v407, %v381
    %410 = vrot.lane.b32.xlu0 %v275, 112
    %v411 = vpop.permute.xlu0 %410
    %412 = vrot.lane.b32.xlu0 %v271, 80
    %v413 = vpop.permute.xlu0 %412
    %v414 = vsel %vm280, %v411, 0
    %v416 = vsel %vm280, %v413, 0
    %418 = vmatpush.xpose.msra.mxu0 0.0
    %419 = vmatpush.xpose.msra.mxu0 0.0
    %420 = vmatpush.xpose.msra.mxu0 0.0
    %421 = vmatpush.xpose.msra.mxu0 0.0
    %422 = vmatpush.xpose.msra.mxu0 0.0
    %423 = vmatpush.xpose.msra.mxu0 0.0
    %424 = vmatpush.xpose.msra.mxu0 0.0
    %425 = vmatpush.xpose.msra.mxu0 0.0
    %426 = vmatpush.xpose.msra.mxu0 0.0
    %427 = vmatpush.xpose.msra.mxu0 0.0
    %428 = vmatpush.xpose.msra.mxu0 0.0
    %429 = vmatpush.xpose.msra.mxu0 0.0
    %430 = vmatpush.xpose.msra.mxu0 0.0
    %431 = vmatpush.xpose.msra.mxu0 0.0
    %432 = vmatpush.xpose.msra.mxu0 0.0
    %433 = vmatpush.xpose.msra.mxu0 %v416
    %434 = vmatmul.f32.gmra.mxu0 %v414
    %v435 = vpop.f32.mrf.mxu0
    %v436 = vadd.f32 %v141, %v435
    %437 = vdwg.mxu0
    %438 = vrot.lane.b32.xlu0 %v276, 112
    %v439 = vpop.permute.xlu0 %438
    %440 = vrot.lane.b32.xlu0 %v273, 80
    %v441 = vpop.permute.xlu0 %440
    %v442 = vsel %vm280, %v439, 0
    %v444 = vsel %vm280, %v441, 0
    %446 = vmatpush.xpose.msra.mxu0 0.0
    %447 = vmatpush.xpose.msra.mxu0 0.0
    %448 = vmatpush.xpose.msra.mxu0 0.0
    %449 = vmatpush.xpose.msra.mxu0 0.0
    %450 = vmatpush.xpose.msra.mxu0 0.0
    %451 = vmatpush.xpose.msra.mxu0 0.0
    %452 = vmatpush.xpose.msra.mxu0 0.0
    %453 = vmatpush.xpose.msra.mxu0 0.0
    %454 = vmatpush.xpose.msra.mxu0 0.0
    %455 = vmatpush.xpose.msra.mxu0 0.0
    %456 = vmatpush.xpose.msra.mxu0 0.0
    %457 = vmatpush.xpose.msra.mxu0 0.0
    %458 = vmatpush.xpose.msra.mxu0 0.0
    %459 = vmatpush.xpose.msra.mxu0 0.0
    %460 = vmatpush.xpose.msra.mxu0 0.0
    %461 = vmatpush.xpose.msra.mxu0 %v444
    %462 = vmatmul.f32.gmra.mxu0 %v442
    %v463 = vpop.f32.mrf.mxu0
    %v464 = vadd.f32 %v141, %v463
    %465 = vdwg.mxu0
    %v466 = vsel %vm334, %v436, -inf
    %467 = vmax.xlane.f32.xlu0 %v466
    %v468 = vpop.xlane.xlu0 %467
    %v469 = vsel %vm334, %v464, -inf
    %470 = vmax.xlane.f32.xlu0 %v469
    %v471 = vpop.xlane.xlu0 %470
    %v472 = vsub.f32 %v436, %v468
    %v473 = vsub.f32 %v464, %v471
    %v474 = vmul.f32 %v472, 1.442695
    %v475 = vpow.pop %v474
    %v476 = vmul.f32 %v473, 1.442695
    %v477 = vpow.pop %v476
    %v478 = vsel %vm334, %v475, 0.0
    %479 = vadd.xlane.f32.xlu0 %v478
    %v480 = vpop.xlane.xlu0 %479
    %v481 = vsel %vm334, %v477, 0.0
    %482 = vadd.xlane.f32.xlu0 %v481
    %v483 = vpop.xlane.xlu0 %482
    %v484 = vrcp.pop %v480
    %v485 = vrcp.pop %v483
    %v486 = vmul.f32 %v475, %v484
    %v487 = vmul.f32 %v477, %v485
    %488 = vrot.lane.b32.xlu0 %v271, 48
    %v489 = vpop.permute.xlu0 %488
    %v492 = vsel %vm334, %v486, 0
    %494 = vmatpush.msra.mxu0 0.0
    %495 = vmatpush.msra.mxu0 0.0
    %496 = vmatpush.msra.mxu0 0.0
    %497 = vmatpush.msra.mxu0 0.0
    %498 = vmatpush.msra.mxu0 0.0
    %499 = vmatpush.msra.mxu0 0.0
    %500 = vmatpush.msra.mxu0 0.0
    %501 = vmatpush.msra.mxu0 0.0
    %502 = vmatpush.msra.mxu0 0.0
    %503 = vmatpush.msra.mxu0 0.0
    %504 = vmatpush.msra.mxu0 0.0
    %505 = vmatpush.msra.mxu0 0.0
    %506 = vmatpush.msra.mxu0 0.0
    %507 = vmatpush.msra.mxu0 0.0
    %508 = vmatpush.msra.mxu0 0.0
    %509 = vmatpush.msra.mxu0 %v489
    %510 = vmatmul.f32.gmra.mxu0 %v492
    %v511 = vpop.f32.mrf.mxu0
    %v512 = vadd.f32 0.0, %v511
    %513 = vdwg.mxu0
    %514 = vrot.lane.b32.xlu0 %v273, 48
    %v515 = vpop.permute.xlu0 %514
    %v518 = vsel %vm334, %v487, 0
    %520 = vmatpush.msra.mxu0 0.0
    %521 = vmatpush.msra.mxu0 0.0
    %522 = vmatpush.msra.mxu0 0.0
    %523 = vmatpush.msra.mxu0 0.0
    %524 = vmatpush.msra.mxu0 0.0
    %525 = vmatpush.msra.mxu0 0.0
    %526 = vmatpush.msra.mxu0 0.0
    %527 = vmatpush.msra.mxu0 0.0
    %528 = vmatpush.msra.mxu0 0.0
    %529 = vmatpush.msra.mxu0 0.0
    %530 = vmatpush.msra.mxu0 0.0
    %531 = vmatpush.msra.mxu0 0.0
    %532 = vmatpush.msra.mxu0 0.0
    %533 = vmatpush.msra.mxu0 0.0
    %534 = vmatpush.msra.mxu0 0.0
    %535 = vmatpush.msra.mxu0 %v515
    %536 = vmatmul.f32.gmra.mxu0 %v518
    %v537 = vpop.f32.mrf.mxu0
    %v538 = vadd.f32 0.0, %v537
    %539 = vdwg.mxu0
    %v540 = vpack.c.bf16 %v538, %v512
    %v543 = vunpack.c.l.b16 %v153
    %v544 = vunpack.c.l.b16 %v154
    %v545 = vpack.c.b16 %v544, %v543
    %v548 = vsel %vm280, %v540, 0
    %550 = vmatpush.bf16.msra.mxu0 0
    %551 = vmatpush.bf16.msra.mxu0 0
    %552 = vmatpush.bf16.msra.mxu0 0
    %553 = vmatpush.bf16.msra.mxu0 0
    %554 = vmatpush.bf16.msra.mxu0 0
    %555 = vmatpush.bf16.msra.mxu0 0
    %556 = vmatpush.bf16.msra.mxu0 0
    %557 = vmatpush.bf16.msra.mxu0 %v545
    %558 = vmatmul.bf16.gmra.mxu0 %v548
    %v559 = vpop.f32.mrf.mxu0
    %v560 = vadd.f32 0.0, %v559
    %v561 = vpop.f32.mrf.mxu0
    %v562 = vadd.f32 0.0, %v561
    %563 = vdwg.mxu0
    %v566 = vunpack.c.l.b16 %v151
    %v567 = vunpack.c.l.b16 %v152
    %v568 = vpack.c.b16 %v567, %v566
    %v571 = vsel %vm280, %v409, 0
    %573 = vmatpush.bf16.msra.mxu0 0
    %574 = vmatpush.bf16.msra.mxu0 0
    %575 = vmatpush.bf16.msra.mxu0 0
    %576 = vmatpush.bf16.msra.mxu0 0
    %577 = vmatpush.bf16.msra.mxu0 0
    %578 = vmatpush.bf16.msra.mxu0 0
    %579 = vmatpush.bf16.msra.mxu0 0
    %580 = vmatpush.bf16.msra.mxu0 %v568
    %581 = vmatmul.bf16.gmra.mxu0 %v571
    %v582 = vpop.f32.mrf.mxu0
    %v583 = vadd.f32 %v560, %v582
    %v584 = vpop.f32.mrf.mxu0
    %v585 = vadd.f32 %v562, %v584
    %586 = vdwg.mxu0
    %v587 = vadd.f32 %v142, %v583
    %v588 = vadd.f32 %v143, %v585
    %v590 = vperm.slane %v155, 0
    %v592 = vadd.f32 %v587, %v590
    %v593 = vadd.f32 %v588, %v590
    %v594 = vsel %vm180, %v592, 0.0
    %595 = vadd.xlane.f32.xlu0 %v594
    %v596 = vpop.xlane.xlu0 %595
    %v597 = vsel %vm180, %v593, 0.0
    %598 = vadd.xlane.f32.xlu0 %v597
    %v599 = vpop.xlane.xlu0 %598
    %v600 = vmul.f32 %v596, %v193
    %v601 = vmul.f32 %v599, %v193
    %v602 = vsub.f32 %v592, %v600
    %v603 = vsub.f32 %v593, %v601
    %v604 = vmul.f32 %v602, %v602
    %v605 = vmul.f32 %v603, %v603
    %v606 = vsel %vm180, %v604, 0.0
    %607 = vadd.xlane.f32.xlu0 %v606
    %v608 = vpop.xlane.xlu0 %607
    %v609 = vsel %vm180, %v605, 0.0
    %610 = vadd.xlane.f32.xlu0 %v609
    %v611 = vpop.xlane.xlu0 %610
    %v612 = vmul.f32 %v608, %v193
    %v613 = vmul.f32 %v611, %v193
    %v614 = vadd.f32 %v612, 1e-05
    %v615 = vadd.f32 %v613, 1e-05
    %v616 = vrsqrt.pop %v614
    %v617 = vmul.f32 %v616, %v614
    %v618 = vmul.f32 %v617, %v616
    %v619 = vmul.f32 0.5, %v618
    %v620 = vsub.f32 1.5, %v619
    %v621 = vmul.f32 %v616, %v620
    %vm622 = vweird.f32 %v614
    %vm623 = vweird.f32 %v616
    %vm624 = vmor %vm622, %vm623
    %v625 = vsel %vm624, %v616, %v621
    %v626 = vrsqrt.pop %v615
    %v627 = vmul.f32 %v626, %v615
    %v628 = vmul.f32 %v627, %v626
    %v629 = vmul.f32 0.5, %v628
    %v630 = vsub.f32 1.5, %v629
    %v631 = vmul.f32 %v626, %v630
    %vm632 = vweird.f32 %v615
    %vm633 = vweird.f32 %v626
    %vm634 = vmor %vm632, %vm633
    %v635 = vsel %vm634, %v626, %v631
    %v636 = vmul.f32 %v602, %v625
    %v637 = vmul.f32 %v603, %v635
    %v639 = vperm.slane %v156, 0
    %v641 = vmul.f32 %v636, %v639
    %v642 = vmul.f32 %v637, %v639
    %v644 = vperm.slane %v157, 0
    %v646 = vadd.f32 %v641, %v644
    %v647 = vadd.f32 %v642, %v644
    %v648 = vpack.c.bf16 %v647, %v646
    %v650 = vperm.slane %v162, 0
    %v656 = vunpack.c.l.b16 %v158
    %v657 = vunpack.c.l.b16 %v159
    %v658 = vunpack.c.l.b16 %v160
    %v659 = vunpack.c.l.b16 %v161
    %v660 = vpack.c.b16 %v657, %v656
    %v661 = vpack.c.b16 %v659, %v658
    %v665 = vsel %vm180, %v648, 0
    %667 = vmatpush.bf16.msra.mxu0 0
    %668 = vmatpush.bf16.msra.mxu0 0
    %669 = vmatpush.bf16.msra.mxu0 0
    %670 = vmatpush.bf16.msra.mxu0 0
    %671 = vmatpush.bf16.msra.mxu0 0
    %672 = vmatpush.bf16.msra.mxu0 0
    %673 = vmatpush.bf16.msra.mxu0 %v661
    %674 = vmatpush.bf16.msra.mxu0 %v660
    %675 = vmatmul.bf16.gmra.mxu0 %v665
    %v676 = vpop.f32.mrf.mxu0
    %v677 = vadd.f32 %v650, %v676
    %v678 = vpop.f32.mrf.mxu0
    %v679 = vadd.f32 %v650, %v678
    %680 = vdwg.mxu0
    %v681 = vmul.f32 %v677, 1.702
    %v682 = vmul.f32 %v679, 1.702
    %v683 = vxor.u32 %v681, 2147483648
    %v684 = vxor.u32 %v682, 2147483648
    %v685 = vmul.f32 %v683, 1.442695
    %v686 = vpow.pop %v685
    %v687 = vmul.f32 %v684, 1.442695
    %v688 = vpow.pop %v687
    %v689 = vadd.f32 %v686, 1.0
    %v690 = vadd.f32 %v688, 1.0
    %v691 = vrcp.pop %v689
    %v692 = vmul.f32 %v689, %v691
    %v693 = vsub.f32 1.0, %v692
    %v694 = vmul.f32 %v691, %v693
    %v695 = vadd.f32 %v691, %v694
    %vm696 = vweird.f32 %v689
    %vm697 = vweird.f32 %v691
    %vm698 = vmor %vm696, %vm697
    %v699 = vsel %vm698, %v691, %v695
    %v700 = vand.u32 2147483647, %v689
    %vm701 = vcmp.eq.f32.partialorder %v700, 8.507059e+37
    %v702 = vand.u32 %v689, 2147483648
    %v703 = vor.u32 1.1754944e-38, %v702
    %v704 = vsel %vm701, %v703, %v699
    %v705 = vmul.f32 1.0, %v704
    %v706 = vrcp.pop %v690
    %v707 = vmul.f32 %v690, %v706
    %v708 = vsub.f32 1.0, %v707
    %v709 = vmul.f32 %v706, %v708
    %v710 = vadd.f32 %v706, %v709
    %vm711 = vweird.f32 %v690
    %vm712 = vweird.f32 %v706
    %vm713 = vmor %vm711, %vm712
    %v714 = vsel %vm713, %v706, %v710
    %v715 = vand.u32 2147483647, %v690
    %vm716 = vcmp.eq.f32.partialorder %v715, 8.507059e+37
    %v717 = vand.u32 %v690, 2147483648
    %v718 = vor.u32 1.1754944e-38, %v717
    %v719 = vsel %vm716, %v718, %v714
    %v720 = vmul.f32 1.0, %v719
    %v721 = vmul.f32 %v677, %v705
    %v722 = vmul.f32 %v679, %v720
    %v723 = vpack.c.bf16 %v722, %v721
    %v725 = vperm.slane %v179, 0
    %v743 = vunpack.c.l.b16 %v163
    %v744 = vunpack.c.l.b16 %v164
    %v745 = vunpack.c.l.b16 %v165
    %v746 = vunpack.c.l.b16 %v166
    %v747 = vunpack.c.l.b16 %v167
    %v748 = vunpack.c.l.b16 %v168
    %v749 = vunpack.c.l.b16 %v169
    %v750 = vunpack.c.l.b16 %v170
    %v751 = vunpack.c.l.b16 %v171
    %v752 = vunpack.c.l.b16 %v172
    %v753 = vunpack.c.l.b16 %v173
    %v754 = vunpack.c.l.b16 %v174
    %v755 = vunpack.c.l.b16 %v175
    %v756 = vunpack.c.l.b16 %v176
    %v757 = vunpack.c.l.b16 %v177
    %v758 = vunpack.c.l.b16 %v178
    %v759 = vpack.c.b16 %v744, %v743
    %v760 = vpack.c.b16 %v746, %v745
    %v761 = vpack.c.b16 %v748, %v747
    %v762 = vpack.c.b16 %v750, %v749
    %v763 = vpack.c.b16 %v752, %v751
    %v764 = vpack.c.b16 %v754, %v753
    %v765 = vpack.c.b16 %v756, %v755
    %v766 = vpack.c.b16 %v758, %v757
    %775 = vmatpush.bf16.msra.mxu0 %v766
    %776 = vmatpush.bf16.msra.mxu0 %v765
    %777 = vmatpush.bf16.msra.mxu0 %v764
    %778 = vmatpush.bf16.msra.mxu0 %v763
    %779 = vmatpush.bf16.msra.mxu0 %v762
    %780 = vmatpush.bf16.msra.mxu0 %v761
    %781 = vmatpush.bf16.msra.mxu0 %v760
    %782 = vmatpush.bf16.msra.mxu0 %v759
    %783 = vmatmul.bf16.gmra.mxu0 %v723
    %v784 = vpop.f32.mrf.mxu0
    %v785 = vadd.f32 %v725, %v784
    %v786 = vpop.f32.mrf.mxu0
    %v787 = vadd.f32 %v725, %v786
    %788 = vdwg.mxu0
    %v789 = vadd.f32 %v592, %v785
    %v790 = vadd.f32 %v593, %v787
    %s791 = scalar_lea.vmem %s5, 1
    %v792 = vld [vmem:[%s791] sm:$0x1]
    %s793 = scalar_lea.vmem %s7, 1
    %v794 = vld [vmem:[%s793] sm:$0x1]
    %s795 = scalar_lea.vmem %s9, 16
    %v796 = vld [vmem:[%s795] sm:$0xf]
    %v797 = vld [vmem:[%s795 + $0x4] sm:$0xf]
    %v798 = vld [vmem:[%s795 + $0x8] sm:$0xf]
    %v799 = vld [vmem:[%s795 + $0xc] sm:$0xf]
    %s800 = scalar_lea.vmem %s11, 1
    %v801 = vld [vmem:[%s800] sm:$0x1]
    %s802 = scalar_lea.vmem %s13, 16
    %v803 = vld [vmem:[%s802] sm:$0xf]
    %v804 = vld [vmem:[%s802 + $0x4] sm:$0xf]
    %v805 = vld [vmem:[%s802 + $0x8] sm:$0xf]
    %v806 = vld [vmem:[%s802 + $0xc] sm:$0xf]
    %s807 = scalar_lea.vmem %s15, 1
    %v808 = vld [vmem:[%s807] sm:$0x1]
    %s809 = scalar_lea.vmem %s17, 1
    %v810 = vld [vmem:[%s809] sm:$0x1]
    %s811 = scalar_lea.vmem %s19, 1
    %v812 = vld [vmem:[%s811] sm:$0x1]
    %s813 = scalar_lea.vmem %s21, 16
    %v814 = vld [vmem:[%s813] sm:$0xf]
    %v815 = vld [vmem:[%s813 + $0x4] sm:$0xf]
    %v816 = vld [vmem:[%s813 + $0x8] sm:$0xf]
    %v817 = vld [vmem:[%s813 + $0xc] sm:$0xf]
    %s818 = scalar_lea.vmem %s23, 1
    %v819 = vld [vmem:[%s818] sm:$0x1]
    %s820 = scalar_lea.vmem %s25, 64
    %v821 = vld [vmem:[%s820] sm:$0xf]
    %v822 = vld [vmem:[%s820 + $0x4] sm:$0xf]
    %v823 = vld [vmem:[%s820 + $0x8] sm:$0xf]
    %v824 = vld [vmem:[%s820 + $0xc] sm:$0xf]
    %v825 = vld [vmem:[%s820 + $0x10] sm:$0xf]
    %v826 = vld [vmem:[%s820 + $0x14] sm:$0xf]
    %v827 = vld [vmem:[%s820 + $0x18] sm:$0xf]
    %v828 = vld [vmem:[%s820 + $0x1c] sm:$0xf]
    %v829 = vld [vmem:[%s820 + $0x20] sm:$0xf]
    %v830 = vld [vmem:[%s820 + $0x24] sm:$0xf]
    %v831 = vld [vmem:[%s820 + $0x28] sm:$0xf]
    %v832 = vld [vmem:[%s820 + $0x2c] sm:$0xf]
    %v833 = vld [vmem:[%s820 + $0x30] sm:$0xf]
    %v834 = vld [vmem:[%s820 + $0x34] sm:$0xf]
    %v835 = vld [vmem:[%s820 + $0x38] sm:$0xf]
    %v836 = vld [vmem:[%s820 + $0x3c] sm:$0xf]
    %s837 = scalar_lea.vmem %s27, 1
    %v838 = vld [vmem:[%s837] sm:$0x1]
    %v839 = vsel %vm180, %v789, 0.0
    %840 = vadd.xlane.f32.xlu0 %v839
    %v841 = vpop.xlane.xlu0 %840
    %v842 = vsel %vm180, %v790, 0.0
    %843 = vadd.xlane.f32.xlu0 %v842
    %v844 = vpop.xlane.xlu0 %843
    %v845 = vmul.f32 %v841, %v193
    %v846 = vmul.f32 %v844, %v193
    %v847 = vsub.f32 %v789, %v845
    %v848 = vsub.f32 %v790, %v846
    %v849 = vmul.f32 %v847, %v847
    %v850 = vmul.f32 %v848, %v848
    %v851 = vsel %vm180, %v849, 0.0
    %852 = vadd.xlane.f32.xlu0 %v851
    %v853 = vpop.xlane.xlu0 %852
    %v854 = vsel %vm180, %v850, 0.0
    %855 = vadd.xlane.f32.xlu0 %v854
    %v856 = vpop.xlane.xlu0 %855
    %v857 = vmul.f32 %v853, %v193
    %v858 = vmul.f32 %v856, %v193
    %v859 = vadd.f32 %v857, 1e-05
    %v860 = vadd.f32 %v858, 1e-05
    %v861 = vrsqrt.pop %v859
    %v862 = vmul.f32 %v861, %v859
    %v863 = vmul.f32 %v862, %v861
    %v864 = vmul.f32 0.5, %v863
    %v865 = vsub.f32 1.5, %v864
    %v866 = vmul.f32 %v861, %v865
    %vm867 = vweird.f32 %v859
    %vm868 = vweird.f32 %v861
    %vm869 = vmor %vm867, %vm868
    %v870 = vsel %vm869, %v861, %v866
    %v871 = vrsqrt.pop %v860
    %v872 = vmul.f32 %v871, %v860
    %v873 = vmul.f32 %v872, %v871
    %v874 = vmul.f32 0.5, %v873
    %v875 = vsub.f32 1.5, %v874
    %v876 = vmul.f32 %v871, %v875
    %vm877 = vweird.f32 %v860
    %vm878 = vweird.f32 %v871
    %vm879 = vmor %vm877, %vm878
    %v880 = vsel %vm879, %v871, %v876
    %v881 = vmul.f32 %v847, %v870
    %v882 = vmul.f32 %v848, %v880
    %v884 = vperm.slane %v792, 0
    %v886 = vmul.f32 %v881, %v884
    %v887 = vmul.f32 %v882, %v884
    %v889 = vperm.slane %v794, 0
    %v891 = vadd.f32 %v886, %v889
    %v892 = vadd.f32 %v887, %v889
    %v893 = vpack.c.bf16 %v892, %v891
    %v895 = vperm.slane %v801, 0
    %v901 = vunpack.c.l.b16 %v796
    %v902 = vunpack.c.l.b16 %v797
    %v903 = vunpack.c.l.b16 %v798
    %v904 = vunpack.c.l.b16 %v799
    %v905 = vpack.c.b16 %v902, %v901
    %v906 = vpack.c.b16 %v904, %v903
    %v910 = vsel %vm180, %v893, 0
    %912 = vmatpush.bf16.msra.mxu0 0
    %913 = vmatpush.bf16.msra.mxu0 0
    %914 = vmatpush.bf16.msra.mxu0 0
    %915 = vmatpush.bf16.msra.mxu0 0
    %916 = vmatpush.bf16.msra.mxu0 0
    %917 = vmatpush.bf16.msra.mxu0 0
    %918 = vmatpush.bf16.msra.mxu0 %v906
    %919 = vmatpush.bf16.msra.mxu0 %v905
    %920 = vmatmul.bf16.gmra.mxu0 %v910
    %v921 = vpop.f32.mrf.mxu0
    %v922 = vadd.f32 %v895, %v921
    %v923 = vpop.f32.mrf.mxu0
    %v924 = vadd.f32 %v895, %v923
    %925 = vdwg.mxu0
    %v926 = vmul.f32 %v922, 0.25
    %v927 = vmul.f32 %v924, 0.25
    %929 = vrot.lane.b32.xlu0 %v922, 96
    %v930 = vpop.permute.xlu0 %929
    %v932 = vsel %vm280, %v926, 0
    %v934 = vsel %vm280, %v930, 0
    %936 = vmatpush.xpose.msra.mxu0 0.0
    %937 = vmatpush.xpose.msra.mxu0 0.0
    %938 = vmatpush.xpose.msra.mxu0 0.0
    %939 = vmatpush.xpose.msra.mxu0 0.0
    %940 = vmatpush.xpose.msra.mxu0 0.0
    %941 = vmatpush.xpose.msra.mxu0 0.0
    %942 = vmatpush.xpose.msra.mxu0 0.0
    %943 = vmatpush.xpose.msra.mxu0 0.0
    %944 = vmatpush.xpose.msra.mxu0 0.0
    %945 = vmatpush.xpose.msra.mxu0 0.0
    %946 = vmatpush.xpose.msra.mxu0 0.0
    %947 = vmatpush.xpose.msra.mxu0 0.0
    %948 = vmatpush.xpose.msra.mxu0 0.0
    %949 = vmatpush.xpose.msra.mxu0 0.0
    %950 = vmatpush.xpose.msra.mxu0 0.0
    %951 = vmatpush.xpose.msra.mxu0 %v934
    %952 = vmatmul.f32.gmra.mxu0 %v932
    %v953 = vpop.f32.mrf.mxu0
    %v954 = vadd.f32 %v141, %v953
    %955 = vdwg.mxu0
    %957 = vrot.lane.b32.xlu0 %v924, 96
    %v958 = vpop.permute.xlu0 %957
    %v960 = vsel %vm280, %v927, 0
    %v962 = vsel %vm280, %v958, 0
    %964 = vmatpush.xpose.msra.mxu0 0.0
    %965 = vmatpush.xpose.msra.mxu0 0.0
    %966 = vmatpush.xpose.msra.mxu0 0.0
    %967 = vmatpush.xpose.msra.mxu0 0.0
    %968 = vmatpush.xpose.msra.mxu0 0.0
    %969 = vmatpush.xpose.msra.mxu0 0.0
    %970 = vmatpush.xpose.msra.mxu0 0.0
    %971 = vmatpush.xpose.msra.mxu0 0.0
    %972 = vmatpush.xpose.msra.mxu0 0.0
    %973 = vmatpush.xpose.msra.mxu0 0.0
    %974 = vmatpush.xpose.msra.mxu0 0.0
    %975 = vmatpush.xpose.msra.mxu0 0.0
    %976 = vmatpush.xpose.msra.mxu0 0.0
    %977 = vmatpush.xpose.msra.mxu0 0.0
    %978 = vmatpush.xpose.msra.mxu0 0.0
    %979 = vmatpush.xpose.msra.mxu0 %v962
    %980 = vmatmul.f32.gmra.mxu0 %v960
    %v981 = vpop.f32.mrf.mxu0
    %v982 = vadd.f32 %v141, %v981
    %983 = vdwg.mxu0
    %v984 = vsel %vm334, %v954, -inf
    %985 = vmax.xlane.f32.xlu0 %v984
    %v986 = vpop.xlane.xlu0 %985
    %v987 = vsel %vm334, %v982, -inf
    %988 = vmax.xlane.f32.xlu0 %v987
    %v989 = vpop.xlane.xlu0 %988
    %v990 = vsub.f32 %v954, %v986
    %v991 = vsub.f32 %v982, %v989
    %v992 = vmul.f32 %v990, 1.442695
    %v993 = vpow.pop %v992
    %v994 = vmul.f32 %v991, 1.442695
    %v995 = vpow.pop %v994
    %v996 = vsel %vm334, %v993, 0.0
    %997 = vadd.xlane.f32.xlu0 %v996
    %v998 = vpop.xlane.xlu0 %997
    %v999 = vsel %vm334, %v995, 0.0
    %1000 = vadd.xlane.f32.xlu0 %v999
    %v1001 = vpop.xlane.xlu0 %1000
    %v1002 = vrcp.pop %v998
    %v1003 = vrcp.pop %v1001
    %v1004 = vmul.f32 %v993, %v1002
    %v1005 = vmul.f32 %v995, %v1003
    %1006 = vrot.lane.b32.xlu0 %v922, 64
    %v1007 = vpop.permute.xlu0 %1006
    %v1010 = vsel %vm334, %v1004, 0
    %1012 = vmatpush.msra.mxu0 0.0
    %1013 = vmatpush.msra.mxu0 0.0
    %1014 = vmatpush.msra.mxu0 0.0
    %1015 = vmatpush.msra.mxu0 0.0
    %1016 = vmatpush.msra.mxu0 0.0
    %1017 = vmatpush.msra.mxu0 0.0
    %1018 = vmatpush.msra.mxu0 0.0
    %1019 = vmatpush.msra.mxu0 0.0
    %1020 = vmatpush.msra.mxu0 0.0
    %1021 = vmatpush.msra.mxu0 0.0
    %1022 = vmatpush.msra.mxu0 0.0
    %1023 = vmatpush.msra.mxu0 0.0
    %1024 = vmatpush.msra.mxu0 0.0
    %1025 = vmatpush.msra.mxu0 0.0
    %1026 = vmatpush.msra.mxu0 0.0
    %1027 = vmatpush.msra.mxu0 %v1007
    %1028 = vmatmul.f32.gmra.mxu0 %v1010
    %v1029 = vpop.f32.mrf.mxu0
    %v1030 = vadd.f32 0.0, %v1029
    %1031 = vdwg.mxu0
    %1032 = vrot.lane.b32.xlu0 %v924, 64
    %v1033 = vpop.permute.xlu0 %1032
    %v1036 = vsel %vm334, %v1005, 0
    %1038 = vmatpush.msra.mxu0 0.0
    %1039 = vmatpush.msra.mxu0 0.0
    %1040 = vmatpush.msra.mxu0 0.0
    %1041 = vmatpush.msra.mxu0 0.0
    %1042 = vmatpush.msra.mxu0 0.0
    %1043 = vmatpush.msra.mxu0 0.0
    %1044 = vmatpush.msra.mxu0 0.0
    %1045 = vmatpush.msra.mxu0 0.0
    %1046 = vmatpush.msra.mxu0 0.0
    %1047 = vmatpush.msra.mxu0 0.0
    %1048 = vmatpush.msra.mxu0 0.0
    %1049 = vmatpush.msra.mxu0 0.0
    %1050 = vmatpush.msra.mxu0 0.0
    %1051 = vmatpush.msra.mxu0 0.0
    %1052 = vmatpush.msra.mxu0 0.0
    %1053 = vmatpush.msra.mxu0 %v1033
    %1054 = vmatmul.f32.gmra.mxu0 %v1036
    %v1055 = vpop.f32.mrf.mxu0
    %v1056 = vadd.f32 0.0, %v1055
    %1057 = vdwg.mxu0
    %v1058 = vpack.c.bf16 %v1056, %v1030
    %1059 = vrot.lane.b32.xlu0 %v926, 112
    %v1060 = vpop.permute.xlu0 %1059
    %1061 = vrot.lane.b32.xlu0 %v922, 80
    %v1062 = vpop.permute.xlu0 %1061
    %v1063 = vsel %vm280, %v1060, 0
    %v1065 = vsel %vm280, %v1062, 0
    %1067 = vmatpush.xpose.msra.mxu0 0.0
    %1068 = vmatpush.xpose.msra.mxu0 0.0
    %1069 = vmatpush.xpose.msra.mxu0 0.0
    %1070 = vmatpush.xpose.msra.mxu0 0.0
    %1071 = vmatpush.xpose.msra.mxu0 0.0
    %1072 = vmatpush.xpose.msra.mxu0 0.0
    %1073 = vmatpush.xpose.msra.mxu0 0.0
    %1074 = vmatpush.xpose.msra.mxu0 0.0
    %1075 = vmatpush.xpose.msra.mxu0 0.0
    %1076 = vmatpush.xpose.msra.mxu0 0.0
    %1077 = vmatpush.xpose.msra.mxu0 0.0
    %1078 = vmatpush.xpose.msra.mxu0 0.0
    %1079 = vmatpush.xpose.msra.mxu0 0.0
    %1080 = vmatpush.xpose.msra.mxu0 0.0
    %1081 = vmatpush.xpose.msra.mxu0 0.0
    %1082 = vmatpush.xpose.msra.mxu0 %v1065
    %1083 = vmatmul.f32.gmra.mxu0 %v1063
    %v1084 = vpop.f32.mrf.mxu0
    %v1085 = vadd.f32 %v141, %v1084
    %1086 = vdwg.mxu0
    %1087 = vrot.lane.b32.xlu0 %v927, 112
    %v1088 = vpop.permute.xlu0 %1087
    %1089 = vrot.lane.b32.xlu0 %v924, 80
    %v1090 = vpop.permute.xlu0 %1089
    %v1091 = vsel %vm280, %v1088, 0
    %v1093 = vsel %vm280, %v1090, 0
    %1095 = vmatpush.xpose.msra.mxu0 0.0
    %1096 = vmatpush.xpose.msra.mxu0 0.0
    %1097 = vmatpush.xpose.msra.mxu0 0.0
    %1098 = vmatpush.xpose.msra.mxu0 0.0
    %1099 = vmatpush.xpose.msra.mxu0 0.0
    %1100 = vmatpush.xpose.msra.mxu0 0.0
    %1101 = vmatpush.xpose.msra.mxu0 0.0
    %1102 = vmatpush.xpose.msra.mxu0 0.0
    %1103 = vmatpush.xpose.msra.mxu0 0.0
    %1104 = vmatpush.xpose.msra.mxu0 0.0
    %1105 = vmatpush.xpose.msra.mxu0 0.0
    %1106 = vmatpush.xpose.msra.mxu0 0.0
    %1107 = vmatpush.xpose.msra.mxu0 0.0
    %1108 = vmatpush.xpose.msra.mxu0 0.0
    %1109 = vmatpush.xpose.msra.mxu0 0.0
    %1110 = vmatpush.xpose.msra.mxu0 %v1093
    %1111 = vmatmul.f32.gmra.mxu0 %v1091
    %v1112 = vpop.f32.mrf.mxu0
    %v1113 = vadd.f32 %v141, %v1112
    %1114 = vdwg.mxu0
    %v1115 = vsel %vm334, %v1085, -inf
    %1116 = vmax.xlane.f32.xlu0 %v1115
    %v1117 = vpop.xlane.xlu0 %1116
    %v1118 = vsel %vm334, %v1113, -inf
    %1119 = vmax.xlane.f32.xlu0 %v1118
    %v1120 = vpop.xlane.xlu0 %1119
    %v1121 = vsub.f32 %v1085, %v1117
    %v1122 = vsub.f32 %v1113, %v1120
    %v1123 = vmul.f32 %v1121, 1.442695
    %v1124 = vpow.pop %v1123
    %v1125 = vmul.f32 %v1122, 1.442695
    %v1126 = vpow.pop %v1125
    %v1127 = vsel %vm334, %v1124, 0.0
    %1128 = vadd.xlane.f32.xlu0 %v1127
    %v1129 = vpop.xlane.xlu0 %1128
    %v1130 = vsel %vm334, %v1126, 0.0
    %1131 = vadd.xlane.f32.xlu0 %v1130
    %v1132 = vpop.xlane.xlu0 %1131
    %v1133 = vrcp.pop %v1129
    %v1134 = vrcp.pop %v1132
    %v1135 = vmul.f32 %v1124, %v1133
    %v1136 = vmul.f32 %v1126, %v1134
    %1137 = vrot.lane.b32.xlu0 %v922, 48
    %v1138 = vpop.permute.xlu0 %1137
    %v1141 = vsel %vm334, %v1135, 0
    %1143 = vmatpush.msra.mxu0 0.0
    %1144 = vmatpush.msra.mxu0 0.0
    %1145 = vmatpush.msra.mxu0 0.0
    %1146 = vmatpush.msra.mxu0 0.0
    %1147 = vmatpush.msra.mxu0 0.0
    %1148 = vmatpush.msra.mxu0 0.0
    %1149 = vmatpush.msra.mxu0 0.0
    %1150 = vmatpush.msra.mxu0 0.0
    %1151 = vmatpush.msra.mxu0 0.0
    %1152 = vmatpush.msra.mxu0 0.0
    %1153 = vmatpush.msra.mxu0 0.0
    %1154 = vmatpush.msra.mxu0 0.0
    %1155 = vmatpush.msra.mxu0 0.0
    %1156 = vmatpush.msra.mxu0 0.0
    %1157 = vmatpush.msra.mxu0 0.0
    %1158 = vmatpush.msra.mxu0 %v1138
    %1159 = vmatmul.f32.gmra.mxu0 %v1141
    %v1160 = vpop.f32.mrf.mxu0
    %v1161 = vadd.f32 0.0, %v1160
    %1162 = vdwg.mxu0
    %1163 = vrot.lane.b32.xlu0 %v924, 48
    %v1164 = vpop.permute.xlu0 %1163
    %v1167 = vsel %vm334, %v1136, 0
    %1169 = vmatpush.msra.mxu0 0.0
    %1170 = vmatpush.msra.mxu0 0.0
    %1171 = vmatpush.msra.mxu0 0.0
    %1172 = vmatpush.msra.mxu0 0.0
    %1173 = vmatpush.msra.mxu0 0.0
    %1174 = vmatpush.msra.mxu0 0.0
    %1175 = vmatpush.msra.mxu0 0.0
    %1176 = vmatpush.msra.mxu0 0.0
    %1177 = vmatpush.msra.mxu0 0.0
    %1178 = vmatpush.msra.mxu0 0.0
    %1179 = vmatpush.msra.mxu0 0.0
    %1180 = vmatpush.msra.mxu0 0.0
    %1181 = vmatpush.msra.mxu0 0.0
    %1182 = vmatpush.msra.mxu0 0.0
    %1183 = vmatpush.msra.mxu0 0.0
    %1184 = vmatpush.msra.mxu0 %v1164
    %1185 = vmatmul.f32.gmra.mxu0 %v1167
    %v1186 = vpop.f32.mrf.mxu0
    %v1187 = vadd.f32 0.0, %v1186
    %1188 = vdwg.mxu0
    %v1189 = vpack.c.bf16 %v1187, %v1161
    %v1192 = vunpack.c.l.b16 %v805
    %v1193 = vunpack.c.l.b16 %v806
    %v1194 = vpack.c.b16 %v1193, %v1192
    %v1197 = vsel %vm280, %v1189, 0
    %1199 = vmatpush.bf16.msra.mxu0 0
    %1200 = vmatpush.bf16.msra.mxu0 0
    %1201 = vmatpush.bf16.msra.mxu0 0
    %1202 = vmatpush.bf16.msra.mxu0 0
    %1203 = vmatpush.bf16.msra.mxu0 0
    %1204 = vmatpush.bf16.msra.mxu0 0
    %1205 = vmatpush.bf16.msra.mxu0 0
    %1206 = vmatpush.bf16.msra.mxu0 %v1194
    %1207 = vmatmul.bf16.gmra.mxu0 %v1197
    %v1208 = vpop.f32.mrf.mxu0
    %v1209 = vadd.f32 0.0, %v1208
    %v1210 = vpop.f32.mrf.mxu0
    %v1211 = vadd.f32 0.0, %v1210
    %1212 = vdwg.mxu0
    %v1215 = vunpack.c.l.b16 %v803
    %v1216 = vunpack.c.l.b16 %v804
    %v1217 = vpack.c.b16 %v1216, %v1215
    %v1220 = vsel %vm280, %v1058, 0
    %1222 = vmatpush.bf16.msra.mxu0 0
    %1223 = vmatpush.bf16.msra.mxu0 0
    %1224 = vmatpush.bf16.msra.mxu0 0
    %1225 = vmatpush.bf16.msra.mxu0 0
    %1226 = vmatpush.bf16.msra.mxu0 0
    %1227 = vmatpush.bf16.msra.mxu0 0
    %1228 = vmatpush.bf16.msra.mxu0 0
    %1229 = vmatpush.bf16.msra.mxu0 %v1217
    %1230 = vmatmul.bf16.gmra.mxu0 %v1220
    %v1231 = vpop.f32.mrf.mxu0
    %v1232 = vadd.f32 %v1209, %v1231
    %v1233 = vpop.f32.mrf.mxu0
    %v1234 = vadd.f32 %v1211, %v1233
    %1235 = vdwg.mxu0
    %v1236 = vadd.f32 %v789, %v1232
    %v1237 = vadd.f32 %v790, %v1234
    %v1239 = vperm.slane %v808, 0
    %v1241 = vadd.f32 %v1236, %v1239
    %v1242 = vadd.f32 %v1237, %v1239
    %v1243 = vsel %vm180, %v1241, 0.0
    %1244 = vadd.xlane.f32.xlu0 %v1243
    %v1245 = vpop.xlane.xlu0 %1244
    %v1246 = vsel %vm180, %v1242, 0.0
    %1247 = vadd.xlane.f32.xlu0 %v1246
    %v1248 = vpop.xlane.xlu0 %1247
    %v1249 = vmul.f32 %v1245, %v193
    %v1250 = vmul.f32 %v1248, %v193
    %v1251 = vsub.f32 %v1241, %v1249
    %v1252 = vsub.f32 %v1242, %v1250
    %v1253 = vmul.f32 %v1251, %v1251
    %v1254 = vmul.f32 %v1252, %v1252
    %v1255 = vsel %vm180, %v1253, 0.0
    %1256 = vadd.xlane.f32.xlu0 %v1255
    %v1257 = vpop.xlane.xlu0 %1256
    %v1258 = vsel %vm180, %v1254, 0.0
    %1259 = vadd.xlane.f32.xlu0 %v1258
    %v1260 = vpop.xlane.xlu0 %1259
    %v1261 = vmul.f32 %v1257, %v193
    %v1262 = vmul.f32 %v1260, %v193
    %v1263 = vadd.f32 %v1261, 1e-05
    %v1264 = vadd.f32 %v1262, 1e-05
    %v1265 = vrsqrt.pop %v1263
    %v1266 = vmul.f32 %v1265, %v1263
    %v1267 = vmul.f32 %v1266, %v1265
    %v1268 = vmul.f32 0.5, %v1267
    %v1269 = vsub.f32 1.5, %v1268
    %v1270 = vmul.f32 %v1265, %v1269
    %vm1271 = vweird.f32 %v1263
    %vm1272 = vweird.f32 %v1265
    %vm1273 = vmor %vm1271, %vm1272
    %v1274 = vsel %vm1273, %v1265, %v1270
    %v1275 = vrsqrt.pop %v1264
    %v1276 = vmul.f32 %v1275, %v1264
    %v1277 = vmul.f32 %v1276, %v1275
    %v1278 = vmul.f32 0.5, %v1277
    %v1279 = vsub.f32 1.5, %v1278
    %v1280 = vmul.f32 %v1275, %v1279
    %vm1281 = vweird.f32 %v1264
    %vm1282 = vweird.f32 %v1275
    %vm1283 = vmor %vm1281, %vm1282
    %v1284 = vsel %vm1283, %v1275, %v1280
    %v1285 = vmul.f32 %v1251, %v1274
    %v1286 = vmul.f32 %v1252, %v1284
    %v1288 = vperm.slane %v810, 0
    %v1290 = vmul.f32 %v1285, %v1288
    %v1291 = vmul.f32 %v1286, %v1288
    %v1293 = vperm.slane %v812, 0
    %v1295 = vadd.f32 %v1290, %v1293
    %v1296 = vadd.f32 %v1291, %v1293
    %v1297 = vpack.c.bf16 %v1296, %v1295
    %v1299 = vperm.slane %v819, 0
    %v1305 = vunpack.c.l.b16 %v814
    %v1306 = vunpack.c.l.b16 %v815
    %v1307 = vunpack.c.l.b16 %v816
    %v1308 = vunpack.c.l.b16 %v817
    %v1309 = vpack.c.b16 %v1306, %v1305
    %v1310 = vpack.c.b16 %v1308, %v1307
    %v1314 = vsel %vm180, %v1297, 0
    %1316 = vmatpush.bf16.msra.mxu0 0
    %1317 = vmatpush.bf16.msra.mxu0 0
    %1318 = vmatpush.bf16.msra.mxu0 0
    %1319 = vmatpush.bf16.msra.mxu0 0
    %1320 = vmatpush.bf16.msra.mxu0 0
    %1321 = vmatpush.bf16.msra.mxu0 0
    %1322 = vmatpush.bf16.msra.mxu0 %v1310
    %1323 = vmatpush.bf16.msra.mxu0 %v1309
    %1324 = vmatmul.bf16.gmra.mxu0 %v1314
    %v1325 = vpop.f32.mrf.mxu0
    %v1326 = vadd.f32 %v1299, %v1325
    %v1327 = vpop.f32.mrf.mxu0
    %v1328 = vadd.f32 %v1299, %v1327
    %1329 = vdwg.mxu0
    %v1330 = vmul.f32 %v1326, 1.702
    %v1331 = vmul.f32 %v1328, 1.702
    %v1332 = vxor.u32 %v1330, 2147483648
    %v1333 = vxor.u32 %v1331, 2147483648
    %v1334 = vmul.f32 %v1332, 1.442695
    %v1335 = vpow.pop %v1334
    %v1336 = vmul.f32 %v1333, 1.442695
    %v1337 = vpow.pop %v1336
    %v1338 = vadd.f32 %v1335, 1.0
    %v1339 = vadd.f32 %v1337, 1.0
    %v1340 = vrcp.pop %v1338
    %v1341 = vmul.f32 %v1338, %v1340
    %v1342 = vsub.f32 1.0, %v1341
    %v1343 = vmul.f32 %v1340, %v1342
    %v1344 = vadd.f32 %v1340, %v1343
    %vm1345 = vweird.f32 %v1338
    %vm1346 = vweird.f32 %v1340
    %vm1347 = vmor %vm1345, %vm1346
    %v1348 = vsel %vm1347, %v1340, %v1344
    %v1349 = vand.u32 2147483647, %v1338
    %vm1350 = vcmp.eq.f32.partialorder %v1349, 8.507059e+37
    %v1351 = vand.u32 %v1338, 2147483648
    %v1352 = vor.u32 1.1754944e-38, %v1351
    %v1353 = vsel %vm1350, %v1352, %v1348
    %v1354 = vmul.f32 1.0, %v1353
    %v1355 = vrcp.pop %v1339
    %v1356 = vmul.f32 %v1339, %v1355
    %v1357 = vsub.f32 1.0, %v1356
    %v1358 = vmul.f32 %v1355, %v1357
    %v1359 = vadd.f32 %v1355, %v1358
    %vm1360 = vweird.f32 %v1339
    %vm1361 = vweird.f32 %v1355
    %vm1362 = vmor %vm1360, %vm1361
    %v1363 = vsel %vm1362, %v1355, %v1359
    %v1364 = vand.u32 2147483647, %v1339
    %vm1365 = vcmp.eq.f32.partialorder %v1364, 8.507059e+37
    %v1366 = vand.u32 %v1339, 2147483648
    %v1367 = vor.u32 1.1754944e-38, %v1366
    %v1368 = vsel %vm1365, %v1367, %v1363
    %v1369 = vmul.f32 1.0, %v1368
    %v1370 = vmul.f32 %v1326, %v1354
    %v1371 = vmul.f32 %v1328, %v1369
    %v1372 = vpack.c.bf16 %v1371, %v1370
    %v1374 = vperm.slane %v838, 0
    %v1392 = vunpack.c.l.b16 %v821
    %v1393 = vunpack.c.l.b16 %v822
    %v1394 = vunpack.c.l.b16 %v823
    %v1395 = vunpack.c.l.b16 %v824
    %v1396 = vunpack.c.l.b16 %v825
    %v1397 = vunpack.c.l.b16 %v826
    %v1398 = vunpack.c.l.b16 %v827
    %v1399 = vunpack.c.l.b16 %v828
    %v1400 = vunpack.c.l.b16 %v829
    %v1401 = vunpack.c.l.b16 %v830
    %v1402 = vunpack.c.l.b16 %v831
    %v1403 = vunpack.c.l.b16 %v832
    %v1404 = vunpack.c.l.b16 %v833
    %v1405 = vunpack.c.l.b16 %v834
    %v1406 = vunpack.c.l.b16 %v835
    %v1407 = vunpack.c.l.b16 %v836
    %v1408 = vpack.c.b16 %v1393, %v1392
    %v1409 = vpack.c.b16 %v1395, %v1394
    %v1410 = vpack.c.b16 %v1397, %v1396
    %v1411 = vpack.c.b16 %v1399, %v1398
    %v1412 = vpack.c.b16 %v1401, %v1400
    %v1413 = vpack.c.b16 %v1403, %v1402
    %v1414 = vpack.c.b16 %v1405, %v1404
    %v1415 = vpack.c.b16 %v1407, %v1406
    %1424 = vmatpush.bf16.msra.mxu0 %v1415
    %1425 = vmatpush.bf16.msra.mxu0 %v1414
    %1426 = vmatpush.bf16.msra.mxu0 %v1413
    %1427 = vmatpush.bf16.msra.mxu0 %v1412
    %1428 = vmatpush.bf16.msra.mxu0 %v1411
    %1429 = vmatpush.bf16.msra.mxu0 %v1410
    %1430 = vmatpush.bf16.msra.mxu0 %v1409
    %1431 = vmatpush.bf16.msra.mxu0 %v1408
    %1432 = vmatmul.bf16.gmra.mxu0 %v1372
    %v1433 = vpop.f32.mrf.mxu0
    %v1434 = vadd.f32 %v1374, %v1433
    %v1435 = vpop.f32.mrf.mxu0
    %v1436 = vadd.f32 %v1374, %v1435
    %1437 = vdwg.mxu0
    %v1438 = vadd.f32 %v1241, %v1434
    %v1439 = vadd.f32 %v1242, %v1436
    %v1440 = vld [vmem:[%s3] sm:$0xff]
    %v1441 = vld [vmem:[%s3 + $0x8] sm:$0xff]
    %v1442 = vld [vmem:[%s29] sm:$0x1]
    %v1443 = vld [vmem:[%s31] sm:$0x1]
    %v1444 = vld [vmem:[%s33] sm:$0xff]
    %v1445 = vld [vmem:[%s33 + $0x8] sm:$0xff]
    %v1446 = vld [vmem:[%s33 + $0x10] sm:$0xff]
    %v1447 = vld [vmem:[%s33 + $0x18] sm:$0xff]
    %v1448 = vld [vmem:[%s33 + $0x20] sm:$0xff]
    %v1449 = vld [vmem:[%s33 + $0x28] sm:$0xff]
    %v1450 = vld [vmem:[%s33 + $0x30] sm:$0xff]
    %v1451 = vld [vmem:[%s33 + $0x38] sm:$0xff]
    %v1452 = vld [vmem:[%s35] sm:$0x3]
    %v1453 = vld [vmem:[%s37] sm:$0xf]
    %v1454 = vld [vmem:[%s37 + $0x4] sm:$0xf]
    %v1455 = vld [vmem:[%s37 + $0x8] sm:$0xf]
    %v1456 = vld [vmem:[%s37 + $0xc] sm:$0xf]
    %v1457 = vld [vmem:[%s37 + $0x10] sm:$0xf]
    %v1458 = vld [vmem:[%s37 + $0x14] sm:$0xf]
    %v1459 = vld [vmem:[%s37 + $0x18] sm:$0xf]
    %v1460 = vld [vmem:[%s37 + $0x1c] sm:$0xf]
    %v1461 = vld [vmem:[%s39] sm:$0x1]
    %v1462 = vld [vmem:[%s41] sm:$0x1]
    %v1463 = vld [vmem:[%s43] sm:$0x1]
    %v1464 = vld [vmem:[%s45] sm:$0xff]
    %v1465 = vld [vmem:[%s45 + $0x8] sm:$0xff]
    %v1466 = vld [vmem:[%s45 + $0x10] sm:$0xff]
    %v1467 = vld [vmem:[%s45 + $0x18] sm:$0xff]
    %v1468 = vld [vmem:[%s45 + $0x20] sm:$0xff]
    %v1469 = vld [vmem:[%s45 + $0x28] sm:$0xff]
    %v1470 = vld [vmem:[%s45 + $0x30] sm:$0xff]
    %v1471 = vld [vmem:[%s45 + $0x38] sm:$0xff]
    %v1472 = vld [vmem:[%s47] sm:$0x3]
    %v1473 = vld [vmem:[%s49] sm:$0xf]
    %v1474 = vld [vmem:[%s49 + $0x4] sm:$0xf]
    %v1475 = vld [vmem:[%s49 + $0x8] sm:$0xf]
    %v1476 = vld [vmem:[%s49 + $0xc] sm:$0xf]
    %v1477 = vld [vmem:[%s49 + $0x10] sm:$0xf]
    %v1478 = vld [vmem:[%s49 + $0x14] sm:$0xf]
    %v1479 = vld [vmem:[%s49 + $0x18] sm:$0xf]
    %v1480 = vld [vmem:[%s49 + $0x1c] sm:$0xf]
    %v1481 = vld [vmem:[%s49 + $0x20] sm:$0xf]
    %v1482 = vld [vmem:[%s49 + $0x24] sm:$0xf]
    %v1483 = vld [vmem:[%s49 + $0x28] sm:$0xf]
    %v1484 = vld [vmem:[%s49 + $0x2c] sm:$0xf]
    %v1485 = vld [vmem:[%s49 + $0x30] sm:$0xf]
    %v1486 = vld [vmem:[%s49 + $0x34] sm:$0xf]
    %v1487 = vld [vmem:[%s49 + $0x38] sm:$0xf]
    %v1488 = vld [vmem:[%s49 + $0x3c] sm:$0xf]
    %v1489 = vld [vmem:[%s49 + $0x40] sm:$0xf]
    %v1490 = vld [vmem:[%s49 + $0x44] sm:$0xf]
    %v1491 = vld [vmem:[%s49 + $0x48] sm:$0xf]
    %v1492 = vld [vmem:[%s49 + $0x4c] sm:$0xf]
    %v1493 = vld [vmem:[%s49 + $0x50] sm:$0xf]
    %v1494 = vld [vmem:[%s49 + $0x54] sm:$0xf]
    %v1495 = vld [vmem:[%s49 + $0x58] sm:$0xf]
    %v1496 = vld [vmem:[%s49 + $0x5c] sm:$0xf]
    %v1497 = vld [vmem:[%s49 + $0x60] sm:$0xf]
    %v1498 = vld [vmem:[%s49 + $0x64] sm:$0xf]
    %v1499 = vld [vmem:[%s49 + $0x68] sm:$0xf]
    %v1500 = vld [vmem:[%s49 + $0x6c] sm:$0xf]
    %v1501 = vld [vmem:[%s49 + $0x70] sm:$0xf]
    %v1502 = vld [vmem:[%s49 + $0x74] sm:$0xf]
    %v1503 = vld [vmem:[%s49 + $0x78] sm:$0xf]
    %v1504 = vld [vmem:[%s49 + $0x7c] sm:$0xf]
    %v1505 = vld [vmem:[%s51] sm:$0x1]
    %vm1506 = vcmask 523264
    %v1507 = vsel %vm1506, %v1440, 0.0
    %1508 = vadd.xlane.f32.xlu0 %v1507
    %v1509 = vpop.xlane.xlu0 %1508
    %v1510 = vsel %vm1506, %v1441, 0.0
    %1511 = vadd.xlane.f32.xlu0 %v1510
    %v1512 = vpop.xlane.xlu0 %1511
    %v1513 = vrcp.pop 64.0
    %v1514 = vmul.f32 64.0, %v1513
    %v1515 = vsub.f32 1.0, %v1514
    %v1516 = vmul.f32 %v1513, %v1515
    %v1517 = vadd.f32 %v1513, %v1516
    %vm1518 = vweird.f32 %v1513
    %v1519 = vsel %vm1518, %v1513, %v1517
    %v1520 = vmul.f32 %v1509, %v1519
    %v1521 = vmul.f32 %v1512, %v1519
    %v1522 = vsub.f32 %v1440, %v1520
    %v1523 = vsub.f32 %v1441, %v1521
    %v1524 = vmul.f32 %v1522, %v1522
    %v1525 = vmul.f32 %v1523, %v1523
    %v1526 = vsel %vm1506, %v1524, 0.0
    %1527 = vadd.xlane.f32.xlu0 %v1526
    %v1528 = vpop.xlane.xlu0 %1527
    %v1529 = vsel %vm1506, %v1525, 0.0
    %1530 = vadd.xlane.f32.xlu0 %v1529
    %v1531 = vpop.xlane.xlu0 %1530
    %v1532 = vmul.f32 %v1528, %v1519
    %v1533 = vmul.f32 %v1531, %v1519
    %v1534 = vadd.f32 %v1532, 1e-05
    %v1535 = vadd.f32 %v1533, 1e-05
    %v1536 = vrsqrt.pop %v1534
    %v1537 = vmul.f32 %v1536, %v1534
    %v1538 = vmul.f32 %v1537, %v1536
    %v1539 = vmul.f32 0.5, %v1538
    %v1540 = vsub.f32 1.5, %v1539
    %v1541 = vmul.f32 %v1536, %v1540
    %vm1542 = vweird.f32 %v1534
    %vm1543 = vweird.f32 %v1536
    %vm1544 = vmor %vm1542, %vm1543
    %v1545 = vsel %vm1544, %v1536, %v1541
    %v1546 = vrsqrt.pop %v1535
    %v1547 = vmul.f32 %v1546, %v1535
    %v1548 = vmul.f32 %v1547, %v1546
    %v1549 = vmul.f32 0.5, %v1548
    %v1550 = vsub.f32 1.5, %v1549
    %v1551 = vmul.f32 %v1546, %v1550
    %vm1552 = vweird.f32 %v1535
    %vm1553 = vweird.f32 %v1546
    %vm1554 = vmor %vm1552, %vm1553
    %v1555 = vsel %vm1554, %v1546, %v1551
    %v1556 = vmul.f32 %v1522, %v1545
    %v1557 = vmul.f32 %v1523, %v1555
    %v1559 = vperm.slane %v1442, 0
    %v1561 = vmul.f32 %v1556, %v1559
    %v1562 = vmul.f32 %v1557, %v1559
    %v1564 = vperm.slane %v1443, 0
    %v1566 = vadd.f32 %v1561, %v1564
    %v1567 = vadd.f32 %v1562, %v1564
    %v1568 = vpack.c.bf16 %v1567, %v1566
    %v1570 = vperm.slane %v1452, 0
    %v1571 = vperm.slane %v1452, 1
    %v1582 = vunpack.c.l.b16 %v1444
    %v1583 = vunpack.c.h.b16 %v1444
    %v1584 = vunpack.c.l.b16 %v1445
    %v1585 = vunpack.c.h.b16 %v1445
    %v1586 = vunpack.c.l.b16 %v1446
    %v1587 = vunpack.c.h.b16 %v1446
    %v1588 = vunpack.c.l.b16 %v1447
    %v1589 = vunpack.c.h.b16 %v1447
    %v1590 = vunpack.c.l.b16 %v1448
    %v1591 = vunpack.c.h.b16 %v1448
    %v1592 = vunpack.c.l.b16 %v1449
    %v1593 = vunpack.c.h.b16 %v1449
    %v1594 = vunpack.c.l.b16 %v1450
    %v1595 = vunpack.c.h.b16 %v1450
    %v1596 = vunpack.c.l.b16 %v1451
    %v1597 = vunpack.c.h.b16 %v1451
    %v1598 = vpack.c.b16 %v1584, %v1582
    %v1599 = vpack.c.b16 %v1585, %v1583
    %v1600 = vpack.c.b16 %v1588, %v1586
    %v1601 = vpack.c.b16 %v1589, %v1587
    %v1602 = vpack.c.b16 %v1592, %v1590
    %v1603 = vpack.c.b16 %v1593, %v1591
    %v1604 = vpack.c.b16 %v1596, %v1594
    %v1605 = vpack.c.b16 %v1597, %v1595
    %v1615 = vsel %vm1506, %v1568, 0
    %1617 = vmatpush.bf16.msra.mxu0 0
    %1618 = vmatpush.bf16.msra.mxu0 0
    %1619 = vmatpush.bf16.msra.mxu0 0
    %1620 = vmatpush.bf16.msra.mxu0 0
    %1621 = vmatpush.bf16.msra.mxu0 %v1604
    %1622 = vmatpush.bf16.msra.mxu0 %v1602
    %1623 = vmatpush.bf16.msra.mxu0 %v1600
    %1624 = vmatpush.bf16.msra.mxu0 %v1598
    %1625 = vmatmul.bf16.gmra.mxu0 %v1615
    %v1626 = vpop.f32.mrf.mxu0
    %v1627 = vadd.f32 %v1570, %v1626
    %v1628 = vpop.f32.mrf.mxu0
    %v1629 = vadd.f32 %v1570, %v1628
    %1630 = vdwg.mxu0
    %1631 = vmatpush.bf16.msra.mxu0 0
    %1632 = vmatpush.bf16.msra.mxu0 0
    %1633 = vmatpush.bf16.msra.mxu0 0
    %1634 = vmatpush.bf16.msra.mxu0 0
    %1635 = vmatpush.bf16.msra.mxu0 %v1605
    %1636 = vmatpush.bf16.msra.mxu0 %v1603
    %1637 = vmatpush.bf16.msra.mxu0 %v1601
    %1638 = vmatpush.bf16.msra.mxu0 %v1599
    %1639 = vmatmul.bf16.gmra.mxu0 %v1615
    %v1640 = vpop.f32.mrf.mxu0
    %v1641 = vadd.f32 %v1571, %v1640
    %v1642 = vpop.f32.mrf.mxu0
    %v1643 = vadd.f32 %v1571, %v1642
    %1644 = vdwg.mxu0
    %v1645 = vmul.f32 %v1627, 0.25
    %v1646 = vmul.f32 %v1629, 0.25
    %1648 = vrot.lane.b32.xlu0 %v1627, 64
    %v1649 = vpop.permute.xlu0 %1648
    %v1651 = vsel %vm280, %v1645, 0
    %v1653 = vsel %vm280, %v1649, 0
    %1655 = vmatpush.xpose.msra.mxu0 0.0
    %1656 = vmatpush.xpose.msra.mxu0 0.0
    %1657 = vmatpush.xpose.msra.mxu0 0.0
    %1658 = vmatpush.xpose.msra.mxu0 0.0
    %1659 = vmatpush.xpose.msra.mxu0 0.0
    %1660 = vmatpush.xpose.msra.mxu0 0.0
    %1661 = vmatpush.xpose.msra.mxu0 0.0
    %1662 = vmatpush.xpose.msra.mxu0 0.0
    %1663 = vmatpush.xpose.msra.mxu0 0.0
    %1664 = vmatpush.xpose.msra.mxu0 0.0
    %1665 = vmatpush.xpose.msra.mxu0 0.0
    %1666 = vmatpush.xpose.msra.mxu0 0.0
    %1667 = vmatpush.xpose.msra.mxu0 0.0
    %1668 = vmatpush.xpose.msra.mxu0 0.0
    %1669 = vmatpush.xpose.msra.mxu0 0.0
    %1670 = vmatpush.xpose.msra.mxu0 %v1653
    %1671 = vmatmul.f32.gmra.mxu0 %v1651
    %v1672 = vpop.f32.mrf.mxu0
    %v1673 = vadd.f32 %v141, %v1672
    %1674 = vdwg.mxu0
    %1676 = vrot.lane.b32.xlu0 %v1629, 64
    %v1677 = vpop.permute.xlu0 %1676
    %v1679 = vsel %vm280, %v1646, 0
    %v1681 = vsel %vm280, %v1677, 0
    %1683 = vmatpush.xpose.msra.mxu0 0.0
    %1684 = vmatpush.xpose.msra.mxu0 0.0
    %1685 = vmatpush.xpose.msra.mxu0 0.0
    %1686 = vmatpush.xpose.msra.mxu0 0.0
    %1687 = vmatpush.xpose.msra.mxu0 0.0
    %1688 = vmatpush.xpose.msra.mxu0 0.0
    %1689 = vmatpush.xpose.msra.mxu0 0.0
    %1690 = vmatpush.xpose.msra.mxu0 0.0
    %1691 = vmatpush.xpose.msra.mxu0 0.0
    %1692 = vmatpush.xpose.msra.mxu0 0.0
    %1693 = vmatpush.xpose.msra.mxu0 0.0
    %1694 = vmatpush.xpose.msra.mxu0 0.0
    %1695 = vmatpush.xpose.msra.mxu0 0.0
    %1696 = vmatpush.xpose.msra.mxu0 0.0
    %1697 = vmatpush.xpose.msra.mxu0 0.0
    %1698 = vmatpush.xpose.msra.mxu0 %v1681
    %1699 = vmatmul.f32.gmra.mxu0 %v1679
    %v1700 = vpop.f32.mrf.mxu0
    %v1701 = vadd.f32 %v141, %v1700
    %1702 = vdwg.mxu0
    %v1703 = vsel %vm334, %v1673, -inf
    %1704 = vmax.xlane.f32.xlu0 %v1703
    %v1705 = vpop.xlane.xlu0 %1704
    %v1706 = vsel %vm334, %v1701, -inf
    %1707 = vmax.xlane.f32.xlu0 %v1706
    %v1708 = vpop.xlane.xlu0 %1707
    %v1709 = vsub.f32 %v1673, %v1705
    %v1710 = vsub.f32 %v1701, %v1708
    %v1711 = vmul.f32 %v1709, 1.442695
    %v1712 = vpow.pop %v1711
    %v1713 = vmul.f32 %v1710, 1.442695
    %v1714 = vpow.pop %v1713
    %v1715 = vsel %vm334, %v1712, 0.0
    %1716 = vadd.xlane.f32.xlu0 %v1715
    %v1717 = vpop.xlane.xlu0 %1716
    %v1718 = vsel %vm334, %v1714, 0.0
    %1719 = vadd.xlane.f32.xlu0 %v1718
    %v1720 = vpop.xlane.xlu0 %1719
    %v1721 = vrcp.pop %v1717
    %v1722 = vrcp.pop %v1720
    %v1723 = vmul.f32 %v1712, %v1721
    %v1724 = vmul.f32 %v1714, %v1722
    %v1726 = vsel %vm334, %v1723, 0
    %1728 = vmatpush.msra.mxu0 0.0
    %1729 = vmatpush.msra.mxu0 0.0
    %1730 = vmatpush.msra.mxu0 0.0
    %1731 = vmatpush.msra.mxu0 0.0
    %1732 = vmatpush.msra.mxu0 0.0
    %1733 = vmatpush.msra.mxu0 0.0
    %1734 = vmatpush.msra.mxu0 0.0
    %1735 = vmatpush.msra.mxu0 0.0
    %1736 = vmatpush.msra.mxu0 0.0
    %1737 = vmatpush.msra.mxu0 0.0
    %1738 = vmatpush.msra.mxu0 0.0
    %1739 = vmatpush.msra.mxu0 0.0
    %1740 = vmatpush.msra.mxu0 0.0
    %1741 = vmatpush.msra.mxu0 0.0
    %1742 = vmatpush.msra.mxu0 0.0
    %1743 = vmatpush.msra.mxu0 %v1641
    %1744 = vmatmul.f32.gmra.mxu0 %v1726
    %v1745 = vpop.f32.mrf.mxu0
    %v1746 = vadd.f32 0.0, %v1745
    %1747 = vdwg.mxu0
    %v1749 = vsel %vm334, %v1724, 0
    %1751 = vmatpush.msra.mxu0 0.0
    %1752 = vmatpush.msra.mxu0 0.0
    %1753 = vmatpush.msra.mxu0 0.0
    %1754 = vmatpush.msra.mxu0 0.0
    %1755 = vmatpush.msra.mxu0 0.0
    %1756 = vmatpush.msra.mxu0 0.0
    %1757 = vmatpush.msra.mxu0 0.0
    %1758 = vmatpush.msra.mxu0 0.0
    %1759 = vmatpush.msra.mxu0 0.0
    %1760 = vmatpush.msra.mxu0 0.0
    %1761 = vmatpush.msra.mxu0 0.0
    %1762 = vmatpush.msra.mxu0 0.0
    %1763 = vmatpush.msra.mxu0 0.0
    %1764 = vmatpush.msra.mxu0 0.0
    %1765 = vmatpush.msra.mxu0 0.0
    %1766 = vmatpush.msra.mxu0 %v1643
    %1767 = vmatmul.f32.gmra.mxu0 %v1749
    %v1768 = vpop.f32.mrf.mxu0
    %v1769 = vadd.f32 0.0, %v1768
    %1770 = vdwg.mxu0
    %v1771 = vpack.c.bf16 %v1769, %v1746
    %1772 = vrot.lane.b32.xlu0 %v1645, 112
    %v1773 = vpop.permute.xlu0 %1772
    %1774 = vrot.lane.b32.xlu0 %v1627, 48
    %v1775 = vpop.permute.xlu0 %1774
    %v1776 = vsel %vm280, %v1773, 0
    %v1778 = vsel %vm280, %v1775, 0
    %1780 = vmatpush.xpose.msra.mxu0 0.0
    %1781 = vmatpush.xpose.msra.mxu0 0.0
    %1782 = vmatpush.xpose.msra.mxu0 0.0
    %1783 = vmatpush.xpose.msra.mxu0 0.0
    %1784 = vmatpush.xpose.msra.mxu0 0.0
    %1785 = vmatpush.xpose.msra.mxu0 0.0
    %1786 = vmatpush.xpose.msra.mxu0 0.0
    %1787 = vmatpush.xpose.msra.mxu0 0.0
    %1788 = vmatpush.xpose.msra.mxu0 0.0
    %1789 = vmatpush.xpose.msra.mxu0 0.0
    %1790 = vmatpush.xpose.msra.mxu0 0.0
    %1791 = vmatpush.xpose.msra.mxu0 0.0
    %1792 = vmatpush.xpose.msra.mxu0 0.0
    %1793 = vmatpush.xpose.msra.mxu0 0.0
    %1794 = vmatpush.xpose.msra.mxu0 0.0
    %1795 = vmatpush.xpose.msra.mxu0 %v1778
    %1796 = vmatmul.f32.gmra.mxu0 %v1776
    %v1797 = vpop.f32.mrf.mxu0
    %v1798 = vadd.f32 %v141, %v1797
    %1799 = vdwg.mxu0
    %1800 = vrot.lane.b32.xlu0 %v1646, 112
    %v1801 = vpop.permute.xlu0 %1800
    %1802 = vrot.lane.b32.xlu0 %v1629, 48
    %v1803 = vpop.permute.xlu0 %1802
    %v1804 = vsel %vm280, %v1801, 0
    %v1806 = vsel %vm280, %v1803, 0
    %1808 = vmatpush.xpose.msra.mxu0 0.0
    %1809 = vmatpush.xpose.msra.mxu0 0.0
    %1810 = vmatpush.xpose.msra.mxu0 0.0
    %1811 = vmatpush.xpose.msra.mxu0 0.0
    %1812 = vmatpush.xpose.msra.mxu0 0.0
    %1813 = vmatpush.xpose.msra.mxu0 0.0
    %1814 = vmatpush.xpose.msra.mxu0 0.0
    %1815 = vmatpush.xpose.msra.mxu0 0.0
    %1816 = vmatpush.xpose.msra.mxu0 0.0
    %1817 = vmatpush.xpose.msra.mxu0 0.0
    %1818 = vmatpush.xpose.msra.mxu0 0.0
    %1819 = vmatpush.xpose.msra.mxu0 0.0
    %1820 = vmatpush.xpose.msra.mxu0 0.0
    %1821 = vmatpush.xpose.msra.mxu0 0.0
    %1822 = vmatpush.xpose.msra.mxu0 0.0
    %1823 = vmatpush.xpose.msra.mxu0 %v1806
    %1824 = vmatmul.f32.gmra.mxu0 %v1804
    %v1825 = vpop.f32.mrf.mxu0
    %v1826 = vadd.f32 %v141, %v1825
    %1827 = vdwg.mxu0
    %v1828 = vsel %vm334, %v1798, -inf
    %1829 = vmax.xlane.f32.xlu0 %v1828
    %v1830 = vpop.xlane.xlu0 %1829
    %v1831 = vsel %vm334, %v1826, -inf
    %1832 = vmax.xlane.f32.xlu0 %v1831
    %v1833 = vpop.xlane.xlu0 %1832
    %v1834 = vsub.f32 %v1798, %v1830
    %v1835 = vsub.f32 %v1826, %v1833
    %v1836 = vmul.f32 %v1834, 1.442695
    %v1837 = vpow.pop %v1836
    %v1838 = vmul.f32 %v1835, 1.442695
    %v1839 = vpow.pop %v1838
    %v1840 = vsel %vm334, %v1837, 0.0
    %1841 = vadd.xlane.f32.xlu0 %v1840
    %v1842 = vpop.xlane.xlu0 %1841
    %v1843 = vsel %vm334, %v1839, 0.0
    %1844 = vadd.xlane.f32.xlu0 %v1843
    %v1845 = vpop.xlane.xlu0 %1844
    %v1846 = vrcp.pop %v1842
    %v1847 = vrcp.pop %v1845
    %v1848 = vmul.f32 %v1837, %v1846
    %v1849 = vmul.f32 %v1839, %v1847
    %1851 = vrot.lane.b32.xlu0 %v1641, 112
    %v1852 = vpop.permute.xlu0 %1851
    %v1855 = vsel %vm334, %v1848, 0
    %1857 = vmatpush.msra.mxu0 0.0
    %1858 = vmatpush.msra.mxu0 0.0
    %1859 = vmatpush.msra.mxu0 0.0
    %1860 = vmatpush.msra.mxu0 0.0
    %1861 = vmatpush.msra.mxu0 0.0
    %1862 = vmatpush.msra.mxu0 0.0
    %1863 = vmatpush.msra.mxu0 0.0
    %1864 = vmatpush.msra.mxu0 0.0
    %1865 = vmatpush.msra.mxu0 0.0
    %1866 = vmatpush.msra.mxu0 0.0
    %1867 = vmatpush.msra.mxu0 0.0
    %1868 = vmatpush.msra.mxu0 0.0
    %1869 = vmatpush.msra.mxu0 0.0
    %1870 = vmatpush.msra.mxu0 0.0
    %1871 = vmatpush.msra.mxu0 0.0
    %1872 = vmatpush.msra.mxu0 %v1852
    %1873 = vmatmul.f32.gmra.mxu0 %v1855
    %v1874 = vpop.f32.mrf.mxu0
    %v1875 = vadd.f32 0.0, %v1874
    %1876 = vdwg.mxu0
    %1878 = vrot.lane.b32.xlu0 %v1643, 112
    %v1879 = vpop.permute.xlu0 %1878
    %v1882 = vsel %vm334, %v1849, 0
    %1884 = vmatpush.msra.mxu0 0.0
    %1885 = vmatpush.msra.mxu0 0.0
    %1886 = vmatpush.msra.mxu0 0.0
    %1887 = vmatpush.msra.mxu0 0.0
    %1888 = vmatpush.msra.mxu0 0.0
    %1889 = vmatpush.msra.mxu0 0.0
    %1890 = vmatpush.msra.mxu0 0.0
    %1891 = vmatpush.msra.mxu0 0.0
    %1892 = vmatpush.msra.mxu0 0.0
    %1893 = vmatpush.msra.mxu0 0.0
    %1894 = vmatpush.msra.mxu0 0.0
    %1895 = vmatpush.msra.mxu0 0.0
    %1896 = vmatpush.msra.mxu0 0.0
    %1897 = vmatpush.msra.mxu0 0.0
    %1898 = vmatpush.msra.mxu0 0.0
    %1899 = vmatpush.msra.mxu0 %v1879
    %1900 = vmatmul.f32.gmra.mxu0 %v1882
    %v1901 = vpop.f32.mrf.mxu0
    %v1902 = vadd.f32 0.0, %v1901
    %1903 = vdwg.mxu0
    %v1904 = vpack.c.bf16 %v1902, %v1875
    %v1907 = vunpack.c.l.b16 %v1455
    %v1908 = vunpack.c.l.b16 %v1456
    %v1909 = vpack.c.b16 %v1908, %v1907
    %v1912 = vsel %vm280, %v1904, 0
    %1914 = vmatpush.bf16.msra.mxu0 0
    %1915 = vmatpush.bf16.msra.mxu0 0
    %1916 = vmatpush.bf16.msra.mxu0 0
    %1917 = vmatpush.bf16.msra.mxu0 0
    %1918 = vmatpush.bf16.msra.mxu0 0
    %1919 = vmatpush.bf16.msra.mxu0 0
    %1920 = vmatpush.bf16.msra.mxu0 0
    %1921 = vmatpush.bf16.msra.mxu0 %v1909
    %1922 = vmatmul.bf16.gmra.mxu0 %v1912
    %v1923 = vpop.f32.mrf.mxu0
    %v1924 = vadd.f32 0.0, %v1923
    %v1925 = vpop.f32.mrf.mxu0
    %v1926 = vadd.f32 0.0, %v1925
    %1927 = vdwg.mxu0
    %v1930 = vunpack.c.l.b16 %v1453
    %v1931 = vunpack.c.l.b16 %v1454
    %v1932 = vpack.c.b16 %v1931, %v1930
    %v1935 = vsel %vm280, %v1771, 0
    %1937 = vmatpush.bf16.msra.mxu0 0
    %1938 = vmatpush.bf16.msra.mxu0 0
    %1939 = vmatpush.bf16.msra.mxu0 0
    %1940 = vmatpush.bf16.msra.mxu0 0
    %1941 = vmatpush.bf16.msra.mxu0 0
    %1942 = vmatpush.bf16.msra.mxu0 0
    %1943 = vmatpush.bf16.msra.mxu0 0
    %1944 = vmatpush.bf16.msra.mxu0 %v1932
    %1945 = vmatmul.bf16.gmra.mxu0 %v1935
    %v1946 = vpop.f32.mrf.mxu0
    %v1947 = vadd.f32 %v1924, %v1946
    %v1948 = vpop.f32.mrf.mxu0
    %v1949 = vadd.f32 %v1926, %v1948
    %1950 = vdwg.mxu0
    %1951 = vrot.lane.b32.xlu0 %v1645, 96
    %v1952 = vpop.permute.xlu0 %1951
    %1953 = vrot.lane.b32.xlu0 %v1627, 32
    %v1954 = vpop.permute.xlu0 %1953
    %v1955 = vsel %vm280, %v1952, 0
    %v1957 = vsel %vm280, %v1954, 0
    %1959 = vmatpush.xpose.msra.mxu0 0.0
    %1960 = vmatpush.xpose.msra.mxu0 0.0
    %1961 = vmatpush.xpose.msra.mxu0 0.0
    %1962 = vmatpush.xpose.msra.mxu0 0.0
    %1963 = vmatpush.xpose.msra.mxu0 0.0
    %1964 = vmatpush.xpose.msra.mxu0 0.0
    %1965 = vmatpush.xpose.msra.mxu0 0.0
    %1966 = vmatpush.xpose.msra.mxu0 0.0
    %1967 = vmatpush.xpose.msra.mxu0 0.0
    %1968 = vmatpush.xpose.msra.mxu0 0.0
    %1969 = vmatpush.xpose.msra.mxu0 0.0
    %1970 = vmatpush.xpose.msra.mxu0 0.0
    %1971 = vmatpush.xpose.msra.mxu0 0.0
    %1972 = vmatpush.xpose.msra.mxu0 0.0
    %1973 = vmatpush.xpose.msra.mxu0 0.0
    %1974 = vmatpush.xpose.msra.mxu0 %v1957
    %1975 = vmatmul.f32.gmra.mxu0 %v1955
    %v1976 = vpop.f32.mrf.mxu0
    %v1977 = vadd.f32 %v141, %v1976
    %1978 = vdwg.mxu0
    %1979 = vrot.lane.b32.xlu0 %v1646, 96
    %v1980 = vpop.permute.xlu0 %1979
    %1981 = vrot.lane.b32.xlu0 %v1629, 32
    %v1982 = vpop.permute.xlu0 %1981
    %v1983 = vsel %vm280, %v1980, 0
    %v1985 = vsel %vm280, %v1982, 0
    %1987 = vmatpush.xpose.msra.mxu0 0.0
    %1988 = vmatpush.xpose.msra.mxu0 0.0
    %1989 = vmatpush.xpose.msra.mxu0 0.0
    %1990 = vmatpush.xpose.msra.mxu0 0.0
    %1991 = vmatpush.xpose.msra.mxu0 0.0
    %1992 = vmatpush.xpose.msra.mxu0 0.0
    %1993 = vmatpush.xpose.msra.mxu0 0.0
    %1994 = vmatpush.xpose.msra.mxu0 0.0
    %1995 = vmatpush.xpose.msra.mxu0 0.0
    %1996 = vmatpush.xpose.msra.mxu0 0.0
    %1997 = vmatpush.xpose.msra.mxu0 0.0
    %1998 = vmatpush.xpose.msra.mxu0 0.0
    %1999 = vmatpush.xpose.msra.mxu0 0.0
    %2000 = vmatpush.xpose.msra.mxu0 0.0
    %2001 = vmatpush.xpose.msra.mxu0 0.0
    %2002 = vmatpush.xpose.msra.mxu0 %v1985
    %2003 = vmatmul.f32.gmra.mxu0 %v1983
    %v2004 = vpop.f32.mrf.mxu0
    %v2005 = vadd.f32 %v141, %v2004
    %2006 = vdwg.mxu0
    %v2007 = vsel %vm334, %v1977, -inf
    %2008 = vmax.xlane.f32.xlu0 %v2007
    %v2009 = vpop.xlane.xlu0 %2008
    %v2010 = vsel %vm334, %v2005, -inf
    %2011 = vmax.xlane.f32.xlu0 %v2010
    %v2012 = vpop.xlane.xlu0 %2011
    %v2013 = vsub.f32 %v1977, %v2009
    %v2014 = vsub.f32 %v2005, %v2012
    %v2015 = vmul.f32 %v2013, 1.442695
    %v2016 = vpow.pop %v2015
    %v2017 = vmul.f32 %v2014, 1.442695
    %v2018 = vpow.pop %v2017
    %v2019 = vsel %vm334, %v2016, 0.0
    %2020 = vadd.xlane.f32.xlu0 %v2019
    %v2021 = vpop.xlane.xlu0 %2020
    %v2022 = vsel %vm334, %v2018, 0.0
    %2023 = vadd.xlane.f32.xlu0 %v2022
    %v2024 = vpop.xlane.xlu0 %2023
    %v2025 = vrcp.pop %v2021
    %v2026 = vrcp.pop %v2024
    %v2027 = vmul.f32 %v2016, %v2025
    %v2028 = vmul.f32 %v2018, %v2026
    %2029 = vrot.lane.b32.xlu0 %v1641, 96
    %v2030 = vpop.permute.xlu0 %2029
    %v2033 = vsel %vm334, %v2027, 0
    %2035 = vmatpush.msra.mxu0 0.0
    %2036 = vmatpush.msra.mxu0 0.0
    %2037 = vmatpush.msra.mxu0 0.0
    %2038 = vmatpush.msra.mxu0 0.0
    %2039 = vmatpush.msra.mxu0 0.0
    %2040 = vmatpush.msra.mxu0 0.0
    %2041 = vmatpush.msra.mxu0 0.0
    %2042 = vmatpush.msra.mxu0 0.0
    %2043 = vmatpush.msra.mxu0 0.0
    %2044 = vmatpush.msra.mxu0 0.0
    %2045 = vmatpush.msra.mxu0 0.0
    %2046 = vmatpush.msra.mxu0 0.0
    %2047 = vmatpush.msra.mxu0 0.0
    %2048 = vmatpush.msra.mxu0 0.0
    %2049 = vmatpush.msra.mxu0 0.0
    %2050 = vmatpush.msra.mxu0 %v2030
    %2051 = vmatmul.f32.gmra.mxu0 %v2033
    %v2052 = vpop.f32.mrf.mxu0
    %v2053 = vadd.f32 0.0, %v2052
    %2054 = vdwg.mxu0
    %2055 = vrot.lane.b32.xlu0 %v1643, 96
    %v2056 = vpop.permute.xlu0 %2055
    %v2059 = vsel %vm334, %v2028, 0
    %2061 = vmatpush.msra.mxu0 0.0
    %2062 = vmatpush.msra.mxu0 0.0
    %2063 = vmatpush.msra.mxu0 0.0
    %2064 = vmatpush.msra.mxu0 0.0
    %2065 = vmatpush.msra.mxu0 0.0
    %2066 = vmatpush.msra.mxu0 0.0
    %2067 = vmatpush.msra.mxu0 0.0
    %2068 = vmatpush.msra.mxu0 0.0
    %2069 = vmatpush.msra.mxu0 0.0
    %2070 = vmatpush.msra.mxu0 0.0
    %2071 = vmatpush.msra.mxu0 0.0
    %2072 = vmatpush.msra.mxu0 0.0
    %2073 = vmatpush.msra.mxu0 0.0
    %2074 = vmatpush.msra.mxu0 0.0
    %2075 = vmatpush.msra.mxu0 0.0
    %2076 = vmatpush.msra.mxu0 %v2056
    %2077 = vmatmul.f32.gmra.mxu0 %v2059
    %v2078 = vpop.f32.mrf.mxu0
    %v2079 = vadd.f32 0.0, %v2078
    %2080 = vdwg.mxu0
    %v2081 = vpack.c.bf16 %v2079, %v2053
    %v2084 = vunpack.c.l.b16 %v1457
    %v2085 = vunpack.c.l.b16 %v1458
    %v2086 = vpack.c.b16 %v2085, %v2084
    %v2089 = vsel %vm280, %v2081, 0
    %2091 = vmatpush.bf16.msra.mxu0 0
    %2092 = vmatpush.bf16.msra.mxu0 0
    %2093 = vmatpush.bf16.msra.mxu0 0
    %2094 = vmatpush.bf16.msra.mxu0 0
    %2095 = vmatpush.bf16.msra.mxu0 0
    %2096 = vmatpush.bf16.msra.mxu0 0
    %2097 = vmatpush.bf16.msra.mxu0 0
    %2098 = vmatpush.bf16.msra.mxu0 %v2086
    %2099 = vmatmul.bf16.gmra.mxu0 %v2089
    %v2100 = vpop.f32.mrf.mxu0
    %v2101 = vadd.f32 0.0, %v2100
    %v2102 = vpop.f32.mrf.mxu0
    %v2103 = vadd.f32 0.0, %v2102
    %2104 = vdwg.mxu0
    %v2105 = vadd.f32 %v1947, %v2101
    %v2106 = vadd.f32 %v1949, %v2103
    %2107 = vrot.lane.b32.xlu0 %v1645, 80
    %v2108 = vpop.permute.xlu0 %2107
    %2109 = vrot.lane.b32.xlu0 %v1627, 16
    %v2110 = vpop.permute.xlu0 %2109
    %v2111 = vsel %vm280, %v2108, 0
    %v2113 = vsel %vm280, %v2110, 0
    %2115 = vmatpush.xpose.msra.mxu0 0.0
    %2116 = vmatpush.xpose.msra.mxu0 0.0
    %2117 = vmatpush.xpose.msra.mxu0 0.0
    %2118 = vmatpush.xpose.msra.mxu0 0.0
    %2119 = vmatpush.xpose.msra.mxu0 0.0
    %2120 = vmatpush.xpose.msra.mxu0 0.0
    %2121 = vmatpush.xpose.msra.mxu0 0.0
    %2122 = vmatpush.xpose.msra.mxu0 0.0
    %2123 = vmatpush.xpose.msra.mxu0 0.0
    %2124 = vmatpush.xpose.msra.mxu0 0.0
    %2125 = vmatpush.xpose.msra.mxu0 0.0
    %2126 = vmatpush.xpose.msra.mxu0 0.0
    %2127 = vmatpush.xpose.msra.mxu0 0.0
    %2128 = vmatpush.xpose.msra.mxu0 0.0
    %2129 = vmatpush.xpose.msra.mxu0 0.0
    %2130 = vmatpush.xpose.msra.mxu0 %v2113
    %2131 = vmatmul.f32.gmra.mxu0 %v2111
    %v2132 = vpop.f32.mrf.mxu0
    %v2133 = vadd.f32 %v141, %v2132
    %2134 = vdwg.mxu0
    %2135 = vrot.lane.b32.xlu0 %v1646, 80
    %v2136 = vpop.permute.xlu0 %2135
    %2137 = vrot.lane.b32.xlu0 %v1629, 16
    %v2138 = vpop.permute.xlu0 %2137
    %v2139 = vsel %vm280, %v2136, 0
    %v2141 = vsel %vm280, %v2138, 0
    %2143 = vmatpush.xpose.msra.mxu0 0.0
    %2144 = vmatpush.xpose.msra.mxu0 0.0
    %2145 = vmatpush.xpose.msra.mxu0 0.0
    %2146 = vmatpush.xpose.msra.mxu0 0.0
    %2147 = vmatpush.xpose.msra.mxu0 0.0
    %2148 = vmatpush.xpose.msra.mxu0 0.0
    %2149 = vmatpush.xpose.msra.mxu0 0.0
    %2150 = vmatpush.xpose.msra.mxu0 0.0
    %2151 = vmatpush.xpose.msra.mxu0 0.0
    %2152 = vmatpush.xpose.msra.mxu0 0.0
    %2153 = vmatpush.xpose.msra.mxu0 0.0
    %2154 = vmatpush.xpose.msra.mxu0 0.0
    %2155 = vmatpush.xpose.msra.mxu0 0.0
    %2156 = vmatpush.xpose.msra.mxu0 0.0
    %2157 = vmatpush.xpose.msra.mxu0 0.0
    %2158 = vmatpush.xpose.msra.mxu0 %v2141
    %2159 = vmatmul.f32.gmra.mxu0 %v2139
    %v2160 = vpop.f32.mrf.mxu0
    %v2161 = vadd.f32 %v141, %v2160
    %2162 = vdwg.mxu0
    %v2163 = vsel %vm334, %v2133, -inf
    %2164 = vmax.xlane.f32.xlu0 %v2163
    %v2165 = vpop.xlane.xlu0 %2164
    %v2166 = vsel %vm334, %v2161, -inf
    %2167 = vmax.xlane.f32.xlu0 %v2166
    %v2168 = vpop.xlane.xlu0 %2167
    %v2169 = vsub.f32 %v2133, %v2165
    %v2170 = vsub.f32 %v2161, %v2168
    %v2171 = vmul.f32 %v2169, 1.442695
    %v2172 = vpow.pop %v2171
    %v2173 = vmul.f32 %v2170, 1.442695
    %v2174 = vpow.pop %v2173
    %v2175 = vsel %vm334, %v2172, 0.0
    %2176 = vadd.xlane.f32.xlu0 %v2175
    %v2177 = vpop.xlane.xlu0 %2176
    %v2178 = vsel %vm334, %v2174, 0.0
    %2179 = vadd.xlane.f32.xlu0 %v2178
    %v2180 = vpop.xlane.xlu0 %2179
    %v2181 = vrcp.pop %v2177
    %v2182 = vrcp.pop %v2180
    %v2183 = vmul.f32 %v2172, %v2181
    %v2184 = vmul.f32 %v2174, %v2182
    %2185 = vrot.lane.b32.xlu0 %v1641, 80
    %v2186 = vpop.permute.xlu0 %2185
    %v2189 = vsel %vm334, %v2183, 0
    %2191 = vmatpush.msra.mxu0 0.0
    %2192 = vmatpush.msra.mxu0 0.0
    %2193 = vmatpush.msra.mxu0 0.0
    %2194 = vmatpush.msra.mxu0 0.0
    %2195 = vmatpush.msra.mxu0 0.0
    %2196 = vmatpush.msra.mxu0 0.0
    %2197 = vmatpush.msra.mxu0 0.0
    %2198 = vmatpush.msra.mxu0 0.0
    %2199 = vmatpush.msra.mxu0 0.0
    %2200 = vmatpush.msra.mxu0 0.0
    %2201 = vmatpush.msra.mxu0 0.0
    %2202 = vmatpush.msra.mxu0 0.0
    %2203 = vmatpush.msra.mxu0 0.0
    %2204 = vmatpush.msra.mxu0 0.0
    %2205 = vmatpush.msra.mxu0 0.0
    %2206 = vmatpush.msra.mxu0 %v2186
    %2207 = vmatmul.f32.gmra.mxu0 %v2189
    %v2208 = vpop.f32.mrf.mxu0
    %v2209 = vadd.f32 0.0, %v2208
    %2210 = vdwg.mxu0
    %2211 = vrot.lane.b32.xlu0 %v1643, 80
    %v2212 = vpop.permute.xlu0 %2211
    %v2215 = vsel %vm334, %v2184, 0
    %2217 = vmatpush.msra.mxu0 0.0
    %2218 = vmatpush.msra.mxu0 0.0
    %2219 = vmatpush.msra.mxu0 0.0
    %2220 = vmatpush.msra.mxu0 0.0
    %2221 = vmatpush.msra.mxu0 0.0
    %2222 = vmatpush.msra.mxu0 0.0
    %2223 = vmatpush.msra.mxu0 0.0
    %2224 = vmatpush.msra.mxu0 0.0
    %2225 = vmatpush.msra.mxu0 0.0
    %2226 = vmatpush.msra.mxu0 0.0
    %2227 = vmatpush.msra.mxu0 0.0
    %2228 = vmatpush.msra.mxu0 0.0
    %2229 = vmatpush.msra.mxu0 0.0
    %2230 = vmatpush.msra.mxu0 0.0
    %2231 = vmatpush.msra.mxu0 0.0
    %2232 = vmatpush.msra.mxu0 %v2212
    %2233 = vmatmul.f32.gmra.mxu0 %v2215
    %v2234 = vpop.f32.mrf.mxu0
    %v2235 = vadd.f32 0.0, %v2234
    %2236 = vdwg.mxu0
    %v2237 = vpack.c.bf16 %v2235, %v2209
    %v2240 = vunpack.c.l.b16 %v1459
    %v2241 = vunpack.c.l.b16 %v1460
    %v2242 = vpack.c.b16 %v2241, %v2240
    %v2245 = vsel %vm280, %v2237, 0
    %2247 = vmatpush.bf16.msra.mxu0 0
    %2248 = vmatpush.bf16.msra.mxu0 0
    %2249 = vmatpush.bf16.msra.mxu0 0
    %2250 = vmatpush.bf16.msra.mxu0 0
    %2251 = vmatpush.bf16.msra.mxu0 0
    %2252 = vmatpush.bf16.msra.mxu0 0
    %2253 = vmatpush.bf16.msra.mxu0 0
    %2254 = vmatpush.bf16.msra.mxu0 %v2242
    %2255 = vmatmul.bf16.gmra.mxu0 %v2245
    %v2256 = vpop.f32.mrf.mxu0
    %v2257 = vadd.f32 0.0, %v2256
    %v2258 = vpop.f32.mrf.mxu0
    %v2259 = vadd.f32 0.0, %v2258
    %2260 = vdwg.mxu0
    %v2261 = vadd.f32 %v2105, %v2257
    %v2262 = vadd.f32 %v2106, %v2259
    %v2263 = vadd.f32 %v1440, %v2261
    %v2264 = vadd.f32 %v1441, %v2262
    %v2266 = vperm.slane %v1461, 0
    %v2268 = vadd.f32 %v2263, %v2266
    %v2269 = vadd.f32 %v2264, %v2266
    %v2270 = vsel %vm1506, %v2268, 0.0
    %2271 = vadd.xlane.f32.xlu0 %v2270
    %v2272 = vpop.xlane.xlu0 %2271
    %v2273 = vsel %vm1506, %v2269, 0.0
    %2274 = vadd.xlane.f32.xlu0 %v2273
    %v2275 = vpop.xlane.xlu0 %2274
    %v2276 = vmul.f32 %v2272, %v1519
    %v2277 = vmul.f32 %v2275, %v1519
    %v2278 = vsub.f32 %v2268, %v2276
    %v2279 = vsub.f32 %v2269, %v2277
    %v2280 = vmul.f32 %v2278, %v2278
    %v2281 = vmul.f32 %v2279, %v2279
    %v2282 = vsel %vm1506, %v2280, 0.0
    %2283 = vadd.xlane.f32.xlu0 %v2282
    %v2284 = vpop.xlane.xlu0 %2283
    %v2285 = vsel %vm1506, %v2281, 0.0
    %2286 = vadd.xlane.f32.xlu0 %v2285
    %v2287 = vpop.xlane.xlu0 %2286
    %v2288 = vmul.f32 %v2284, %v1519
    %v2289 = vmul.f32 %v2287, %v1519
    %v2290 = vadd.f32 %v2288, 1e-05
    %v2291 = vadd.f32 %v2289, 1e-05
    %v2292 = vrsqrt.pop %v2290
    %v2293 = vmul.f32 %v2292, %v2290
    %v2294 = vmul.f32 %v2293, %v2292
    %v2295 = vmul.f32 0.5, %v2294
    %v2296 = vsub.f32 1.5, %v2295
    %v2297 = vmul.f32 %v2292, %v2296
    %vm2298 = vweird.f32 %v2290
    %vm2299 = vweird.f32 %v2292
    %vm2300 = vmor %vm2298, %vm2299
    %v2301 = vsel %vm2300, %v2292, %v2297
    %v2302 = vrsqrt.pop %v2291
    %v2303 = vmul.f32 %v2302, %v2291
    %v2304 = vmul.f32 %v2303, %v2302
    %v2305 = vmul.f32 0.5, %v2304
    %v2306 = vsub.f32 1.5, %v2305
    %v2307 = vmul.f32 %v2302, %v2306
    %vm2308 = vweird.f32 %v2291
    %vm2309 = vweird.f32 %v2302
    %vm2310 = vmor %vm2308, %vm2309
    %v2311 = vsel %vm2310, %v2302, %v2307
    %v2312 = vmul.f32 %v2278, %v2301
    %v2313 = vmul.f32 %v2279, %v2311
    %v2315 = vperm.slane %v1462, 0
    %v2317 = vmul.f32 %v2312, %v2315
    %v2318 = vmul.f32 %v2313, %v2315
    %v2320 = vperm.slane %v1463, 0
    %v2322 = vadd.f32 %v2317, %v2320
    %v2323 = vadd.f32 %v2318, %v2320
    %v2324 = vpack.c.bf16 %v2323, %v2322
    %v2326 = vperm.slane %v1472, 0
    %v2327 = vperm.slane %v1472, 1
    %v2338 = vunpack.c.l.b16 %v1464
    %v2339 = vunpack.c.h.b16 %v1464
    %v2340 = vunpack.c.l.b16 %v1465
    %v2341 = vunpack.c.h.b16 %v1465
    %v2342 = vunpack.c.l.b16 %v1466
    %v2343 = vunpack.c.h.b16 %v1466
    %v2344 = vunpack.c.l.b16 %v1467
    %v2345 = vunpack.c.h.b16 %v1467
    %v2346 = vunpack.c.l.b16 %v1468
    %v2347 = vunpack.c.h.b16 %v1468
    %v2348 = vunpack.c.l.b16 %v1469
    %v2349 = vunpack.c.h.b16 %v1469
    %v2350 = vunpack.c.l.b16 %v1470
    %v2351 = vunpack.c.h.b16 %v1470
    %v2352 = vunpack.c.l.b16 %v1471
    %v2353 = vunpack.c.h.b16 %v1471
    %v2354 = vpack.c.b16 %v2340, %v2338
    %v2355 = vpack.c.b16 %v2341, %v2339
    %v2356 = vpack.c.b16 %v2344, %v2342
    %v2357 = vpack.c.b16 %v2345, %v2343
    %v2358 = vpack.c.b16 %v2348, %v2346
    %v2359 = vpack.c.b16 %v2349, %v2347
    %v2360 = vpack.c.b16 %v2352, %v2350
    %v2361 = vpack.c.b16 %v2353, %v2351
    %v2371 = vsel %vm1506, %v2324, 0
    %2373 = vmatpush.bf16.msra.mxu0 0
    %2374 = vmatpush.bf16.msra.mxu0 0
    %2375 = vmatpush.bf16.msra.mxu0 0
    %2376 = vmatpush.bf16.msra.mxu0 0
    %2377 = vmatpush.bf16.msra.mxu0 %v2360
    %2378 = vmatpush.bf16.msra.mxu0 %v2358
    %2379 = vmatpush.bf16.msra.mxu0 %v2356
    %2380 = vmatpush.bf16.msra.mxu0 %v2354
    %2381 = vmatmul.bf16.gmra.mxu0 %v2371
    %v2382 = vpop.f32.mrf.mxu0
    %v2383 = vadd.f32 %v2326, %v2382
    %v2384 = vpop.f32.mrf.mxu0
    %v2385 = vadd.f32 %v2326, %v2384
    %2386 = vdwg.mxu0
    %2387 = vmatpush.bf16.msra.mxu0 0
    %2388 = vmatpush.bf16.msra.mxu0 0
    %2389 = vmatpush.bf16.msra.mxu0 0
    %2390 = vmatpush.bf16.msra.mxu0 0
    %2391 = vmatpush.bf16.msra.mxu0 %v2361
    %2392 = vmatpush.bf16.msra.mxu0 %v2359
    %2393 = vmatpush.bf16.msra.mxu0 %v2357
    %2394 = vmatpush.bf16.msra.mxu0 %v2355
    %2395 = vmatmul.bf16.gmra.mxu0 %v2371
    %v2396 = vpop.f32.mrf.mxu0
    %v2397 = vadd.f32 %v2327, %v2396
    %v2398 = vpop.f32.mrf.mxu0
    %v2399 = vadd.f32 %v2327, %v2398
    %2400 = vdwg.mxu0
    %v2401 = vmul.f32 %v2383, 1.702
    %v2402 = vmul.f32 %v2397, 1.702
    %v2403 = vmul.f32 %v2385, 1.702
    %v2404 = vmul.f32 %v2399, 1.702
    %v2405 = vxor.u32 %v2401, 2147483648
    %v2406 = vxor.u32 %v2402, 2147483648
    %v2407 = vxor.u32 %v2403, 2147483648
    %v2408 = vxor.u32 %v2404, 2147483648
    %v2409 = vmul.f32 %v2405, 1.442695
    %v2410 = vpow.pop %v2409
    %v2411 = vmul.f32 %v2406, 1.442695
    %v2412 = vpow.pop %v2411
    %v2413 = vmul.f32 %v2407, 1.442695
    %v2414 = vpow.pop %v2413
    %v2415 = vmul.f32 %v2408, 1.442695
    %v2416 = vpow.pop %v2415
    %v2417 = vadd.f32 %v2410, 1.0
    %v2418 = vadd.f32 %v2412, 1.0
    %v2419 = vadd.f32 %v2414, 1.0
    %v2420 = vadd.f32 %v2416, 1.0
    %v2421 = vrcp.pop %v2417
    %v2422 = vmul.f32 %v2417, %v2421
    %v2423 = vsub.f32 1.0, %v2422
    %v2424 = vmul.f32 %v2421, %v2423
    %v2425 = vadd.f32 %v2421, %v2424
    %vm2426 = vweird.f32 %v2417
    %vm2427 = vweird.f32 %v2421
    %vm2428 = vmor %vm2426, %vm2427
    %v2429 = vsel %vm2428, %v2421, %v2425
    %v2430 = vand.u32 2147483647, %v2417
    %vm2431 = vcmp.eq.f32.partialorder %v2430, 8.507059e+37
    %v2432 = vand.u32 %v2417, 2147483648
    %v2433 = vor.u32 1.1754944e-38, %v2432
    %v2434 = vsel %vm2431, %v2433, %v2429
    %v2435 = vmul.f32 1.0, %v2434
    %v2436 = vrcp.pop %v2418
    %v2437 = vmul.f32 %v2418, %v2436
    %v2438 = vsub.f32 1.0, %v2437
    %v2439 = vmul.f32 %v2436, %v2438
    %v2440 = vadd.f32 %v2436, %v2439
    %vm2441 = vweird.f32 %v2418
    %vm2442 = vweird.f32 %v2436
    %vm2443 = vmor %vm2441, %vm2442
    %v2444 = vsel %vm2443, %v2436, %v2440
    %v2445 = vand.u32 2147483647, %v2418
    %vm2446 = vcmp.eq.f32.partialorder %v2445, 8.507059e+37
    %v2447 = vand.u32 %v2418, 2147483648
    %v2448 = vor.u32 1.1754944e-38, %v2447
    %v2449 = vsel %vm2446, %v2448, %v2444
    %v2450 = vmul.f32 1.0, %v2449
    %v2451 = vrcp.pop %v2419
    %v2452 = vmul.f32 %v2419, %v2451
    %v2453 = vsub.f32 1.0, %v2452
    %v2454 = vmul.f32 %v2451, %v2453
    %v2455 = vadd.f32 %v2451, %v2454
    %vm2456 = vweird.f32 %v2419
    %vm2457 = vweird.f32 %v2451
    %vm2458 = vmor %vm2456, %vm2457
    %v2459 = vsel %vm2458, %v2451, %v2455
    %v2460 = vand.u32 2147483647, %v2419
    %vm2461 = vcmp.eq.f32.partialorder %v2460, 8.507059e+37
    %v2462 = vand.u32 %v2419, 2147483648
    %v2463 = vor.u32 1.1754944e-38, %v2462
    %v2464 = vsel %vm2461, %v2463, %v2459
    %v2465 = vmul.f32 1.0, %v2464
    %v2466 = vrcp.pop %v2420
    %v2467 = vmul.f32 %v2420, %v2466
    %v2468 = vsub.f32 1.0, %v2467
    %v2469 = vmul.f32 %v2466, %v2468
    %v2470 = vadd.f32 %v2466, %v2469
    %vm2471 = vweird.f32 %v2420
    %vm2472 = vweird.f32 %v2466
    %vm2473 = vmor %vm2471, %vm2472
    %v2474 = vsel %vm2473, %v2466, %v2470
    %v2475 = vand.u32 2147483647, %v2420
    %vm2476 = vcmp.eq.f32.partialorder %v2475, 8.507059e+37
    %v2477 = vand.u32 %v2420, 2147483648
    %v2478 = vor.u32 1.1754944e-38, %v2477
    %v2479 = vsel %vm2476, %v2478, %v2474
    %v2480 = vmul.f32 1.0, %v2479
    %v2481 = vmul.f32 %v2383, %v2435
    %v2482 = vmul.f32 %v2397, %v2450
    %v2483 = vmul.f32 %v2385, %v2465
    %v2484 = vmul.f32 %v2399, %v2480
    %v2485 = vpack.c.bf16 %v2483, %v2481
    %v2486 = vpack.c.bf16 %v2484, %v2482
    %v2488 = vperm.slane %v1505, 0
    %v2522 = vunpack.c.l.b16 %v1473
    %v2523 = vunpack.c.l.b16 %v1474
    %v2524 = vunpack.c.l.b16 %v1475
    %v2525 = vunpack.c.l.b16 %v1476
    %v2526 = vunpack.c.l.b16 %v1477
    %v2527 = vunpack.c.l.b16 %v1478
    %v2528 = vunpack.c.l.b16 %v1479
    %v2529 = vunpack.c.l.b16 %v1480
    %v2530 = vunpack.c.l.b16 %v1481
    %v2531 = vunpack.c.l.b16 %v1482
    %v2532 = vunpack.c.l.b16 %v1483
    %v2533 = vunpack.c.l.b16 %v1484
    %v2534 = vunpack.c.l.b16 %v1485
    %v2535 = vunpack.c.l.b16 %v1486
    %v2536 = vunpack.c.l.b16 %v1487
    %v2537 = vunpack.c.l.b16 %v1488
    %v2538 = vunpack.c.l.b16 %v1489
    %v2539 = vunpack.c.l.b16 %v1490
    %v2540 = vunpack.c.l.b16 %v1491
    %v2541 = vunpack.c.l.b16 %v1492
    %v2542 = vunpack.c.l.b16 %v1493
    %v2543 = vunpack.c.l.b16 %v1494
    %v2544 = vunpack.c.l.b16 %v1495
    %v2545 = vunpack.c.l.b16 %v1496
    %v2546 = vunpack.c.l.b16 %v1497
    %v2547 = vunpack.c.l.b16 %v1498
    %v2548 = vunpack.c.l.b16 %v1499
    %v2549 = vunpack.c.l.b16 %v1500
    %v2550 = vunpack.c.l.b16 %v1501
    %v2551 = vunpack.c.l.b16 %v1502
    %v2552 = vunpack.c.l.b16 %v1503
    %v2553 = vunpack.c.l.b16 %v1504
    %v2554 = vpack.c.b16 %v2523, %v2522
    %v2555 = vpack.c.b16 %v2525, %v2524
    %v2556 = vpack.c.b16 %v2527, %v2526
    %v2557 = vpack.c.b16 %v2529, %v2528
    %v2558 = vpack.c.b16 %v2531, %v2530
    %v2559 = vpack.c.b16 %v2533, %v2532
    %v2560 = vpack.c.b16 %v2535, %v2534
    %v2561 = vpack.c.b16 %v2537, %v2536
    %v2562 = vpack.c.b16 %v2539, %v2538
    %v2563 = vpack.c.b16 %v2541, %v2540
    %v2564 = vpack.c.b16 %v2543, %v2542
    %v2565 = vpack.c.b16 %v2545, %v2544
    %v2566 = vpack.c.b16 %v2547, %v2546
    %v2567 = vpack.c.b16 %v2549, %v2548
    %v2568 = vpack.c.b16 %v2551, %v2550
    %v2569 = vpack.c.b16 %v2553, %v2552
    %2586 = vmatpush.bf16.msra.mxu0 %v2561
    %2587 = vmatpush.bf16.msra.mxu0 %v2560
    %2588 = vmatpush.bf16.msra.mxu0 %v2559
    %2589 = vmatpush.bf16.msra.mxu0 %v2558
    %2590 = vmatpush.bf16.msra.mxu0 %v2557
    %2591 = vmatpush.bf16.msra.mxu0 %v2556
    %2592 = vmatpush.bf16.msra.mxu0 %v2555
    %2593 = vmatpush.bf16.msra.mxu0 %v2554
    %2594 = vmatmul.bf16.gmra.mxu0 %v2485
    %v2595 = vpop.f32.mrf.mxu0
    %v2596 = vadd.f32 %v2488, %v2595
    %v2597 = vpop.f32.mrf.mxu0
    %v2598 = vadd.f32 %v2488, %v2597
    %2599 = vdwg.mxu0
    %2600 = vmatpush.bf16.msra.mxu0 %v2569
    %2601 = vmatpush.bf16.msra.mxu0 %v2568
    %2602 = vmatpush.bf16.msra.mxu0 %v2567
    %2603 = vmatpush.bf16.msra.mxu0 %v2566
    %2604 = vmatpush.bf16.msra.mxu0 %v2565
    %2605 = vmatpush.bf16.msra.mxu0 %v2564
    %2606 = vmatpush.bf16.msra.mxu0 %v2563
    %2607 = vmatpush.bf16.msra.mxu0 %v2562
    %2608 = vmatmul.bf16.gmra.mxu0 %v2486
    %v2609 = vpop.f32.mrf.mxu0
    %v2610 = vadd.f32 %v2596, %v2609
    %v2611 = vpop.f32.mrf.mxu0
    %v2612 = vadd.f32 %v2598, %v2611
    %2613 = vdwg.mxu0
    %v2614 = vadd.f32 %v2268, %v2610
    %v2615 = vadd.f32 %v2269, %v2612
    %s2616 = scalar_lea.vmem %s29, 1
    %v2617 = vld [vmem:[%s2616] sm:$0x1]
    %s2618 = scalar_lea.vmem %s31, 1
    %v2619 = vld [vmem:[%s2618] sm:$0x1]
    %s2620 = scalar_lea.vmem %s33, 64
    %v2621 = vld [vmem:[%s2620] sm:$0xff]
    %v2622 = vld [vmem:[%s2620 + $0x8] sm:$0xff]
    %v2623 = vld [vmem:[%s2620 + $0x10] sm:$0xff]
    %v2624 = vld [vmem:[%s2620 + $0x18] sm:$0xff]
    %v2625 = vld [vmem:[%s2620 + $0x20] sm:$0xff]
    %v2626 = vld [vmem:[%s2620 + $0x28] sm:$0xff]
    %v2627 = vld [vmem:[%s2620 + $0x30] sm:$0xff]
    %v2628 = vld [vmem:[%s2620 + $0x38] sm:$0xff]
    %s2629 = scalar_lea.vmem %s35, 2
    %v2630 = vld [vmem:[%s2629] sm:$0x3]
    %s2631 = scalar_lea.vmem %s37, 32
    %v2632 = vld [vmem:[%s2631] sm:$0xf]
    %v2633 = vld [vmem:[%s2631 + $0x4] sm:$0xf]
    %v2634 = vld [vmem:[%s2631 + $0x8] sm:$0xf]
    %v2635 = vld [vmem:[%s2631 + $0xc] sm:$0xf]
    %v2636 = vld [vmem:[%s2631 + $0x10] sm:$0xf]
    %v2637 = vld [vmem:[%s2631 + $0x14] sm:$0xf]
    %v2638 = vld [vmem:[%s2631 + $0x18] sm:$0xf]
    %v2639 = vld [vmem:[%s2631 + $0x1c] sm:$0xf]
    %s2640 = scalar_lea.vmem %s39, 1
    %v2641 = vld [vmem:[%s2640] sm:$0x1]
    %s2642 = scalar_lea.vmem %s41, 1
    %v2643 = vld [vmem:[%s2642] sm:$0x1]
    %s2644 = scalar_lea.vmem %s43, 1
    %v2645 = vld [vmem:[%s2644] sm:$0x1]
    %s2646 = scalar_lea.vmem %s45, 64
    %v2647 = vld [vmem:[%s2646] sm:$0xff]
    %v2648 = vld [vmem:[%s2646 + $0x8] sm:$0xff]
    %v2649 = vld [vmem:[%s2646 + $0x10] sm:$0xff]
    %v2650 = vld [vmem:[%s2646 + $0x18] sm:$0xff]
    %v2651 = vld [vmem:[%s2646 + $0x20] sm:$0xff]
    %v2652 = vld [vmem:[%s2646 + $0x28] sm:$0xff]
    %v2653 = vld [vmem:[%s2646 + $0x30] sm:$0xff]
    %v2654 = vld [vmem:[%s2646 + $0x38] sm:$0xff]
    %s2655 = scalar_lea.vmem %s47, 2
    %v2656 = vld [vmem:[%s2655] sm:$0x3]
    %s2657 = scalar_lea.vmem %s49, 128
    %v2658 = vld [vmem:[%s2657] sm:$0xf]
    %v2659 = vld [vmem:[%s2657 + $0x4] sm:$0xf]
    %v2660 = vld [vmem:[%s2657 + $0x8] sm:$0xf]
    %v2661 = vld [vmem:[%s2657 + $0xc] sm:$0xf]
    %v2662 = vld [vmem:[%s2657 + $0x10] sm:$0xf]
    %v2663 = vld [vmem:[%s2657 + $0x14] sm:$0xf]
    %v2664 = vld [vmem:[%s2657 + $0x18] sm:$0xf]
    %v2665 = vld [vmem:[%s2657 + $0x1c] sm:$0xf]
    %v2666 = vld [vmem:[%s2657 + $0x20] sm:$0xf]
    %v2667 = vld [vmem:[%s2657 + $0x24] sm:$0xf]
    %v2668 = vld [vmem:[%s2657 + $0x28] sm:$0xf]
    %v2669 = vld [vmem:[%s2657 + $0x2c] sm:$0xf]
    %v2670 = vld [vmem:[%s2657 + $0x30] sm:$0xf]
    %v2671 = vld [vmem:[%s2657 + $0x34] sm:$0xf]
    %v2672 = vld [vmem:[%s2657 + $0x38] sm:$0xf]
    %v2673 = vld [vmem:[%s2657 + $0x3c] sm:$0xf]
    %v2674 = vld [vmem:[%s2657 + $0x40] sm:$0xf]
    %v2675 = vld [vmem:[%s2657 + $0x44] sm:$0xf]
    %v2676 = vld [vmem:[%s2657 + $0x48] sm:$0xf]
    %v2677 = vld [vmem:[%s2657 + $0x4c] sm:$0xf]
    %v2678 = vld [vmem:[%s2657 + $0x50] sm:$0xf]
    %v2679 = vld [vmem:[%s2657 + $0x54] sm:$0xf]
    %v2680 = vld [vmem:[%s2657 + $0x58] sm:$0xf]
    %v2681 = vld [vmem:[%s2657 + $0x5c] sm:$0xf]
    %v2682 = vld [vmem:[%s2657 + $0x60] sm:$0xf]
    %v2683 = vld [vmem:[%s2657 + $0x64] sm:$0xf]
    %v2684 = vld [vmem:[%s2657 + $0x68] sm:$0xf]
    %v2685 = vld [vmem:[%s2657 + $0x6c] sm:$0xf]
    %v2686 = vld [vmem:[%s2657 + $0x70] sm:$0xf]
    %v2687 = vld [vmem:[%s2657 + $0x74] sm:$0xf]
    %v2688 = vld [vmem:[%s2657 + $0x78] sm:$0xf]
    %v2689 = vld [vmem:[%s2657 + $0x7c] sm:$0xf]
    %s2690 = scalar_lea.vmem %s51, 1
    %v2691 = vld [vmem:[%s2690] sm:$0x1]
    %v2692 = vsel %vm1506, %v2614, 0.0
    %2693 = vadd.xlane.f32.xlu0 %v2692
    %v2694 = vpop.xlane.xlu0 %2693
    %v2695 = vsel %vm1506, %v2615, 0.0
    %2696 = vadd.xlane.f32.xlu0 %v2695
    %v2697 = vpop.xlane.xlu0 %2696
    %v2698 = vmul.f32 %v2694, %v1519
    %v2699 = vmul.f32 %v2697, %v1519
    %v2700 = vsub.f32 %v2614, %v2698
    %v2701 = vsub.f32 %v2615, %v2699
    %v2702 = vmul.f32 %v2700, %v2700
    %v2703 = vmul.f32 %v2701, %v2701
    %v2704 = vsel %vm1506, %v2702, 0.0
    %2705 = vadd.xlane.f32.xlu0 %v2704
    %v2706 = vpop.xlane.xlu0 %2705
    %v2707 = vsel %vm1506, %v2703, 0.0
    %2708 = vadd.xlane.f32.xlu0 %v2707
    %v2709 = vpop.xlane.xlu0 %2708
    %v2710 = vmul.f32 %v2706, %v1519
    %v2711 = vmul.f32 %v2709, %v1519
    %v2712 = vadd.f32 %v2710, 1e-05
    %v2713 = vadd.f32 %v2711, 1e-05
    %v2714 = vrsqrt.pop %v2712
    %v2715 = vmul.f32 %v2714, %v2712
    %v2716 = vmul.f32 %v2715, %v2714
    %v2717 = vmul.f32 0.5, %v2716
    %v2718 = vsub.f32 1.5, %v2717
    %v2719 = vmul.f32 %v2714, %v2718
    %vm2720 = vweird.f32 %v2712
    %vm2721 = vweird.f32 %v2714
    %vm2722 = vmor %vm2720, %vm2721
    %v2723 = vsel %vm2722, %v2714, %v2719
    %v2724 = vrsqrt.pop %v2713
    %v2725 = vmul.f32 %v2724, %v2713
    %v2726 = vmul.f32 %v2725, %v2724
    %v2727 = vmul.f32 0.5, %v2726
    %v2728 = vsub.f32 1.5, %v2727
    %v2729 = vmul.f32 %v2724, %v2728
    %vm2730 = vweird.f32 %v2713
    %vm2731 = vweird.f32 %v2724
    %vm2732 = vmor %vm2730, %vm2731
    %v2733 = vsel %vm2732, %v2724, %v2729
    %v2734 = vmul.f32 %v2700, %v2723
    %v2735 = vmul.f32 %v2701, %v2733
    %v2737 = vperm.slane %v2617, 0
    %v2739 = vmul.f32 %v2734, %v2737
    %v2740 = vmul.f32 %v2735, %v2737
    %v2742 = vperm.slane %v2619, 0
    %v2744 = vadd.f32 %v2739, %v2742
    %v2745 = vadd.f32 %v2740, %v2742
    %v2746 = vpack.c.bf16 %v2745, %v2744
    %v2748 = vperm.slane %v2630, 0
    %v2749 = vperm.slane %v2630, 1
    %v2760 = vunpack.c.l.b16 %v2621
    %v2761 = vunpack.c.h.b16 %v2621
    %v2762 = vunpack.c.l.b16 %v2622
    %v2763 = vunpack.c.h.b16 %v2622
    %v2764 = vunpack.c.l.b16 %v2623
    %v2765 = vunpack.c.h.b16 %v2623
    %v2766 = vunpack.c.l.b16 %v2624
    %v2767 = vunpack.c.h.b16 %v2624
    %v2768 = vunpack.c.l.b16 %v2625
    %v2769 = vunpack.c.h.b16 %v2625
    %v2770 = vunpack.c.l.b16 %v2626
    %v2771 = vunpack.c.h.b16 %v2626
    %v2772 = vunpack.c.l.b16 %v2627
    %v2773 = vunpack.c.h.b16 %v2627
    %v2774 = vunpack.c.l.b16 %v2628
    %v2775 = vunpack.c.h.b16 %v2628
    %v2776 = vpack.c.b16 %v2762, %v2760
    %v2777 = vpack.c.b16 %v2763, %v2761
    %v2778 = vpack.c.b16 %v2766, %v2764
    %v2779 = vpack.c.b16 %v2767, %v2765
    %v2780 = vpack.c.b16 %v2770, %v2768
    %v2781 = vpack.c.b16 %v2771, %v2769
    %v2782 = vpack.c.b16 %v2774, %v2772
    %v2783 = vpack.c.b16 %v2775, %v2773
    %v2793 = vsel %vm1506, %v2746, 0
    %2795 = vmatpush.bf16.msra.mxu0 0
    %2796 = vmatpush.bf16.msra.mxu0 0
    %2797 = vmatpush.bf16.msra.mxu0 0
    %2798 = vmatpush.bf16.msra.mxu0 0
    %2799 = vmatpush.bf16.msra.mxu0 %v2782
    %2800 = vmatpush.bf16.msra.mxu0 %v2780
    %2801 = vmatpush.bf16.msra.mxu0 %v2778
    %2802 = vmatpush.bf16.msra.mxu0 %v2776
    %2803 = vmatmul.bf16.gmra.mxu0 %v2793
    %v2804 = vpop.f32.mrf.mxu0
    %v2805 = vadd.f32 %v2748, %v2804
    %v2806 = vpop.f32.mrf.mxu0
    %v2807 = vadd.f32 %v2748, %v2806
    %2808 = vdwg.mxu0
    %2809 = vmatpush.bf16.msra.mxu0 0
    %2810 = vmatpush.bf16.msra.mxu0 0
    %2811 = vmatpush.bf16.msra.mxu0 0
    %2812 = vmatpush.bf16.msra.mxu0 0
    %2813 = vmatpush.bf16.msra.mxu0 %v2783
    %2814 = vmatpush.bf16.msra.mxu0 %v2781
    %2815 = vmatpush.bf16.msra.mxu0 %v2779
    %2816 = vmatpush.bf16.msra.mxu0 %v2777
    %2817 = vmatmul.bf16.gmra.mxu0 %v2793
    %v2818 = vpop.f32.mrf.mxu0
    %v2819 = vadd.f32 %v2749, %v2818
    %v2820 = vpop.f32.mrf.mxu0
    %v2821 = vadd.f32 %v2749, %v2820
    %2822 = vdwg.mxu0
    %v2823 = vmul.f32 %v2805, 0.25
    %v2824 = vmul.f32 %v2807, 0.25
    %2826 = vrot.lane.b32.xlu0 %v2805, 64
    %v2827 = vpop.permute.xlu0 %2826
    %v2829 = vsel %vm280, %v2823, 0
    %v2831 = vsel %vm280, %v2827, 0
    %2833 = vmatpush.xpose.msra.mxu0 0.0
    %2834 = vmatpush.xpose.msra.mxu0 0.0
    %2835 = vmatpush.xpose.msra.mxu0 0.0
    %2836 = vmatpush.xpose.msra.mxu0 0.0
    %2837 = vmatpush.xpose.msra.mxu0 0.0
    %2838 = vmatpush.xpose.msra.mxu0 0.0
    %2839 = vmatpush.xpose.msra.mxu0 0.0
    %2840 = vmatpush.xpose.msra.mxu0 0.0
    %2841 = vmatpush.xpose.msra.mxu0 0.0
    %2842 = vmatpush.xpose.msra.mxu0 0.0
    %2843 = vmatpush.xpose.msra.mxu0 0.0
    %2844 = vmatpush.xpose.msra.mxu0 0.0
    %2845 = vmatpush.xpose.msra.mxu0 0.0
    %2846 = vmatpush.xpose.msra.mxu0 0.0
    %2847 = vmatpush.xpose.msra.mxu0 0.0
    %2848 = vmatpush.xpose.msra.mxu0 %v2831
    %2849 = vmatmul.f32.gmra.mxu0 %v2829
    %v2850 = vpop.f32.mrf.mxu0
    %v2851 = vadd.f32 %v141, %v2850
    %2852 = vdwg.mxu0
    %2854 = vrot.lane.b32.xlu0 %v2807, 64
    %v2855 = vpop.permute.xlu0 %2854
    %v2857 = vsel %vm280, %v2824, 0
    %v2859 = vsel %vm280, %v2855, 0
    %2861 = vmatpush.xpose.msra.mxu0 0.0
    %2862 = vmatpush.xpose.msra.mxu0 0.0
    %2863 = vmatpush.xpose.msra.mxu0 0.0
    %2864 = vmatpush.xpose.msra.mxu0 0.0
    %2865 = vmatpush.xpose.msra.mxu0 0.0
    %2866 = vmatpush.xpose.msra.mxu0 0.0
    %2867 = vmatpush.xpose.msra.mxu0 0.0
    %2868 = vmatpush.xpose.msra.mxu0 0.0
    %2869 = vmatpush.xpose.msra.mxu0 0.0
    %2870 = vmatpush.xpose.msra.mxu0 0.0
    %2871 = vmatpush.xpose.msra.mxu0 0.0
    %2872 = vmatpush.xpose.msra.mxu0 0.0
    %2873 = vmatpush.xpose.msra.mxu0 0.0
    %2874 = vmatpush.xpose.msra.mxu0 0.0
    %2875 = vmatpush.xpose.msra.mxu0 0.0
    %2876 = vmatpush.xpose.msra.mxu0 %v2859
    %2877 = vmatmul.f32.gmra.mxu0 %v2857
    %v2878 = vpop.f32.mrf.mxu0
    %v2879 = vadd.f32 %v141, %v2878
    %2880 = vdwg.mxu0
    %v2881 = vsel %vm334, %v2851, -inf
    %2882 = vmax.xlane.f32.xlu0 %v2881
    %v2883 = vpop.xlane.xlu0 %2882
    %v2884 = vsel %vm334, %v2879, -inf
    %2885 = vmax.xlane.f32.xlu0 %v2884
    %v2886 = vpop.xlane.xlu0 %2885
    %v2887 = vsub.f32 %v2851, %v2883
    %v2888 = vsub.f32 %v2879, %v2886
    %v2889 = vmul.f32 %v2887, 1.442695
    %v2890 = vpow.pop %v2889
    %v2891 = vmul.f32 %v2888, 1.442695
    %v2892 = vpow.pop %v2891
    %v2893 = vsel %vm334, %v2890, 0.0
    %2894 = vadd.xlane.f32.xlu0 %v2893
    %v2895 = vpop.xlane.xlu0 %2894
    %v2896 = vsel %vm334, %v2892, 0.0
    %2897 = vadd.xlane.f32.xlu0 %v2896
    %v2898 = vpop.xlane.xlu0 %2897
    %v2899 = vrcp.pop %v2895
    %v2900 = vrcp.pop %v2898
    %v2901 = vmul.f32 %v2890, %v2899
    %v2902 = vmul.f32 %v2892, %v2900
    %v2904 = vsel %vm334, %v2901, 0
    %2906 = vmatpush.msra.mxu0 0.0
    %2907 = vmatpush.msra.mxu0 0.0
    %2908 = vmatpush.msra.mxu0 0.0
    %2909 = vmatpush.msra.mxu0 0.0
    %2910 = vmatpush.msra.mxu0 0.0
    %2911 = vmatpush.msra.mxu0 0.0
    %2912 = vmatpush.msra.mxu0 0.0
    %2913 = vmatpush.msra.mxu0 0.0
    %2914 = vmatpush.msra.mxu0 0.0
    %2915 = vmatpush.msra.mxu0 0.0
    %2916 = vmatpush.msra.mxu0 0.0
    %2917 = vmatpush.msra.mxu0 0.0
    %2918 = vmatpush.msra.mxu0 0.0
    %2919 = vmatpush.msra.mxu0 0.0
    %2920 = vmatpush.msra.mxu0 0.0
    %2921 = vmatpush.msra.mxu0 %v2819
    %2922 = vmatmul.f32.gmra.mxu0 %v2904
    %v2923 = vpop.f32.mrf.mxu0
    %v2924 = vadd.f32 0.0, %v2923
    %2925 = vdwg.mxu0
    %v2927 = vsel %vm334, %v2902, 0
    %2929 = vmatpush.msra.mxu0 0.0
    %2930 = vmatpush.msra.mxu0 0.0
    %2931 = vmatpush.msra.mxu0 0.0
    %2932 = vmatpush.msra.mxu0 0.0
    %2933 = vmatpush.msra.mxu0 0.0
    %2934 = vmatpush.msra.mxu0 0.0
    %2935 = vmatpush.msra.mxu0 0.0
    %2936 = vmatpush.msra.mxu0 0.0
    %2937 = vmatpush.msra.mxu0 0.0
    %2938 = vmatpush.msra.mxu0 0.0
    %2939 = vmatpush.msra.mxu0 0.0
    %2940 = vmatpush.msra.mxu0 0.0
    %2941 = vmatpush.msra.mxu0 0.0
    %2942 = vmatpush.msra.mxu0 0.0
    %2943 = vmatpush.msra.mxu0 0.0
    %2944 = vmatpush.msra.mxu0 %v2821
    %2945 = vmatmul.f32.gmra.mxu0 %v2927
    %v2946 = vpop.f32.mrf.mxu0
    %v2947 = vadd.f32 0.0, %v2946
    %2948 = vdwg.mxu0
    %v2949 = vpack.c.bf16 %v2947, %v2924
    %2950 = vrot.lane.b32.xlu0 %v2823, 112
    %v2951 = vpop.permute.xlu0 %2950
    %2952 = vrot.lane.b32.xlu0 %v2805, 48
    %v2953 = vpop.permute.xlu0 %2952
    %v2954 = vsel %vm280, %v2951, 0
    %v2956 = vsel %vm280, %v2953, 0
    %2958 = vmatpush.xpose.msra.mxu0 0.0
    %2959 = vmatpush.xpose.msra.mxu0 0.0
    %2960 = vmatpush.xpose.msra.mxu0 0.0
    %2961 = vmatpush.xpose.msra.mxu0 0.0
    %2962 = vmatpush.xpose.msra.mxu0 0.0
    %2963 = vmatpush.xpose.msra.mxu0 0.0
    %2964 = vmatpush.xpose.msra.mxu0 0.0
    %2965 = vmatpush.xpose.msra.mxu0 0.0
    %2966 = vmatpush.xpose.msra.mxu0 0.0
    %2967 = vmatpush.xpose.msra.mxu0 0.0
    %2968 = vmatpush.xpose.msra.mxu0 0.0
    %2969 = vmatpush.xpose.msra.mxu0 0.0
    %2970 = vmatpush.xpose.msra.mxu0 0.0
    %2971 = vmatpush.xpose.msra.mxu0 0.0
    %2972 = vmatpush.xpose.msra.mxu0 0.0
    %2973 = vmatpush.xpose.msra.mxu0 %v2956
    %2974 = vmatmul.f32.gmra.mxu0 %v2954
    %v2975 = vpop.f32.mrf.mxu0
    %v2976 = vadd.f32 %v141, %v2975
    %2977 = vdwg.mxu0
    %2978 = vrot.lane.b32.xlu0 %v2824, 112
    %v2979 = vpop.permute.xlu0 %2978
    %2980 = vrot.lane.b32.xlu0 %v2807, 48
    %v2981 = vpop.permute.xlu0 %2980
    %v2982 = vsel %vm280, %v2979, 0
    %v2984 = vsel %vm280, %v2981, 0
    %2986 = vmatpush.xpose.msra.mxu0 0.0
    %2987 = vmatpush.xpose.msra.mxu0 0.0
    %2988 = vmatpush.xpose.msra.mxu0 0.0
    %2989 = vmatpush.xpose.msra.mxu0 0.0
    %2990 = vmatpush.xpose.msra.mxu0 0.0
    %2991 = vmatpush.xpose.msra.mxu0 0.0
    %2992 = vmatpush.xpose.msra.mxu0 0.0
    %2993 = vmatpush.xpose.msra.mxu0 0.0
    %2994 = vmatpush.xpose.msra.mxu0 0.0
    %2995 = vmatpush.xpose.msra.mxu0 0.0
    %2996 = vmatpush.xpose.msra.mxu0 0.0
    %2997 = vmatpush.xpose.msra.mxu0 0.0
    %2998 = vmatpush.xpose.msra.mxu0 0.0
    %2999 = vmatpush.xpose.msra.mxu0 0.0
    %3000 = vmatpush.xpose.msra.mxu0 0.0
    %3001 = vmatpush.xpose.msra.mxu0 %v2984
    %3002 = vmatmul.f32.gmra.mxu0 %v2982
    %v3003 = vpop.f32.mrf.mxu0
    %v3004 = vadd.f32 %v141, %v3003
    %3005 = vdwg.mxu0
    %v3006 = vsel %vm334, %v2976, -inf
    %3007 = vmax.xlane.f32.xlu0 %v3006
    %v3008 = vpop.xlane.xlu0 %3007
    %v3009 = vsel %vm334, %v3004, -inf
    %3010 = vmax.xlane.f32.xlu0 %v3009
    %v3011 = vpop.xlane.xlu0 %3010
    %v3012 = vsub.f32 %v2976, %v3008
    %v3013 = vsub.f32 %v3004, %v3011
    %v3014 = vmul.f32 %v3012, 1.442695
    %v3015 = vpow.pop %v3014
    %v3016 = vmul.f32 %v3013, 1.442695
    %v3017 = vpow.pop %v3016
    %v3018 = vsel %vm334, %v3015, 0.0
    %3019 = vadd.xlane.f32.xlu0 %v3018
    %v3020 = vpop.xlane.xlu0 %3019
    %v3021 = vsel %vm334, %v3017, 0.0
    %3022 = vadd.xlane.f32.xlu0 %v3021
    %v3023 = vpop.xlane.xlu0 %3022
    %v3024 = vrcp.pop %v3020
    %v3025 = vrcp.pop %v3023
    %v3026 = vmul.f32 %v3015, %v3024
    %v3027 = vmul.f32 %v3017, %v3025
    %3029 = vrot.lane.b32.xlu0 %v2819, 112
    %v3030 = vpop.permute.xlu0 %3029
    %v3033 = vsel %vm334, %v3026, 0
    %3035 = vmatpush.msra.mxu0 0.0
    %3036 = vmatpush.msra.mxu0 0.0
    %3037 = vmatpush.msra.mxu0 0.0
    %3038 = vmatpush.msra.mxu0 0.0
    %3039 = vmatpush.msra.mxu0 0.0
    %3040 = vmatpush.msra.mxu0 0.0
    %3041 = vmatpush.msra.mxu0 0.0
    %3042 = vmatpush.msra.mxu0 0.0
    %3043 = vmatpush.msra.mxu0 0.0
    %3044 = vmatpush.msra.mxu0 0.0
    %3045 = vmatpush.msra.mxu0 0.0
    %3046 = vmatpush.msra.mxu0 0.0
    %3047 = vmatpush.msra.mxu0 0.0
    %3048 = vmatpush.msra.mxu0 0.0
    %3049 = vmatpush.msra.mxu0 0.0
    %3050 = vmatpush.msra.mxu0 %v3030
    %3051 = vmatmul.f32.gmra.mxu0 %v3033
    %v3052 = vpop.f32.mrf.mxu0
    %v3053 = vadd.f32 0.0, %v3052
    %3054 = vdwg.mxu0
    %3056 = vrot.lane.b32.xlu0 %v2821, 112
    %v3057 = vpop.permute.xlu0 %3056
    %v3060 = vsel %vm334, %v3027, 0
    %3062 = vmatpush.msra.mxu0 0.0
    %3063 = vmatpush.msra.mxu0 0.0
    %3064 = vmatpush.msra.mxu0 0.0
    %3065 = vmatpush.msra.mxu0 0.0
    %3066 = vmatpush.msra.mxu0 0.0
    %3067 = vmatpush.msra.mxu0 0.0
    %3068 = vmatpush.msra.mxu0 0.0
    %3069 = vmatpush.msra.mxu0 0.0
    %3070 = vmatpush.msra.mxu0 0.0
    %3071 = vmatpush.msra.mxu0 0.0
    %3072 = vmatpush.msra.mxu0 0.0
    %3073 = vmatpush.msra.mxu0 0.0
    %3074 = vmatpush.msra.mxu0 0.0
    %3075 = vmatpush.msra.mxu0 0.0
    %3076 = vmatpush.msra.mxu0 0.0
    %3077 = vmatpush.msra.mxu0 %v3057
    %3078 = vmatmul.f32.gmra.mxu0 %v3060
    %v3079 = vpop.f32.mrf.mxu0
    %v3080 = vadd.f32 0.0, %v3079
    %3081 = vdwg.mxu0
    %v3082 = vpack.c.bf16 %v3080, %v3053
    %v3085 = vunpack.c.l.b16 %v2634
    %v3086 = vunpack.c.l.b16 %v2635
    %v3087 = vpack.c.b16 %v3086, %v3085
    %v3090 = vsel %vm280, %v3082, 0
    %3092 = vmatpush.bf16.msra.mxu0 0
    %3093 = vmatpush.bf16.msra.mxu0 0
    %3094 = vmatpush.bf16.msra.mxu0 0
    %3095 = vmatpush.bf16.msra.mxu0 0
    %3096 = vmatpush.bf16.msra.mxu0 0
    %3097 = vmatpush.bf16.msra.mxu0 0
    %3098 = vmatpush.bf16.msra.mxu0 0
    %3099 = vmatpush.bf16.msra.mxu0 %v3087
    %3100 = vmatmul.bf16.gmra.mxu0 %v3090
    %v3101 = vpop.f32.mrf.mxu0
    %v3102 = vadd.f32 0.0, %v3101
    %v3103 = vpop.f32.mrf.mxu0
    %v3104 = vadd.f32 0.0, %v3103
    %3105 = vdwg.mxu0
    %v3108 = vunpack.c.l.b16 %v2632
    %v3109 = vunpack.c.l.b16 %v2633
    %v3110 = vpack.c.b16 %v3109, %v3108
    %v3113 = vsel %vm280, %v2949, 0
    %3115 = vmatpush.bf16.msra.mxu0 0
    %3116 = vmatpush.bf16.msra.mxu0 0
    %3117 = vmatpush.bf16.msra.mxu0 0
    %3118 = vmatpush.bf16.msra.mxu0 0
    %3119 = vmatpush.bf16.msra.mxu0 0
    %3120 = vmatpush.bf16.msra.mxu0 0
    %3121 = vmatpush.bf16.msra.mxu0 0
    %3122 = vmatpush.bf16.msra.mxu0 %v3110
    %3123 = vmatmul.bf16.gmra.mxu0 %v3113
    %v3124 = vpop.f32.mrf.mxu0
    %v3125 = vadd.f32 %v3102, %v3124
    %v3126 = vpop.f32.mrf.mxu0
    %v3127 = vadd.f32 %v3104, %v3126
    %3128 = vdwg.mxu0
    %3129 = vrot.lane.b32.xlu0 %v2823, 96
    %v3130 = vpop.permute.xlu0 %3129
    %3131 = vrot.lane.b32.xlu0 %v2805, 32
    %v3132 = vpop.permute.xlu0 %3131
    %v3133 = vsel %vm280, %v3130, 0
    %v3135 = vsel %vm280, %v3132, 0
    %3137 = vmatpush.xpose.msra.mxu0 0.0
    %3138 = vmatpush.xpose.msra.mxu0 0.0
    %3139 = vmatpush.xpose.msra.mxu0 0.0
    %3140 = vmatpush.xpose.msra.mxu0 0.0
    %3141 = vmatpush.xpose.msra.mxu0 0.0
    %3142 = vmatpush.xpose.msra.mxu0 0.0
    %3143 = vmatpush.xpose.msra.mxu0 0.0
    %3144 = vmatpush.xpose.msra.mxu0 0.0
    %3145 = vmatpush.xpose.msra.mxu0 0.0
    %3146 = vmatpush.xpose.msra.mxu0 0.0
    %3147 = vmatpush.xpose.msra.mxu0 0.0
    %3148 = vmatpush.xpose.msra.mxu0 0.0
    %3149 = vmatpush.xpose.msra.mxu0 0.0
    %3150 = vmatpush.xpose.msra.mxu0 0.0
    %3151 = vmatpush.xpose.msra.mxu0 0.0
    %3152 = vmatpush.xpose.msra.mxu0 %v3135
    %3153 = vmatmul.f32.gmra.mxu0 %v3133
    %v3154 = vpop.f32.mrf.mxu0
    %v3155 = vadd.f32 %v141, %v3154
    %3156 = vdwg.mxu0
    %3157 = vrot.lane.b32.xlu0 %v2824, 96
    %v3158 = vpop.permute.xlu0 %3157
    %3159 = vrot.lane.b32.xlu0 %v2807, 32
    %v3160 = vpop.permute.xlu0 %3159
    %v3161 = vsel %vm280, %v3158, 0
    %v3163 = vsel %vm280, %v3160, 0
    %3165 = vmatpush.xpose.msra.mxu0 0.0
    %3166 = vmatpush.xpose.msra.mxu0 0.0
    %3167 = vmatpush.xpose.msra.mxu0 0.0
    %3168 = vmatpush.xpose.msra.mxu0 0.0
    %3169 = vmatpush.xpose.msra.mxu0 0.0
    %3170 = vmatpush.xpose.msra.mxu0 0.0
    %3171 = vmatpush.xpose.msra.mxu0 0.0
    %3172 = vmatpush.xpose.msra.mxu0 0.0
    %3173 = vmatpush.xpose.msra.mxu0 0.0
    %3174 = vmatpush.xpose.msra.mxu0 0.0
    %3175 = vmatpush.xpose.msra.mxu0 0.0
    %3176 = vmatpush.xpose.msra.mxu0 0.0
    %3177 = vmatpush.xpose.msra.mxu0 0.0
    %3178 = vmatpush.xpose.msra.mxu0 0.0
    %3179 = vmatpush.xpose.msra.mxu0 0.0
    %3180 = vmatpush.xpose.msra.mxu0 %v3163
    %3181 = vmatmul.f32.gmra.mxu0 %v3161
    %v3182 = vpop.f32.mrf.mxu0
    %v3183 = vadd.f32 %v141, %v3182
    %3184 = vdwg.mxu0
    %v3185 = vsel %vm334, %v3155, -inf
    %3186 = vmax.xlane.f32.xlu0 %v3185
    %v3187 = vpop.xlane.xlu0 %3186
    %v3188 = vsel %vm334, %v3183, -inf
    %3189 = vmax.xlane.f32.xlu0 %v3188
    %v3190 = vpop.xlane.xlu0 %3189
    %v3191 = vsub.f32 %v3155, %v3187
    %v3192 = vsub.f32 %v3183, %v3190
    %v3193 = vmul.f32 %v3191, 1.442695
    %v3194 = vpow.pop %v3193
    %v3195 = vmul.f32 %v3192, 1.442695
    %v3196 = vpow.pop %v3195
    %v3197 = vsel %vm334, %v3194, 0.0
    %3198 = vadd.xlane.f32.xlu0 %v3197
    %v3199 = vpop.xlane.xlu0 %3198
    %v3200 = vsel %vm334, %v3196, 0.0
    %3201 = vadd.xlane.f32.xlu0 %v3200
    %v3202 = vpop.xlane.xlu0 %3201
    %v3203 = vrcp.pop %v3199
    %v3204 = vrcp.pop %v3202
    %v3205 = vmul.f32 %v3194, %v3203
    %v3206 = vmul.f32 %v3196, %v3204
    %3207 = vrot.lane.b32.xlu0 %v2819, 96
    %v3208 = vpop.permute.xlu0 %3207
    %v3211 = vsel %vm334, %v3205, 0
    %3213 = vmatpush.msra.mxu0 0.0
    %3214 = vmatpush.msra.mxu0 0.0
    %3215 = vmatpush.msra.mxu0 0.0
    %3216 = vmatpush.msra.mxu0 0.0
    %3217 = vmatpush.msra.mxu0 0.0
    %3218 = vmatpush.msra.mxu0 0.0
    %3219 = vmatpush.msra.mxu0 0.0
    %3220 = vmatpush.msra.mxu0 0.0
    %3221 = vmatpush.msra.mxu0 0.0
    %3222 = vmatpush.msra.mxu0 0.0
    %3223 = vmatpush.msra.mxu0 0.0
    %3224 = vmatpush.msra.mxu0 0.0
    %3225 = vmatpush.msra.mxu0 0.0
    %3226 = vmatpush.msra.mxu0 0.0
    %3227 = vmatpush.msra.mxu0 0.0
    %3228 = vmatpush.msra.mxu0 %v3208
    %3229 = vmatmul.f32.gmra.mxu0 %v3211
    %v3230 = vpop.f32.mrf.mxu0
    %v3231 = vadd.f32 0.0, %v3230
    %3232 = vdwg.mxu0
    %3233 = vrot.lane.b32.xlu0 %v2821, 96
    %v3234 = vpop.permute.xlu0 %3233
    %v3237 = vsel %vm334, %v3206, 0
    %3239 = vmatpush.msra.mxu0 0.0
    %3240 = vmatpush.msra.mxu0 0.0
    %3241 = vmatpush.msra.mxu0 0.0
    %3242 = vmatpush.msra.mxu0 0.0
    %3243 = vmatpush.msra.mxu0 0.0
    %3244 = vmatpush.msra.mxu0 0.0
    %3245 = vmatpush.msra.mxu0 0.0
    %3246 = vmatpush.msra.mxu0 0.0
    %3247 = vmatpush.msra.mxu0 0.0
    %3248 = vmatpush.msra.mxu0 0.0
    %3249 = vmatpush.msra.mxu0 0.0
    %3250 = vmatpush.msra.mxu0 0.0
    %3251 = vmatpush.msra.mxu0 0.0
    %3252 = vmatpush.msra.mxu0 0.0
    %3253 = vmatpush.msra.mxu0 0.0
    %3254 = vmatpush.msra.mxu0 %v3234
    %3255 = vmatmul.f32.gmra.mxu0 %v3237
    %v3256 = vpop.f32.mrf.mxu0
    %v3257 = vadd.f32 0.0, %v3256
    %3258 = vdwg.mxu0
    %v3259 = vpack.c.bf16 %v3257, %v3231
    %v3262 = vunpack.c.l.b16 %v2636
    %v3263 = vunpack.c.l.b16 %v2637
    %v3264 = vpack.c.b16 %v3263, %v3262
    %v3267 = vsel %vm280, %v3259, 0
    %3269 = vmatpush.bf16.msra.mxu0 0
    %3270 = vmatpush.bf16.msra.mxu0 0
    %3271 = vmatpush.bf16.msra.mxu0 0
    %3272 = vmatpush.bf16.msra.mxu0 0
    %3273 = vmatpush.bf16.msra.mxu0 0
    %3274 = vmatpush.bf16.msra.mxu0 0
    %3275 = vmatpush.bf16.msra.mxu0 0
    %3276 = vmatpush.bf16.msra.mxu0 %v3264
    %3277 = vmatmul.bf16.gmra.mxu0 %v3267
    %v3278 = vpop.f32.mrf.mxu0
    %v3279 = vadd.f32 0.0, %v3278
    %v3280 = vpop.f32.mrf.mxu0
    %v3281 = vadd.f32 0.0, %v3280
    %3282 = vdwg.mxu0
    %v3283 = vadd.f32 %v3125, %v3279
    %v3284 = vadd.f32 %v3127, %v3281
    %3285 = vrot.lane.b32.xlu0 %v2823, 80
    %v3286 = vpop.permute.xlu0 %3285
    %3287 = vrot.lane.b32.xlu0 %v2805, 16
    %v3288 = vpop.permute.xlu0 %3287
    %v3289 = vsel %vm280, %v3286, 0
    %v3291 = vsel %vm280, %v3288, 0
    %3293 = vmatpush.xpose.msra.mxu0 0.0
    %3294 = vmatpush.xpose.msra.mxu0 0.0
    %3295 = vmatpush.xpose.msra.mxu0 0.0
    %3296 = vmatpush.xpose.msra.mxu0 0.0
    %3297 = vmatpush.xpose.msra.mxu0 0.0
    %3298 = vmatpush.xpose.msra.mxu0 0.0
    %3299 = vmatpush.xpose.msra.mxu0 0.0
    %3300 = vmatpush.xpose.msra.mxu0 0.0
    %3301 = vmatpush.xpose.msra.mxu0 0.0
    %3302 = vmatpush.xpose.msra.mxu0 0.0
    %3303 = vmatpush.xpose.msra.mxu0 0.0
    %3304 = vmatpush.xpose.msra.mxu0 0.0
    %3305 = vmatpush.xpose.msra.mxu0 0.0
    %3306 = vmatpush.xpose.msra.mxu0 0.0
    %3307 = vmatpush.xpose.msra.mxu0 0.0
    %3308 = vmatpush.xpose.msra.mxu0 %v3291
    %3309 = vmatmul.f32.gmra.mxu0 %v3289
    %v3310 = vpop.f32.mrf.mxu0
    %v3311 = vadd.f32 %v141, %v3310
    %3312 = vdwg.mxu0
    %3313 = vrot.lane.b32.xlu0 %v2824, 80
    %v3314 = vpop.permute.xlu0 %3313
    %3315 = vrot.lane.b32.xlu0 %v2807, 16
    %v3316 = vpop.permute.xlu0 %3315
    %v3317 = vsel %vm280, %v3314, 0
    %v3319 = vsel %vm280, %v3316, 0
    %3321 = vmatpush.xpose.msra.mxu0 0.0
    %3322 = vmatpush.xpose.msra.mxu0 0.0
    %3323 = vmatpush.xpose.msra.mxu0 0.0
    %3324 = vmatpush.xpose.msra.mxu0 0.0
    %3325 = vmatpush.xpose.msra.mxu0 0.0
    %3326 = vmatpush.xpose.msra.mxu0 0.0
    %3327 = vmatpush.xpose.msra.mxu0 0.0
    %3328 = vmatpush.xpose.msra.mxu0 0.0
    %3329 = vmatpush.xpose.msra.mxu0 0.0
    %3330 = vmatpush.xpose.msra.mxu0 0.0
    %3331 = vmatpush.xpose.msra.mxu0 0.0
    %3332 = vmatpush.xpose.msra.mxu0 0.0
    %3333 = vmatpush.xpose.msra.mxu0 0.0
    %3334 = vmatpush.xpose.msra.mxu0 0.0
    %3335 = vmatpush.xpose.msra.mxu0 0.0
    %3336 = vmatpush.xpose.msra.mxu0 %v3319
    %3337 = vmatmul.f32.gmra.mxu0 %v3317
    %v3338 = vpop.f32.mrf.mxu0
    %v3339 = vadd.f32 %v141, %v3338
    %3340 = vdwg.mxu0
    %v3341 = vsel %vm334, %v3311, -inf
    %3342 = vmax.xlane.f32.xlu0 %v3341
    %v3343 = vpop.xlane.xlu0 %3342
    %v3344 = vsel %vm334, %v3339, -inf
    %3345 = vmax.xlane.f32.xlu0 %v3344
    %v3346 = vpop.xlane.xlu0 %3345
    %v3347 = vsub.f32 %v3311, %v3343
    %v3348 = vsub.f32 %v3339, %v3346
    %v3349 = vmul.f32 %v3347, 1.442695
    %v3350 = vpow.pop %v3349
    %v3351 = vmul.f32 %v3348, 1.442695
    %v3352 = vpow.pop %v3351
    %v3353 = vsel %vm334, %v3350, 0.0
    %3354 = vadd.xlane.f32.xlu0 %v3353
    %v3355 = vpop.xlane.xlu0 %3354
    %v3356 = vsel %vm334, %v3352, 0.0
    %3357 = vadd.xlane.f32.xlu0 %v3356
    %v3358 = vpop.xlane.xlu0 %3357
    %v3359 = vrcp.pop %v3355
    %v3360 = vrcp.pop %v3358
    %v3361 = vmul.f32 %v3350, %v3359
    %v3362 = vmul.f32 %v3352, %v3360
    %3363 = vrot.lane.b32.xlu0 %v2819, 80
    %v3364 = vpop.permute.xlu0 %3363
    %v3367 = vsel %vm334, %v3361, 0
    %3369 = vmatpush.msra.mxu0 0.0
    %3370 = vmatpush.msra.mxu0 0.0
    %3371 = vmatpush.msra.mxu0 0.0
    %3372 = vmatpush.msra.mxu0 0.0
    %3373 = vmatpush.msra.mxu0 0.0
    %3374 = vmatpush.msra.mxu0 0.0
    %3375 = vmatpush.msra.mxu0 0.0
    %3376 = vmatpush.msra.mxu0 0.0
    %3377 = vmatpush.msra.mxu0 0.0
    %3378 = vmatpush.msra.mxu0 0.0
    %3379 = vmatpush.msra.mxu0 0.0
    %3380 = vmatpush.msra.mxu0 0.0
    %3381 = vmatpush.msra.mxu0 0.0
    %3382 = vmatpush.msra.mxu0 0.0
    %3383 = vmatpush.msra.mxu0 0.0
    %3384 = vmatpush.msra.mxu0 %v3364
    %3385 = vmatmul.f32.gmra.mxu0 %v3367
    %v3386 = vpop.f32.mrf.mxu0
    %v3387 = vadd.f32 0.0, %v3386
    %3388 = vdwg.mxu0
    %3389 = vrot.lane.b32.xlu0 %v2821, 80
    %v3390 = vpop.permute.xlu0 %3389
    %v3393 = vsel %vm334, %v3362, 0
    %3395 = vmatpush.msra.mxu0 0.0
    %3396 = vmatpush.msra.mxu0 0.0
    %3397 = vmatpush.msra.mxu0 0.0
    %3398 = vmatpush.msra.mxu0 0.0
    %3399 = vmatpush.msra.mxu0 0.0
    %3400 = vmatpush.msra.mxu0 0.0
    %3401 = vmatpush.msra.mxu0 0.0
    %3402 = vmatpush.msra.mxu0 0.0
    %3403 = vmatpush.msra.mxu0 0.0
    %3404 = vmatpush.msra.mxu0 0.0
    %3405 = vmatpush.msra.mxu0 0.0
    %3406 = vmatpush.msra.mxu0 0.0
    %3407 = vmatpush.msra.mxu0 0.0
    %3408 = vmatpush.msra.mxu0 0.0
    %3409 = vmatpush.msra.mxu0 0.0
    %3410 = vmatpush.msra.mxu0 %v3390
    %3411 = vmatmul.f32.gmra.mxu0 %v3393
    %v3412 = vpop.f32.mrf.mxu0
    %v3413 = vadd.f32 0.0, %v3412
    %3414 = vdwg.mxu0
    %v3415 = vpack.c.bf16 %v3413, %v3387
    %v3418 = vunpack.c.l.b16 %v2638
    %v3419 = vunpack.c.l.b16 %v2639
    %v3420 = vpack.c.b16 %v3419, %v3418
    %v3423 = vsel %vm280, %v3415, 0
    %3425 = vmatpush.bf16.msra.mxu0 0
    %3426 = vmatpush.bf16.msra.mxu0 0
    %3427 = vmatpush.bf16.msra.mxu0 0
    %3428 = vmatpush.bf16.msra.mxu0 0
    %3429 = vmatpush.bf16.msra.mxu0 0
    %3430 = vmatpush.bf16.msra.mxu0 0
    %3431 = vmatpush.bf16.msra.mxu0 0
    %3432 = vmatpush.bf16.msra.mxu0 %v3420
    %3433 = vmatmul.bf16.gmra.mxu0 %v3423
    %v3434 = vpop.f32.mrf.mxu0
    %v3435 = vadd.f32 0.0, %v3434
    %v3436 = vpop.f32.mrf.mxu0
    %v3437 = vadd.f32 0.0, %v3436
    %3438 = vdwg.mxu0
    %v3439 = vadd.f32 %v3283, %v3435
    %v3440 = vadd.f32 %v3284, %v3437
    %v3441 = vadd.f32 %v2614, %v3439
    %v3442 = vadd.f32 %v2615, %v3440
    %v3444 = vperm.slane %v2641, 0
    %v3446 = vadd.f32 %v3441, %v3444
    %v3447 = vadd.f32 %v3442, %v3444
    %v3448 = vsel %vm1506, %v3446, 0.0
    %3449 = vadd.xlane.f32.xlu0 %v3448
    %v3450 = vpop.xlane.xlu0 %3449
    %v3451 = vsel %vm1506, %v3447, 0.0
    %3452 = vadd.xlane.f32.xlu0 %v3451
    %v3453 = vpop.xlane.xlu0 %3452
    %v3454 = vmul.f32 %v3450, %v1519
    %v3455 = vmul.f32 %v3453, %v1519
    %v3456 = vsub.f32 %v3446, %v3454
    %v3457 = vsub.f32 %v3447, %v3455
    %v3458 = vmul.f32 %v3456, %v3456
    %v3459 = vmul.f32 %v3457, %v3457
    %v3460 = vsel %vm1506, %v3458, 0.0
    %3461 = vadd.xlane.f32.xlu0 %v3460
    %v3462 = vpop.xlane.xlu0 %3461
    %v3463 = vsel %vm1506, %v3459, 0.0
    %3464 = vadd.xlane.f32.xlu0 %v3463
    %v3465 = vpop.xlane.xlu0 %3464
    %v3466 = vmul.f32 %v3462, %v1519
    %v3467 = vmul.f32 %v3465, %v1519
    %v3468 = vadd.f32 %v3466, 1e-05
    %v3469 = vadd.f32 %v3467, 1e-05
    %v3470 = vrsqrt.pop %v3468
    %v3471 = vmul.f32 %v3470, %v3468
    %v3472 = vmul.f32 %v3471, %v3470
    %v3473 = vmul.f32 0.5, %v3472
    %v3474 = vsub.f32 1.5, %v3473
    %v3475 = vmul.f32 %v3470, %v3474
    %vm3476 = vweird.f32 %v3468
    %vm3477 = vweird.f32 %v3470
    %vm3478 = vmor %vm3476, %vm3477
    %v3479 = vsel %vm3478, %v3470, %v3475
    %v3480 = vrsqrt.pop %v3469
    %v3481 = vmul.f32 %v3480, %v3469
    %v3482 = vmul.f32 %v3481, %v3480
    %v3483 = vmul.f32 0.5, %v3482
    %v3484 = vsub.f32 1.5, %v3483
    %v3485 = vmul.f32 %v3480, %v3484
    %vm3486 = vweird.f32 %v3469
    %vm3487 = vweird.f32 %v3480
    %vm3488 = vmor %vm3486, %vm3487
    %v3489 = vsel %vm3488, %v3480, %v3485
    %v3490 = vmul.f32 %v3456, %v3479
    %v3491 = vmul.f32 %v3457, %v3489
    %v3493 = vperm.slane %v2643, 0
    %v3495 = vmul.f32 %v3490, %v3493
    %v3496 = vmul.f32 %v3491, %v3493
    %v3498 = vperm.slane %v2645, 0
    %v3500 = vadd.f32 %v3495, %v3498
    %v3501 = vadd.f32 %v3496, %v3498
    %v3502 = vpack.c.bf16 %v3501, %v3500
    %v3504 = vperm.slane %v2656, 0
    %v3505 = vperm.slane %v2656, 1
    %v3516 = vunpack.c.l.b16 %v2647
    %v3517 = vunpack.c.h.b16 %v2647
    %v3518 = vunpack.c.l.b16 %v2648
    %v3519 = vunpack.c.h.b16 %v2648
    %v3520 = vunpack.c.l.b16 %v2649
    %v3521 = vunpack.c.h.b16 %v2649
    %v3522 = vunpack.c.l.b16 %v2650
    %v3523 = vunpack.c.h.b16 %v2650
    %v3524 = vunpack.c.l.b16 %v2651
    %v3525 = vunpack.c.h.b16 %v2651
    %v3526 = vunpack.c.l.b16 %v2652
    %v3527 = vunpack.c.h.b16 %v2652
    %v3528 = vunpack.c.l.b16 %v2653
    %v3529 = vunpack.c.h.b16 %v2653
    %v3530 = vunpack.c.l.b16 %v2654
    %v3531 = vunpack.c.h.b16 %v2654
    %v3532 = vpack.c.b16 %v3518, %v3516
    %v3533 = vpack.c.b16 %v3519, %v3517
    %v3534 = vpack.c.b16 %v3522, %v3520
    %v3535 = vpack.c.b16 %v3523, %v3521
    %v3536 = vpack.c.b16 %v3526, %v3524
    %v3537 = vpack.c.b16 %v3527, %v3525
    %v3538 = vpack.c.b16 %v3530, %v3528
    %v3539 = vpack.c.b16 %v3531, %v3529
    %v3549 = vsel %vm1506, %v3502, 0
    %3551 = vmatpush.bf16.msra.mxu0 0
    %3552 = vmatpush.bf16.msra.mxu0 0
    %3553 = vmatpush.bf16.msra.mxu0 0
    %3554 = vmatpush.bf16.msra.mxu0 0
    %3555 = vmatpush.bf16.msra.mxu0 %v3538
    %3556 = vmatpush.bf16.msra.mxu0 %v3536
    %3557 = vmatpush.bf16.msra.mxu0 %v3534
    %3558 = vmatpush.bf16.msra.mxu0 %v3532
    %3559 = vmatmul.bf16.gmra.mxu0 %v3549
    %v3560 = vpop.f32.mrf.mxu0
    %v3561 = vadd.f32 %v3504, %v3560
    %v3562 = vpop.f32.mrf.mxu0
    %v3563 = vadd.f32 %v3504, %v3562
    %3564 = vdwg.mxu0
    %3565 = vmatpush.bf16.msra.mxu0 0
    %3566 = vmatpush.bf16.msra.mxu0 0
    %3567 = vmatpush.bf16.msra.mxu0 0
    %3568 = vmatpush.bf16.msra.mxu0 0
    %3569 = vmatpush.bf16.msra.mxu0 %v3539
    %3570 = vmatpush.bf16.msra.mxu0 %v3537
    %3571 = vmatpush.bf16.msra.mxu0 %v3535
    %3572 = vmatpush.bf16.msra.mxu0 %v3533
    %3573 = vmatmul.bf16.gmra.mxu0 %v3549
    %v3574 = vpop.f32.mrf.mxu0
    %v3575 = vadd.f32 %v3505, %v3574
    %v3576 = vpop.f32.mrf.mxu0
    %v3577 = vadd.f32 %v3505, %v3576
    %3578 = vdwg.mxu0
    %v3579 = vmul.f32 %v3561, 1.702
    %v3580 = vmul.f32 %v3575, 1.702
    %v3581 = vmul.f32 %v3563, 1.702
    %v3582 = vmul.f32 %v3577, 1.702
    %v3583 = vxor.u32 %v3579, 2147483648
    %v3584 = vxor.u32 %v3580, 2147483648
    %v3585 = vxor.u32 %v3581, 2147483648
    %v3586 = vxor.u32 %v3582, 2147483648
    %v3587 = vmul.f32 %v3583, 1.442695
    %v3588 = vpow.pop %v3587
    %v3589 = vmul.f32 %v3584, 1.442695
    %v3590 = vpow.pop %v3589
    %v3591 = vmul.f32 %v3585, 1.442695
    %v3592 = vpow.pop %v3591
    %v3593 = vmul.f32 %v3586, 1.442695
    %v3594 = vpow.pop %v3593
    %v3595 = vadd.f32 %v3588, 1.0
    %v3596 = vadd.f32 %v3590, 1.0
    %v3597 = vadd.f32 %v3592, 1.0
    %v3598 = vadd.f32 %v3594, 1.0
    %v3599 = vrcp.pop %v3595
    %v3600 = vmul.f32 %v3595, %v3599
    %v3601 = vsub.f32 1.0, %v3600
    %v3602 = vmul.f32 %v3599, %v3601
    %v3603 = vadd.f32 %v3599, %v3602
    %vm3604 = vweird.f32 %v3595
    %vm3605 = vweird.f32 %v3599
    %vm3606 = vmor %vm3604, %vm3605
    %v3607 = vsel %vm3606, %v3599, %v3603
    %v3608 = vand.u32 2147483647, %v3595
    %vm3609 = vcmp.eq.f32.partialorder %v3608, 8.507059e+37
    %v3610 = vand.u32 %v3595, 2147483648
    %v3611 = vor.u32 1.1754944e-38, %v3610
    %v3612 = vsel %vm3609, %v3611, %v3607
    %v3613 = vmul.f32 1.0, %v3612
    %v3614 = vrcp.pop %v3596
    %v3615 = vmul.f32 %v3596, %v3614
    %v3616 = vsub.f32 1.0, %v3615
    %v3617 = vmul.f32 %v3614, %v3616
    %v3618 = vadd.f32 %v3614, %v3617
    %vm3619 = vweird.f32 %v3596
    %vm3620 = vweird.f32 %v3614
    %vm3621 = vmor %vm3619, %vm3620
    %v3622 = vsel %vm3621, %v3614, %v3618
    %v3623 = vand.u32 2147483647, %v3596
    %vm3624 = vcmp.eq.f32.partialorder %v3623, 8.507059e+37
    %v3625 = vand.u32 %v3596, 2147483648
    %v3626 = vor.u32 1.1754944e-38, %v3625
    %v3627 = vsel %vm3624, %v3626, %v3622
    %v3628 = vmul.f32 1.0, %v3627
    %v3629 = vrcp.pop %v3597
    %v3630 = vmul.f32 %v3597, %v3629
    %v3631 = vsub.f32 1.0, %v3630
    %v3632 = vmul.f32 %v3629, %v3631
    %v3633 = vadd.f32 %v3629, %v3632
    %vm3634 = vweird.f32 %v3597
    %vm3635 = vweird.f32 %v3629
    %vm3636 = vmor %vm3634, %vm3635
    %v3637 = vsel %vm3636, %v3629, %v3633
    %v3638 = vand.u32 2147483647, %v3597
    %vm3639 = vcmp.eq.f32.partialorder %v3638, 8.507059e+37
    %v3640 = vand.u32 %v3597, 2147483648
    %v3641 = vor.u32 1.1754944e-38, %v3640
    %v3642 = vsel %vm3639, %v3641, %v3637
    %v3643 = vmul.f32 1.0, %v3642
    %v3644 = vrcp.pop %v3598
    %v3645 = vmul.f32 %v3598, %v3644
    %v3646 = vsub.f32 1.0, %v3645
    %v3647 = vmul.f32 %v3644, %v3646
    %v3648 = vadd.f32 %v3644, %v3647
    %vm3649 = vweird.f32 %v3598
    %vm3650 = vweird.f32 %v3644
    %vm3651 = vmor %vm3649, %vm3650
    %v3652 = vsel %vm3651, %v3644, %v3648
    %v3653 = vand.u32 2147483647, %v3598
    %vm3654 = vcmp.eq.f32.partialorder %v3653, 8.507059e+37
    %v3655 = vand.u32 %v3598, 2147483648
    %v3656 = vor.u32 1.1754944e-38, %v3655
    %v3657 = vsel %vm3654, %v3656, %v3652
    %v3658 = vmul.f32 1.0, %v3657
    %v3659 = vmul.f32 %v3561, %v3613
    %v3660 = vmul.f32 %v3575, %v3628
    %v3661 = vmul.f32 %v3563, %v3643
    %v3662 = vmul.f32 %v3577, %v3658
    %v3663 = vpack.c.bf16 %v3661, %v3659
    %v3664 = vpack.c.bf16 %v3662, %v3660
    %v3666 = vperm.slane %v2691, 0
    %v3700 = vunpack.c.l.b16 %v2658
    %v3701 = vunpack.c.l.b16 %v2659
    %v3702 = vunpack.c.l.b16 %v2660
    %v3703 = vunpack.c.l.b16 %v2661
    %v3704 = vunpack.c.l.b16 %v2662
    %v3705 = vunpack.c.l.b16 %v2663
    %v3706 = vunpack.c.l.b16 %v2664
    %v3707 = vunpack.c.l.b16 %v2665
    %v3708 = vunpack.c.l.b16 %v2666
    %v3709 = vunpack.c.l.b16 %v2667
    %v3710 = vunpack.c.l.b16 %v2668
    %v3711 = vunpack.c.l.b16 %v2669
    %v3712 = vunpack.c.l.b16 %v2670
    %v3713 = vunpack.c.l.b16 %v2671
    %v3714 = vunpack.c.l.b16 %v2672
    %v3715 = vunpack.c.l.b16 %v2673
    %v3716 = vunpack.c.l.b16 %v2674
    %v3717 = vunpack.c.l.b16 %v2675
    %v3718 = vunpack.c.l.b16 %v2676
    %v3719 = vunpack.c.l.b16 %v2677
    %v3720 = vunpack.c.l.b16 %v2678
    %v3721 = vunpack.c.l.b16 %v2679
    %v3722 = vunpack.c.l.b16 %v2680
    %v3723 = vunpack.c.l.b16 %v2681
    %v3724 = vunpack.c.l.b16 %v2682
    %v3725 = vunpack.c.l.b16 %v2683
    %v3726 = vunpack.c.l.b16 %v2684
    %v3727 = vunpack.c.l.b16 %v2685
    %v3728 = vunpack.c.l.b16 %v2686
    %v3729 = vunpack.c.l.b16 %v2687
    %v3730 = vunpack.c.l.b16 %v2688
    %v3731 = vunpack.c.l.b16 %v2689
    %v3732 = vpack.c.b16 %v3701, %v3700
    %v3733 = vpack.c.b16 %v3703, %v3702
    %v3734 = vpack.c.b16 %v3705, %v3704
    %v3735 = vpack.c.b16 %v3707, %v3706
    %v3736 = vpack.c.b16 %v3709, %v3708
    %v3737 = vpack.c.b16 %v3711, %v3710
    %v3738 = vpack.c.b16 %v3713, %v3712
    %v3739 = vpack.c.b16 %v3715, %v3714
    %v3740 = vpack.c.b16 %v3717, %v3716
    %v3741 = vpack.c.b16 %v3719, %v3718
    %v3742 = vpack.c.b16 %v3721, %v3720
    %v3743 = vpack.c.b16 %v3723, %v3722
    %v3744 = vpack.c.b16 %v3725, %v3724
    %v3745 = vpack.c.b16 %v3727, %v3726
    %v3746 = vpack.c.b16 %v3729, %v3728
    %v3747 = vpack.c.b16 %v3731, %v3730
    %3764 = vmatpush.bf16.msra.mxu0 %v3739
    %3765 = vmatpush.bf16.msra.mxu0 %v3738
    %3766 = vmatpush.bf16.msra.mxu0 %v3737
    %3767 = vmatpush.bf16.msra.mxu0 %v3736
    %3768 = vmatpush.bf16.msra.mxu0 %v3735
    %3769 = vmatpush.bf16.msra.mxu0 %v3734
    %3770 = vmatpush.bf16.msra.mxu0 %v3733
    %3771 = vmatpush.bf16.msra.mxu0 %v3732
    %3772 = vmatmul.bf16.gmra.mxu0 %v3663
    %v3773 = vpop.f32.mrf.mxu0
    %v3774 = vadd.f32 %v3666, %v3773
    %v3775 = vpop.f32.mrf.mxu0
    %v3776 = vadd.f32 %v3666, %v3775
    %3777 = vdwg.mxu0
    %3778 = vmatpush.bf16.msra.mxu0 %v3747
    %3779 = vmatpush.bf16.msra.mxu0 %v3746
    %3780 = vmatpush.bf16.msra.mxu0 %v3745
    %3781 = vmatpush.bf16.msra.mxu0 %v3744
    %3782 = vmatpush.bf16.msra.mxu0 %v3743
    %3783 = vmatpush.bf16.msra.mxu0 %v3742
    %3784 = vmatpush.bf16.msra.mxu0 %v3741
    %3785 = vmatpush.bf16.msra.mxu0 %v3740
    %3786 = vmatmul.bf16.gmra.mxu0 %v3664
    %v3787 = vpop.f32.mrf.mxu0
    %v3788 = vadd.f32 %v3774, %v3787
    %v3789 = vpop.f32.mrf.mxu0
    %v3790 = vadd.f32 %v3776, %v3789
    %3791 = vdwg.mxu0
    %v3792 = vadd.f32 %v3446, %v3788
    %v3793 = vadd.f32 %v3447, %v3790
    %3794 = vst.msk [vmem:[#allocation2] sm:$0xff] %vm180, %v1438
    %3795 = vst.msk [vmem:[#allocation2 + $0x8] sm:$0xff] %vm180, %v1439
    %3798 = vrot.lane.b32.xlu0 %v3792, 32
    %v3799 = vpop.permute.xlu0 %3798
    %3800 = vrot.lane.b32.xlu0 %v3793, 32
    %v3801 = vpop.permute.xlu0 %3800
    %vm3804 = vcmask 785664
    %3805 = vst.msk [vmem:[#allocation2] sm:$0xff] %vm3804, %v3799
    %3806 = vst.msk [vmem:[#allocation2 + $0x8] sm:$0xff] %vm3804, %v3801
    %v3807 = vld [vmem:[%s53] sm:$0x1]
    %v3808 = vld [vmem:[%s55] sm:$0x1]
    %v3809 = vsel %vm1506, %v3792, 0.0
    %3810 = vadd.xlane.f32.xlu0 %v3809
    %v3811 = vpop.xlane.xlu0 %3810
    %v3812 = vsel %vm1506, %v3793, 0.0
    %3813 = vadd.xlane.f32.xlu0 %v3812
    %v3814 = vpop.xlane.xlu0 %3813
    %v3815 = vmul.f32 %v3811, %v1519
    %v3816 = vmul.f32 %v3814, %v1519
    %v3817 = vsub.f32 %v3792, %v3815
    %v3818 = vsub.f32 %v3793, %v3816
    %v3819 = vmul.f32 %v3817, %v3817
    %v3820 = vmul.f32 %v3818, %v3818
    %v3821 = vsel %vm1506, %v3819, 0.0
    %3822 = vadd.xlane.f32.xlu0 %v3821
    %v3823 = vpop.xlane.xlu0 %3822
    %v3824 = vsel %vm1506, %v3820, 0.0
    %3825 = vadd.xlane.f32.xlu0 %v3824
    %v3826 = vpop.xlane.xlu0 %3825
    %v3827 = vmul.f32 %v3823, %v1519
    %v3828 = vmul.f32 %v3826, %v1519
    %v3829 = vadd.f32 %v3827, 1e-05
    %v3830 = vadd.f32 %v3828, 1e-05
    %v3831 = vrsqrt.pop %v3829
    %v3832 = vmul.f32 %v3831, %v3829
    %v3833 = vmul.f32 %v3832, %v3831
    %v3834 = vmul.f32 0.5, %v3833
    %v3835 = vsub.f32 1.5, %v3834
    %v3836 = vmul.f32 %v3831, %v3835
    %vm3837 = vweird.f32 %v3829
    %vm3838 = vweird.f32 %v3831
    %vm3839 = vmor %vm3837, %vm3838
    %v3840 = vsel %vm3839, %v3831, %v3836
    %v3841 = vrsqrt.pop %v3830
    %v3842 = vmul.f32 %v3841, %v3830
    %v3843 = vmul.f32 %v3842, %v3841
    %v3844 = vmul.f32 0.5, %v3843
    %v3845 = vsub.f32 1.5, %v3844
    %v3846 = vmul.f32 %v3841, %v3845
    %vm3847 = vweird.f32 %v3830
    %vm3848 = vweird.f32 %v3841
    %vm3849 = vmor %vm3847, %vm3848
    %v3850 = vsel %vm3849, %v3841, %v3846
    %v3851 = vmul.f32 %v3817, %v3840
    %v3852 = vmul.f32 %v3818, %v3850
    %v3854 = vperm.slane %v3807, 0
    %v3856 = vmul.f32 %v3851, %v3854
    %v3857 = vmul.f32 %v3852, %v3854
    %v3859 = vperm.slane %v3808, 0
    %v3861 = vadd.f32 %v3856, %v3859
    %v3862 = vadd.f32 %v3857, %v3859
    %v3863 = vld [vmem:[%s59] sm:$0x3]
    %v3865 = vsel %vm280, %v3863, 0
    %3867 = vmatpush.msra.mxu0 0.0
    %3868 = vmatpush.msra.mxu0 0.0
    %3869 = vmatpush.msra.mxu0 0.0
    %3870 = vmatpush.msra.mxu0 0.0
    %3871 = vmatpush.msra.mxu0 0.0
    %3872 = vmatpush.msra.mxu0 0.0
    %3873 = vmatpush.msra.mxu0 0.0
    %3874 = vmatpush.msra.mxu0 0.0
    %3875 = vmatpush.msra.mxu0 0.0
    %3876 = vmatpush.msra.mxu0 0.0
    %3877 = vmatpush.msra.mxu0 0.0
    %3878 = vmatpush.msra.mxu0 0.0
    %3879 = vmatpush.msra.mxu0 0.0
    %3880 = vmatpush.msra.mxu0 0.0
    %3881 = vmatpush.msra.mxu0 %v3862
    %3882 = vmatpush.msra.mxu0 %v3861
    %3883 = vmatmul.f32.gmra.mxu0 %v3865
    %v3884 = vpop.f32.mrf.mxu0
    %v3885 = vadd.f32 0.0, %v3884
    %3886 = vdwg.mxu0
    %v3887 = vpack.c.bf16 %v3885, %v3885
    %v3888 = vld [vmem:[%s57] sm:$0xf]
    %v3889 = vld [vmem:[%s57 + $0x4] sm:$0xf]
    %v3890 = vld [vmem:[%s57 + $0x8] sm:$0xf]
    %v3891 = vld [vmem:[%s57 + $0xc] sm:$0xf]
    %v3892 = vld [vmem:[%s57 + $0x10] sm:$0xf]
    %v3893 = vld [vmem:[%s57 + $0x14] sm:$0xf]
    %v3894 = vld [vmem:[%s57 + $0x18] sm:$0xf]
    %v3895 = vld [vmem:[%s57 + $0x1c] sm:$0xf]
    %v3904 = vunpack.c.l.b16 %v3888
    %v3905 = vunpack.c.l.b16 %v3889
    %v3906 = vunpack.c.l.b16 %v3890
    %v3907 = vunpack.c.l.b16 %v3891
    %v3908 = vunpack.c.l.b16 %v3892
    %v3909 = vunpack.c.l.b16 %v3893
    %v3910 = vunpack.c.l.b16 %v3894
    %v3911 = vunpack.c.l.b16 %v3895
    %v3912 = vpack.c.b16 %v3905, %v3904
    %v3913 = vpack.c.b16 %v3907, %v3906
    %v3914 = vpack.c.b16 %v3909, %v3908
    %v3915 = vpack.c.b16 %v3911, %v3910
    %v3921 = vsel %vm1506, %v3887, 0
    %3923 = vmatpush.bf16.msra.mxu0 0
    %3924 = vmatpush.bf16.msra.mxu0 0
    %3925 = vmatpush.bf16.msra.mxu0 0
    %3926 = vmatpush.bf16.msra.mxu0 0
    %3927 = vmatpush.bf16.msra.mxu0 %v3915
    %3928 = vmatpush.bf16.msra.mxu0 %v3914
    %3929 = vmatpush.bf16.msra.mxu0 %v3913
    %3930 = vmatpush.bf16.msra.mxu0 %v3912
    %3931 = vmatmul.bf16.gmra.mxu0 %v3921
    %v3932 = vpop.f32.mrf.mxu0
    %v3933 = vadd.f32 0.0, %v3932
    %v3934 = vpop.f32.mrf.mxu0
    %3935 = vdwg.mxu0
    %v3936 = vld [vmem:[%s61] sm:$0x3]
    %3938 = vset.pattern.permute.xlu0 0
    %3939 = vperm.xlu0 %3938, %v3936
    %v3940 = vpop.permute.xlu0 %3939
    %v3942 = vmul.f32 %v3933, %v3940
    %vm3943 = vcmask 517120
    %3944 = vst.msk [vmem:[#allocation4] sm:$0x3] %vm3943, %v3942
    // Predicated region
    $region126: #{text_model_forward.1} parent=1 // pred_check
      _
    $region127: #{text_model_forward.1} parent=1 // pred_check_branch
      %3946 = sbr.rel (0) target = $region129
    $region128: #{text_model_forward.1} parent=1 // pred_region
      %3948 = vsyncadd [#allocation3], 0
      %s3949 = sshll.u32 [#allocation2], 4
      %s3950 = int_to_ptr.vmem [resolvable:$true] %s3949
      %s3951 = sshll.u32 %s63, 4
      %s3952 = int_to_ptr.hbm [resolvable:$true] %s3951
      %3957 = dma.vmem_to_hbm [thread:$0]  %s3950, 256, %s3952, [#allocation3], 128, 128, 8
    $region129: #{text_model_forward.1} parent=1 // pred_fallthru
      _
    // Predicated region
    $region130: #{text_model_forward.1} parent=1 // pred_check
      _
    $region131: #{text_model_forward.1} parent=1 // pred_check_branch
      %3959 = sbr.rel (0) target = $region133
    $region132: #{text_model_forward.1} parent=1 // pred_region
      %3961 = vsyncadd [#allocation5], 0
      %s3963 = sshll.u32 [#allocation4], 4
      %s3964 = int_to_ptr.vmem [resolvable:$true] %s3963
      %s3965 = sshll.u32 %s65, 4
      %s3966 = int_to_ptr.hbm [resolvable:$true] %s3965
      %3968 = dma.vmem_to_hbm [thread:$0]  %s3964, 32, %s3966, [#allocation5]
    $region133: #{text_model_forward.1} parent=1 // pred_fallthru
      _
    // Predicated region
    $region134: #{text_model_forward.1} parent=1 // pred_check
      _
    $region135: #{text_model_forward.1} parent=1 // pred_check_branch
      %3970 = sbr.rel (0) target = $region137
    $region136: #{text_model_forward.1} parent=1 // pred_region
      %3972 = dma.done [#allocation3], 256
    $region137: #{text_model_forward.1} parent=1 // pred_fallthru
      _
    // Predicated region
    $region138: #{text_model_forward.1} parent=1 // pred_check
      _
    $region139: #{text_model_forward.1} parent=1 // pred_check_branch
      %3974 = sbr.rel (0) target = $region141
    $region140: #{text_model_forward.1} parent=1 // pred_region
      %3976 = dma.done [#allocation5], 32
    $region141: #{text_model_forward.1} parent=1 // pred_fallthru
      _
    %3977 = vsyncpa [#allocation3], 1
    %3978 = vsyncpa [#allocation5], 1

</llo_original>
